<compile_context>
chip_gen: v7x
topology: tpu7x:2x2x1
jax: 0.10.0
libtpu: 0.0.40
codegen_flags: <defaults>
</compile_context>

<pallas_src>
import jax
import jax.numpy as jnp
from jax.experimental import pallas as pl
from jax.experimental.pallas import tpu as pltpu


def _round_up(x, m):
    return (x + m - 1) // m * m


def _vmem_capacity_bytes():
    """Per-core VMEM capacity; conservative (v7x) fallback if the query fails."""
    try:
        return int(pltpu.get_tpu_info().vmem_capacity_bytes)
    except Exception:
        return 64 * 1024 * 1024


def _pick_tile_h(wp, w, c1p, c2p, kh, kw, halo, in_isz, out_isz, budget_bytes):
    """Itemsize-aware per-output-row VMEM footprint -> largest TH under budget."""
    halo_rows = 8 if halo > 0 else 0
    fixed = kh * kw * c1p * c2p * in_isz            # weights (single-buffered VMEM)
    fixed += 2 * c2p * 4                            # BN scale + bias (f32)
    fixed += 2 * halo_rows * wp * c1p * in_isz      # 8-row halo block, double buffered
    fixed += 2 * halo * wp * c1p * in_isz           # tiny bottom-window scratch
    per_row = 2 * wp * c1p * in_isz                 # main input block, double buffered
    per_row += 2 * w * c1p * in_isz                 # per-kw shifted-slice temporaries
    per_row += w * c2p * 4                          # f32 accumulator
    per_row += 2 * w * c2p * out_isz                # output block, double buffered
    return max(8, int((budget_bytes - fixed) // per_row))


def _make_kernel(KH, KW, TH, W, C1p, C2p, halo):
    """Fused conv + BN(affine) + SiLU kernel for one (batch, H-tile) grid step."""
    M_top = TH - halo

    def _silu_store(acc, scale, bias, o_ref, row0, rows):
        y = acc * scale + bias            # BN applied to the f32 accumulator
        y = y * jax.nn.sigmoid(y)         # SiLU in f32
        o_ref[row0:row0 + rows] = y.reshape(rows, W, C2p).astype(o_ref.dtype)

    if halo > 0:
        def kernel(xa_ref, xb_ref, w_ref, scale_ref, bias_ref, o_ref, xw_ref):
            # Tiny (2*halo)-row bottom window: last `halo` rows of this tile's
            # block + first `halo` rows of the 8-row halo block.  (The full-tile
            # window copy of the previous version is gone.)
            xw_ref[0:halo] = xa_ref[M_top:TH]
            xw_ref[halo:2 * halo] = xb_ref[0:halo]

            acc_t = (jnp.zeros((M_top * W, C2p), jnp.float32)
                     if M_top > 0 else None)
            acc_b = jnp.zeros((halo * W, C2p), jnp.float32)
            for kw in range(KW):
                # One W-shift slice per kw tap, then cheap row-offset slices of
                # the flattened column for each kh.
                xs_a = xa_ref[:, kw:kw + W, :].reshape(TH * W, C1p)
                xs_w = xw_ref[:, kw:kw + W, :].reshape(2 * halo * W, C1p)
                for kh in range(KH):
                    wk = w_ref[kh, kw]
                    if M_top > 0:
                        acc_t = acc_t + jnp.dot(
                            xs_a[kh * W:(kh + M_top) * W], wk,
                            preferred_element_type=jnp.float32)
                    acc_b = acc_b + jnp.dot(
                        xs_w[kh * W:(kh + halo) * W], wk,
                        preferred_element_type=jnp.float32)
            scale = scale_ref[...]
            bias = bias_ref[...]
            if M_top > 0:
                _silu_store(acc_t, scale, bias, o_ref, 0, M_top)
            _silu_store(acc_b, scale, bias, o_ref, M_top, halo)
    else:  # KH == KW == 1 (1x1 conv, no halo)
        def kernel(xa_ref, w_ref, scale_ref, bias_ref, o_ref):
            acc = jnp.zeros((TH * W, C2p), jnp.float32)
            for kw in range(KW):
                xs = xa_ref[:, kw:kw + W, :].reshape(TH * W, C1p)
                acc = acc + jnp.dot(xs, w_ref[0, kw],
                                    preferred_element_type=jnp.float32)
            _silu_store(acc, scale_ref[...], bias_ref[...], o_ref, 0, TH)
    return kernel


def conv_bn_silu_nhwc(x_nhwc, weight_oihw, gamma, beta, running_mean,
                      running_var, *, eps=1e-5, compute_dtype=jnp.bfloat16,
                      out_dtype=jnp.float32, tile_h=None,
                      vmem_budget_bytes=None):
    """NHWC core: Conv(c1, c2, k, s=1) + inference BN + SiLU."""
    N, H, W, C1 = x_nhwc.shape
    C2, C1w, KH, KW = weight_oihw.shape
    assert C1w == C1, "groups != 1 not supported"
    assert KH == KW and KH % 2 == 1 and KH <= 9, \
        "odd square kernels k <= 9 only ('same' autopad)"
    ph, pw = KH // 2, KW // 2
    halo = KH - 1

    LANES = 128
    C1p = _round_up(C1, LANES)      # lane-dense MXU contraction dim
    C2p = _round_up(C2, LANES)      # lane-dense output / epilogue
    Wp = W + 2 * pw

    in_isz = jnp.dtype(compute_dtype).itemsize
    out_isz = jnp.dtype(out_dtype).itemsize

    # ---- BatchNorm (inference) as a per-channel f32 affine in the epilogue ----
    scale = gamma / jnp.sqrt(running_var + eps)
    bias = beta - running_mean * scale
    scale_p = jnp.pad(scale, (0, C2p - C2)).reshape(1, C2p).astype(jnp.float32)
    bias_p = jnp.pad(bias, (0, C2p - C2)).reshape(1, C2p).astype(jnp.float32)

    # Weights: HWIO, channel-padded, cast to the MXU input dtype (UNscaled).
    w_hwio = jnp.transpose(weight_oihw, (2, 3, 1, 0))
    w_hwio = jnp.pad(w_hwio, ((0, 0), (0, 0), (0, C1p - C1), (0, C2p - C2)))
    w_hwio = w_hwio.astype(compute_dtype)

    # ---- generation-aware VMEM budget / tile choice ----
    cap = _vmem_capacity_bytes()                 # 128 MiB v5e/v6e, 64 MiB/TC v7x
    if vmem_budget_bytes is None:
        vmem_budget_bytes = int(cap * 0.60)
    vmem_limit_bytes = int(cap * 0.80)

    if tile_h is None:
        tile_h = _pick_tile_h(Wp, W, C1p, C2p, KH, KW, halo,
                              in_isz, out_isz, vmem_budget_bytes)
    TH = min(int(tile_h), _round_up(H, 8))
    if N == 1 and H > 8:
        # >= 2 grid steps so both TensorCores get work on 2-TC parts (v7x).
        TH = min(TH, _round_up(pl.cdiv(H, 2), 8))
    TH = max(8, _round_up(TH, 8))
    n_h_tiles = pl.cdiv(H, TH)

    # ---- zero 'same' padding; 8 extra bottom rows so the halo block exists ----
    Hp = n_h_tiles * TH + (8 if halo > 0 else 0)
    x_pad = jnp.pad(
        x_nhwc, ((0, 0), (ph, Hp - H - ph), (pw, pw), (0, C1p - C1))
    ).astype(compute_dtype)

    kernel = _make_kernel(KH, KW, TH, W, C1p, C2p, halo)

    in_specs = [pl.BlockSpec((None, TH, Wp, C1p), lambda n, i: (n, i, 0, 0))]
    args = [x_pad]
    if halo > 0:
        # Halo = a single 8-row sublane tile starting at element row (i+1)*TH.
        in_specs.append(
            pl.BlockSpec((None, 8, Wp, C1p),
                         lambda n, i: (n, (i + 1) * (TH // 8), 0, 0)))
        args.append(x_pad)
    # Constants: whole array in VMEM, no grid blocking -> not double-buffered.
    in_specs += [
        pl.BlockSpec(memory_space=pltpu.MemorySpace.VMEM),   # weights
        pl.BlockSpec(memory_space=pltpu.MemorySpace.VMEM),   # BN scale
        pl.BlockSpec(memory_space=pltpu.MemorySpace.VMEM),   # BN bias
    ]
    args += [w_hwio, scale_p, bias_p]

    scratch_shapes = []
    if halo > 0:
        scratch_shapes.append(pltpu.VMEM((2 * halo, Wp, C1p), compute_dtype))

    cost = pl.CostEstimate(
        flops=2 * N * n_h_tiles * TH * W * KH * KW * C1p * C2p,
        transcendentals=N * n_h_tiles * TH * W * C2p,
        bytes_accessed=(x_pad.size + w_hwio.size) * in_isz
        + N * n_h_tiles * TH * W * C2p * out_isz,
    )

    out_nhwc = pl.pallas_call(
        kernel,
        out_shape=jax.ShapeDtypeStruct((N, n_h_tiles * TH, W, C2p), out_dtype),
        grid=(N, n_h_tiles),
        in_specs=in_specs,
        out_specs=pl.BlockSpec((None, TH, W, C2p), lambda n, i: (n, i, 0, 0)),
        scratch_shapes=scratch_shapes,
        compiler_params=pltpu.CompilerParams(
            dimension_semantics=("parallel", "parallel"),
            vmem_limit_bytes=vmem_limit_bytes,
        ),
        cost_estimate=cost,
    )(*args)

    return out_nhwc[:, :H, :, :C2]


def conv_bn_silu(x_nchw, weight_oihw, gamma, beta, running_mean, running_var,
                 **kwargs):
    """PyTorch-layout (NCHW) wrapper around the NHWC Pallas kernel."""
    x_nhwc = jnp.transpose(x_nchw, (0, 2, 3, 1))
    y = conv_bn_silu_nhwc(x_nhwc, weight_oihw, gamma, beta, running_mean,
                          running_var, **kwargs)
    return jnp.transpose(y, (0, 3, 1, 2))


def reference(x_nchw, weight_oihw, gamma, beta, running_mean, running_var,
              eps=1e-5):
    """Plain-JAX reference for a numerical sanity check."""
    y = jax.lax.conv_general_dilated(
        x_nchw, weight_oihw, window_strides=(1, 1), padding="SAME",
        dimension_numbers=("NCHW", "OIHW", "NCHW"))
    scale = (gamma / jnp.sqrt(running_var + eps)).reshape(1, -1, 1, 1)
    bias = (beta - running_mean * gamma / jnp.sqrt(running_var + eps)
            ).reshape(1, -1, 1, 1)
    y = y * scale + bias
    return y * jax.nn.sigmoid(y)


if __name__ == "__main__":
    # Small shapes consistent with Conv(c1=4, c2=8, k=3, s=1)
    N, C1, C2, H, W, K = 2, 4, 8, 16, 16, 3

    key = jax.random.PRNGKey(0)
    kx, kw_, kg, kb, km, kv, k1 = jax.random.split(key, 7)

    x = jax.random.normal(kx, (N, C1, H, W), dtype=jnp.float32)
    weight = jax.random.normal(kw_, (C2, C1, K, K), dtype=jnp.float32) * 0.1
    gamma = 1.0 + 0.1 * jax.random.normal(kg, (C2,), dtype=jnp.float32)
    beta = 0.1 * jax.random.normal(kb, (C2,), dtype=jnp.float32)
    running_mean = 0.1 * jax.random.normal(km, (C2,), dtype=jnp.float32)
    running_var = 1.0 + 0.1 * jax.random.uniform(kv, (C2,), dtype=jnp.float32)

    ref = reference(x, weight, gamma, beta, running_mean, running_var)

    # f32 MXU path, auto-sized H tile (single tile at this shape).
    out_f32 = conv_bn_silu(x, weight, gamma, beta, running_mean, running_var,
                           compute_dtype=jnp.float32)
    out_f32 = jax.block_until_ready(out_f32)
    assert out_f32.shape == (N, C2, H, W)
    assert jnp.allclose(out_f32, ref, atol=2e-4, rtol=2e-4), "f32 mismatch"

    # f32, forced multi-tile: exercises the 8-row halo block + bottom window.
    out_tiled = conv_bn_silu(x, weight, gamma, beta, running_mean, running_var,
                             compute_dtype=jnp.float32, tile_h=8)
    out_tiled = jax.block_until_ready(out_tiled)
    assert jnp.allclose(out_tiled, ref, atol=2e-4, rtol=2e-4), "tiled mismatch"

    # Default path: bf16 MXU inputs, f32 accumulation + f32 BN/SiLU epilogue.
    out_bf16 = conv_bn_silu(x, weight, gamma, beta, running_mean, running_var)
    out_bf16 = jax.block_until_ready(out_bf16)
    assert jnp.allclose(out_bf16, ref, atol=3e-2, rtol=3e-2), "bf16 mismatch"

    # 1x1 conv exercises the no-halo branch.
    w1 = jax.random.normal(k1, (C2, C1, 1, 1), dtype=jnp.float32) * 0.1
    ref1 = reference(x, w1, gamma, beta, running_mean, running_var)
    out1 = conv_bn_silu(x, w1, gamma, beta, running_mean, running_var,
                        compute_dtype=jnp.float32)
    out1 = jax.block_until_ready(out1)
    assert jnp.allclose(out1, ref1, atol=2e-4, rtol=2e-4), "k=1 mismatch"

    print("KERNEL_OK")
</pallas_src>

<mosaic_0001>
module attributes {stable_mosaic.version = 11 : i64} {
  func.func @kernel(%arg0: i32, %arg1: i32, %arg2: memref<1x16x18x128xf32, #tpu.memory_space<vmem>>, %arg3: memref<1x8x18x128xf32, #tpu.memory_space<vmem>>, %arg4: memref<3x3x128x128xf32, #tpu.memory_space<vmem>>, %arg5: memref<1x128xf32, #tpu.memory_space<vmem>>, %arg6: memref<1x128xf32, #tpu.memory_space<vmem>>, %arg7: memref<1x16x16x128xf32, #tpu.memory_space<vmem>>, %arg8: memref<4x18x128xf32, #tpu.memory_space<vmem>>) attributes {dimension_semantics = [#tpu.dimension_semantics<parallel>, #tpu.dimension_semantics<parallel>], iteration_bounds = array<i64: 2, 1>, scalar_prefetch = 0 : i64, scratch_operands = 1 : i64, tpu.core_type = #tpu.core_type<tc>, window_params = [{transform_indices = @transform_0, window_bounds = array<i64: 1, 16, 18, 128>}, {transform_indices = @transform_1, window_bounds = array<i64: 1, 8, 18, 128>}, {pipeline_mode = #tpu.pipeline_mode<synchronous>, transform_indices = @transform_2, window_bounds = array<i64: 3, 3, 128, 128>}, {pipeline_mode = #tpu.pipeline_mode<synchronous>, transform_indices = @transform_3, window_bounds = array<i64: 1, 128>}, {pipeline_mode = #tpu.pipeline_mode<synchronous>, transform_indices = @transform_4, window_bounds = array<i64: 1, 128>}, {transform_indices = @transform_5, window_bounds = array<i64: 1, 16, 16, 128>}]} {
    %c0 = arith.constant 0 : index
    %c14 = arith.constant 14 : index
    %c0_0 = arith.constant 0 : index
    %c0_1 = arith.constant 0 : index
    %0 = vector.load %arg2[%c0, %c14, %c0_0, %c0_1] : memref<1x16x18x128xf32, #tpu.memory_space<vmem>>, vector<1x2x18x128xf32>
    %1 = vector.shape_cast %0 : vector<1x2x18x128xf32> to vector<2x18x128xf32>
    %c0_2 = arith.constant 0 : index
    %c0_3 = arith.constant 0 : index
    %c0_4 = arith.constant 0 : index
    %2 = vector.load %arg8[%c0_2, %c0_3, %c0_4] : memref<4x18x128xf32, #tpu.memory_space<vmem>>, vector<2x18x128xf32>
    tpu.vector_store %arg8[%c0_2, %c0_3, %c0_4], %1 {strides = array<i32>} : memref<4x18x128xf32, #tpu.memory_space<vmem>>, vector<2x18x128xf32>,
    %c0_5 = arith.constant 0 : index
    %c0_6 = arith.constant 0 : index
    %c0_7 = arith.constant 0 : index
    %c0_8 = arith.constant 0 : index
    %3 = vector.load %arg3[%c0_5, %c0_6, %c0_7, %c0_8] : memref<1x8x18x128xf32, #tpu.memory_space<vmem>>, vector<1x2x18x128xf32>
    %4 = vector.shape_cast %3 : vector<1x2x18x128xf32> to vector<2x18x128xf32>
    %c2 = arith.constant 2 : index
    %c0_9 = arith.constant 0 : index
    %c0_10 = arith.constant 0 : index
    %5 = vector.load %arg8[%c2, %c0_9, %c0_10] : memref<4x18x128xf32, #tpu.memory_space<vmem>>, vector<2x18x128xf32>
    tpu.vector_store %arg8[%c2, %c0_9, %c0_10], %4 {strides = array<i32>} : memref<4x18x128xf32, #tpu.memory_space<vmem>>, vector<2x18x128xf32>,
    %cst = arith.constant 0.000000e+00 : f32
    %6 = vector.broadcast %cst : f32 to vector<224x128xf32>
    %cst_11 = arith.constant 0.000000e+00 : f32
    %7 = vector.broadcast %cst_11 : f32 to vector<32x128xf32>
    %c0_12 = arith.constant 0 : index
    %c0_13 = arith.constant 0 : index
    %c0_14 = arith.constant 0 : index
    %c0_15 = arith.constant 0 : index
    %8 = vector.load %arg2[%c0_12, %c0_13, %c0_14, %c0_15] : memref<1x16x18x128xf32, #tpu.memory_space<vmem>>, vector<1x16x16x128xf32>
    %9 = vector.shape_cast %8 : vector<1x16x16x128xf32> to vector<16x16x128xf32>
    %10 = vector.shape_cast %9 : vector<16x16x128xf32> to vector<256x128xf32>
    %c0_16 = arith.constant 0 : index
    %c0_17 = arith.constant 0 : index
    %c0_18 = arith.constant 0 : index
    %11 = vector.load %arg8[%c0_16, %c0_17, %c0_18] : memref<4x18x128xf32, #tpu.memory_space<vmem>>, vector<4x16x128xf32>
    %12 = vector.shape_cast %11 : vector<4x16x128xf32> to vector<64x128xf32>
    %c0_19 = arith.constant 0 : index
    %c0_20 = arith.constant 0 : index
    %c0_21 = arith.constant 0 : index
    %c0_22 = arith.constant 0 : index
    %13 = vector.load %arg4[%c0_19, %c0_20, %c0_21, %c0_22] : memref<3x3x128x128xf32, #tpu.memory_space<vmem>>, vector<1x1x128x128xf32>
    %14 = vector.shape_cast %13 : vector<1x1x128x128xf32> to vector<128x128xf32>
    %15 = vector.extract_strided_slice %10 {offsets = [0, 0], sizes = [224, 128], strides = [1, 1]} : vector<256x128xf32> to vector<224x128xf32>
    %cst_23 = arith.constant dense<0.000000e+00> : vector<224x128xf32>
    %16 = tpu.matmul %15, %14, %cst_23 {dimension_numbers = #tpu.dot_dimension_numbers<[1], [0], [0], [1], [0, 0, 1, 1], [], []>} : vector<224x128xf32>, vector<128x128xf32>, vector<224x128xf32> -> vector<224x128xf32>
    %17 = arith.addf %6, %16 : vector<224x128xf32>
    %18 = vector.extract_strided_slice %12 {offsets = [0, 0], sizes = [32, 128], strides = [1, 1]} : vector<64x128xf32> to vector<32x128xf32>
    %cst_24 = arith.constant dense<0.000000e+00> : vector<32x128xf32>
    %19 = tpu.matmul %18, %14, %cst_24 {dimension_numbers = #tpu.dot_dimension_numbers<[1], [0], [0], [1], [0, 0, 1, 1], [], []>} : vector<32x128xf32>, vector<128x128xf32>, vector<32x128xf32> -> vector<32x128xf32>
    %20 = arith.addf %7, %19 : vector<32x128xf32>
    %c1 = arith.constant 1 : index
    %c0_25 = arith.constant 0 : index
    %c0_26 = arith.constant 0 : index
    %c0_27 = arith.constant 0 : index
    %21 = vector.load %arg4[%c1, %c0_25, %c0_26, %c0_27] : memref<3x3x128x128xf32, #tpu.memory_space<vmem>>, vector<1x1x128x128xf32>
    %22 = vector.shape_cast %21 : vector<1x1x128x128xf32> to vector<128x128xf32>
    %23 = vector.extract_strided_slice %10 {offsets = [16, 0], sizes = [224, 128], strides = [1, 1]} : vector<256x128xf32> to vector<224x128xf32>
    %cst_28 = arith.constant dense<0.000000e+00> : vector<224x128xf32>
    %24 = tpu.matmul %23, %22, %cst_28 {dimension_numbers = #tpu.dot_dimension_numbers<[1], [0], [0], [1], [0, 0, 1, 1], [], []>} : vector<224x128xf32>, vector<128x128xf32>, vector<224x128xf32> -> vector<224x128xf32>
    %25 = arith.addf %17, %24 : vector<224x128xf32>
    %26 = vector.extract_strided_slice %12 {offsets = [16, 0], sizes = [32, 128], strides = [1, 1]} : vector<64x128xf32> to vector<32x128xf32>
    %cst_29 = arith.constant dense<0.000000e+00> : vector<32x128xf32>
    %27 = tpu.matmul %26, %22, %cst_29 {dimension_numbers = #tpu.dot_dimension_numbers<[1], [0], [0], [1], [0, 0, 1, 1], [], []>} : vector<32x128xf32>, vector<128x128xf32>, vector<32x128xf32> -> vector<32x128xf32>
    %28 = arith.addf %20, %27 : vector<32x128xf32>
    %c2_30 = arith.constant 2 : index
    %c0_31 = arith.constant 0 : index
    %c0_32 = arith.constant 0 : index
    %c0_33 = arith.constant 0 : index
    %29 = vector.load %arg4[%c2_30, %c0_31, %c0_32, %c0_33] : memref<3x3x128x128xf32, #tpu.memory_space<vmem>>, vector<1x1x128x128xf32>
    %30 = vector.shape_cast %29 : vector<1x1x128x128xf32> to vector<128x128xf32>
    %31 = vector.extract_strided_slice %10 {offsets = [32, 0], sizes = [224, 128], strides = [1, 1]} : vector<256x128xf32> to vector<224x128xf32>
    %cst_34 = arith.constant dense<0.000000e+00> : vector<224x128xf32>
    %32 = tpu.matmul %31, %30, %cst_34 {dimension_numbers = #tpu.dot_dimension_numbers<[1], [0], [0], [1], [0, 0, 1, 1], [], []>} : vector<224x128xf32>, vector<128x128xf32>, vector<224x128xf32> -> vector<224x128xf32>
    %33 = arith.addf %25, %32 : vector<224x128xf32>
    %34 = vector.extract_strided_slice %12 {offsets = [32, 0], sizes = [32, 128], strides = [1, 1]} : vector<64x128xf32> to vector<32x128xf32>
    %cst_35 = arith.constant dense<0.000000e+00> : vector<32x128xf32>
    %35 = tpu.matmul %34, %30, %cst_35 {dimension_numbers = #tpu.dot_dimension_numbers<[1], [0], [0], [1], [0, 0, 1, 1], [], []>} : vector<32x128xf32>, vector<128x128xf32>, vector<32x128xf32> -> vector<32x128xf32>
    %36 = arith.addf %28, %35 : vector<32x128xf32>
    %c0_36 = arith.constant 0 : index
    %c0_37 = arith.constant 0 : index
    %c1_38 = arith.constant 1 : index
    %c0_39 = arith.constant 0 : index
    %37 = vector.load %arg2[%c0_36, %c0_37, %c1_38, %c0_39] : memref<1x16x18x128xf32, #tpu.memory_space<vmem>>, vector<1x16x16x128xf32>
    %38 = vector.shape_cast %37 : vector<1x16x16x128xf32> to vector<16x16x128xf32>
    %39 = vector.shape_cast %38 : vector<16x16x128xf32> to vector<256x128xf32>
    %c0_40 = arith.constant 0 : index
    %c1_41 = arith.constant 1 : index
    %c0_42 = arith.constant 0 : index
    %40 = vector.load %arg8[%c0_40, %c1_41, %c0_42] : memref<4x18x128xf32, #tpu.memory_space<vmem>>, vector<4x16x128xf32>
    %41 = vector.shape_cast %40 : vector<4x16x128xf32> to vector<64x128xf32>
    %c0_43 = arith.constant 0 : index
    %c1_44 = arith.constant 1 : index
    %c0_45 = arith.constant 0 : index
    %c0_46 = arith.constant 0 : index
    %42 = vector.load %arg4[%c0_43, %c1_44, %c0_45, %c0_46] : memref<3x3x128x128xf32, #tpu.memory_space<vmem>>, vector<1x1x128x128xf32>
    %43 = vector.shape_cast %42 : vector<1x1x128x128xf32> to vector<128x128xf32>
    %44 = vector.extract_strided_slice %39 {offsets = [0, 0], sizes = [224, 128], strides = [1, 1]} : vector<256x128xf32> to vector<224x128xf32>
    %cst_47 = arith.constant dense<0.000000e+00> : vector<224x128xf32>
    %45 = tpu.matmul %44, %43, %cst_47 {dimension_numbers = #tpu.dot_dimension_numbers<[1], [0], [0], [1], [0, 0, 1, 1], [], []>} : vector<224x128xf32>, vector<128x128xf32>, vector<224x128xf32> -> vector<224x128xf32>
    %46 = arith.addf %33, %45 : vector<224x128xf32>
    %47 = vector.extract_strided_slice %41 {offsets = [0, 0], sizes = [32, 128], strides = [1, 1]} : vector<64x128xf32> to vector<32x128xf32>
    %cst_48 = arith.constant dense<0.000000e+00> : vector<32x128xf32>
    %48 = tpu.matmul %47, %43, %cst_48 {dimension_numbers = #tpu.dot_dimension_numbers<[1], [0], [0], [1], [0, 0, 1, 1], [], []>} : vector<32x128xf32>, vector<128x128xf32>, vector<32x128xf32> -> vector<32x128xf32>
    %49 = arith.addf %36, %48 : vector<32x128xf32>
    %c1_49 = arith.constant 1 : index
    %c1_50 = arith.constant 1 : index
    %c0_51 = arith.constant 0 : index
    %c0_52 = arith.constant 0 : index
    %50 = vector.load %arg4[%c1_49, %c1_50, %c0_51, %c0_52] : memref<3x3x128x128xf32, #tpu.memory_space<vmem>>, vector<1x1x128x128xf32>
    %51 = vector.shape_cast %50 : vector<1x1x128x128xf32> to vector<128x128xf32>
    %52 = vector.extract_strided_slice %39 {offsets = [16, 0], sizes = [224, 128], strides = [1, 1]} : vector<256x128xf32> to vector<224x128xf32>
    %cst_53 = arith.constant dense<0.000000e+00> : vector<224x128xf32>
    %53 = tpu.matmul %52, %51, %cst_53 {dimension_numbers = #tpu.dot_dimension_numbers<[1], [0], [0], [1], [0, 0, 1, 1], [], []>} : vector<224x128xf32>, vector<128x128xf32>, vector<224x128xf32> -> vector<224x128xf32>
    %54 = arith.addf %46, %53 : vector<224x128xf32>
    %55 = vector.extract_strided_slice %41 {offsets = [16, 0], sizes = [32, 128], strides = [1, 1]} : vector<64x128xf32> to vector<32x128xf32>
    %cst_54 = arith.constant dense<0.000000e+00> : vector<32x128xf32>
    %56 = tpu.matmul %55, %51, %cst_54 {dimension_numbers = #tpu.dot_dimension_numbers<[1], [0], [0], [1], [0, 0, 1, 1], [], []>} : vector<32x128xf32>, vector<128x128xf32>, vector<32x128xf32> -> vector<32x128xf32>
    %57 = arith.addf %49, %56 : vector<32x128xf32>
    %c2_55 = arith.constant 2 : index
    %c1_56 = arith.constant 1 : index
    %c0_57 = arith.constant 0 : index
    %c0_58 = arith.constant 0 : index
    %58 = vector.load %arg4[%c2_55, %c1_56, %c0_57, %c0_58] : memref<3x3x128x128xf32, #tpu.memory_space<vmem>>, vector<1x1x128x128xf32>
    %59 = vector.shape_cast %58 : vector<1x1x128x128xf32> to vector<128x128xf32>
    %60 = vector.extract_strided_slice %39 {offsets = [32, 0], sizes = [224, 128], strides = [1, 1]} : vector<256x128xf32> to vector<224x128xf32>
    %cst_59 = arith.constant dense<0.000000e+00> : vector<224x128xf32>
    %61 = tpu.matmul %60, %59, %cst_59 {dimension_numbers = #tpu.dot_dimension_numbers<[1], [0], [0], [1], [0, 0, 1, 1], [], []>} : vector<224x128xf32>, vector<128x128xf32>, vector<224x128xf32> -> vector<224x128xf32>
    %62 = arith.addf %54, %61 : vector<224x128xf32>
    %63 = vector.extract_strided_slice %41 {offsets = [32, 0], sizes = [32, 128], strides = [1, 1]} : vector<64x128xf32> to vector<32x128xf32>
    %cst_60 = arith.constant dense<0.000000e+00> : vector<32x128xf32>
    %64 = tpu.matmul %63, %59, %cst_60 {dimension_numbers = #tpu.dot_dimension_numbers<[1], [0], [0], [1], [0, 0, 1, 1], [], []>} : vector<32x128xf32>, vector<128x128xf32>, vector<32x128xf32> -> vector<32x128xf32>
    %65 = arith.addf %57, %64 : vector<32x128xf32>
    %c0_61 = arith.constant 0 : index
    %c0_62 = arith.constant 0 : index
    %c2_63 = arith.constant 2 : index
    %c0_64 = arith.constant 0 : index
    %66 = vector.load %arg2[%c0_61, %c0_62, %c2_63, %c0_64] : memref<1x16x18x128xf32, #tpu.memory_space<vmem>>, vector<1x16x16x128xf32>
    %67 = vector.shape_cast %66 : vector<1x16x16x128xf32> to vector<16x16x128xf32>
    %68 = vector.shape_cast %67 : vector<16x16x128xf32> to vector<256x128xf32>
    %c0_65 = arith.constant 0 : index
    %c2_66 = arith.constant 2 : index
    %c0_67 = arith.constant 0 : index
    %69 = vector.load %arg8[%c0_65, %c2_66, %c0_67] : memref<4x18x128xf32, #tpu.memory_space<vmem>>, vector<4x16x128xf32>
    %70 = vector.shape_cast %69 : vector<4x16x128xf32> to vector<64x128xf32>
    %c0_68 = arith.constant 0 : index
    %c2_69 = arith.constant 2 : index
    %c0_70 = arith.constant 0 : index
    %c0_71 = arith.constant 0 : index
    %71 = vector.load %arg4[%c0_68, %c2_69, %c0_70, %c0_71] : memref<3x3x128x128xf32, #tpu.memory_space<vmem>>, vector<1x1x128x128xf32>
    %72 = vector.shape_cast %71 : vector<1x1x128x128xf32> to vector<128x128xf32>
    %73 = vector.extract_strided_slice %68 {offsets = [0, 0], sizes = [224, 128], strides = [1, 1]} : vector<256x128xf32> to vector<224x128xf32>
    %cst_72 = arith.constant dense<0.000000e+00> : vector<224x128xf32>
    %74 = tpu.matmul %73, %72, %cst_72 {dimension_numbers = #tpu.dot_dimension_numbers<[1], [0], [0], [1], [0, 0, 1, 1], [], []>} : vector<224x128xf32>, vector<128x128xf32>, vector<224x128xf32> -> vector<224x128xf32>
    %75 = arith.addf %62, %74 : vector<224x128xf32>
    %76 = vector.extract_strided_slice %70 {offsets = [0, 0], sizes = [32, 128], strides = [1, 1]} : vector<64x128xf32> to vector<32x128xf32>
    %cst_73 = arith.constant dense<0.000000e+00> : vector<32x128xf32>
    %77 = tpu.matmul %76, %72, %cst_73 {dimension_numbers = #tpu.dot_dimension_numbers<[1], [0], [0], [1], [0, 0, 1, 1], [], []>} : vector<32x128xf32>, vector<128x128xf32>, vector<32x128xf32> -> vector<32x128xf32>
    %78 = arith.addf %65, %77 : vector<32x128xf32>
    %c1_74 = arith.constant 1 : index
    %c2_75 = arith.constant 2 : index
    %c0_76 = arith.constant 0 : index
    %c0_77 = arith.constant 0 : index
    %79 = vector.load %arg4[%c1_74, %c2_75, %c0_76, %c0_77] : memref<3x3x128x128xf32, #tpu.memory_space<vmem>>, vector<1x1x128x128xf32>
    %80 = vector.shape_cast %79 : vector<1x1x128x128xf32> to vector<128x128xf32>
    %81 = vector.extract_strided_slice %68 {offsets = [16, 0], sizes = [224, 128], strides = [1, 1]} : vector<256x128xf32> to vector<224x128xf32>
    %cst_78 = arith.constant dense<0.000000e+00> : vector<224x128xf32>
    %82 = tpu.matmul %81, %80, %cst_78 {dimension_numbers = #tpu.dot_dimension_numbers<[1], [0], [0], [1], [0, 0, 1, 1], [], []>} : vector<224x128xf32>, vector<128x128xf32>, vector<224x128xf32> -> vector<224x128xf32>
    %83 = arith.addf %75, %82 : vector<224x128xf32>
    %84 = vector.extract_strided_slice %70 {offsets = [16, 0], sizes = [32, 128], strides = [1, 1]} : vector<64x128xf32> to vector<32x128xf32>
    %cst_79 = arith.constant dense<0.000000e+00> : vector<32x128xf32>
    %85 = tpu.matmul %84, %80, %cst_79 {dimension_numbers = #tpu.dot_dimension_numbers<[1], [0], [0], [1], [0, 0, 1, 1], [], []>} : vector<32x128xf32>, vector<128x128xf32>, vector<32x128xf32> -> vector<32x128xf32>
    %86 = arith.addf %78, %85 : vector<32x128xf32>
    %c2_80 = arith.constant 2 : index
    %c2_81 = arith.constant 2 : index
    %c0_82 = arith.constant 0 : index
    %c0_83 = arith.constant 0 : index
    %87 = vector.load %arg4[%c2_80, %c2_81, %c0_82, %c0_83] : memref<3x3x128x128xf32, #tpu.memory_space<vmem>>, vector<1x1x128x128xf32>
    %88 = vector.shape_cast %87 : vector<1x1x128x128xf32> to vector<128x128xf32>
    %89 = vector.extract_strided_slice %68 {offsets = [32, 0], sizes = [224, 128], strides = [1, 1]} : vector<256x128xf32> to vector<224x128xf32>
    %cst_84 = arith.constant dense<0.000000e+00> : vector<224x128xf32>
    %90 = tpu.matmul %89, %88, %cst_84 {dimension_numbers = #tpu.dot_dimension_numbers<[1], [0], [0], [1], [0, 0, 1, 1], [], []>} : vector<224x128xf32>, vector<128x128xf32>, vector<224x128xf32> -> vector<224x128xf32>
    %91 = arith.addf %83, %90 : vector<224x128xf32>
    %92 = vector.extract_strided_slice %70 {offsets = [32, 0], sizes = [32, 128], strides = [1, 1]} : vector<64x128xf32> to vector<32x128xf32>
    %cst_85 = arith.constant dense<0.000000e+00> : vector<32x128xf32>
    %93 = tpu.matmul %92, %88, %cst_85 {dimension_numbers = #tpu.dot_dimension_numbers<[1], [0], [0], [1], [0, 0, 1, 1], [], []>} : vector<32x128xf32>, vector<128x128xf32>, vector<32x128xf32> -> vector<32x128xf32>
    %94 = arith.addf %86, %93 : vector<32x128xf32>
    %c0_86 = arith.constant 0 : index
    %c0_87 = arith.constant 0 : index
    %95 = vector.load %arg5[%c0_86, %c0_87] : memref<1x128xf32, #tpu.memory_space<vmem>>, vector<1x128xf32>
    %c0_88 = arith.constant 0 : index
    %c0_89 = arith.constant 0 : index
    %96 = vector.load %arg6[%c0_88, %c0_89] : memref<1x128xf32, #tpu.memory_space<vmem>>, vector<1x128xf32>
    %97 = vector.broadcast %95 : vector<1x128xf32> to vector<224x128xf32>
    %98 = arith.mulf %91, %97 : vector<224x128xf32>
    %99 = vector.broadcast %96 : vector<1x128xf32> to vector<224x128xf32>
    %100 = arith.addf %98, %99 : vector<224x128xf32>
    %101 = arith.negf %100 : vector<224x128xf32>
    %102 = math.exp %101 : vector<224x128xf32>
    %cst_90 = arith.constant 1.000000e+00 : f32
    %103 = vector.broadcast %cst_90 : f32 to vector<224x128xf32>
    %104 = arith.addf %103, %102 : vector<224x128xf32>
    %105 = arith.divf %103, %104 : vector<224x128xf32>
    %106 = arith.mulf %100, %105 : vector<224x128xf32>
    %107 = vector.shape_cast %106 : vector<224x128xf32> to vector<14x16x128xf32>
    %c0_91 = arith.constant 0 : index
    %c0_92 = arith.constant 0 : index
    %c0_93 = arith.constant 0 : index
    %c0_94 = arith.constant 0 : index
    %108 = vector.load %arg7[%c0_91, %c0_92, %c0_93, %c0_94] : memref<1x16x16x128xf32, #tpu.memory_space<vmem>>, vector<1x14x16x128xf32>
    %109 = vector.shape_cast %108 : vector<1x14x16x128xf32> to vector<14x16x128xf32>
    %110 = vector.shape_cast %107 : vector<14x16x128xf32> to vector<1x14x16x128xf32>
    tpu.vector_store %arg7[%c0_91, %c0_92, %c0_93, %c0_94], %110 {strides = array<i32>} : memref<1x16x16x128xf32, #tpu.memory_space<vmem>>, vector<1x14x16x128xf32>,
    %111 = vector.broadcast %95 : vector<1x128xf32> to vector<32x128xf32>
    %112 = arith.mulf %94, %111 : vector<32x128xf32>
    %113 = vector.broadcast %96 : vector<1x128xf32> to vector<32x128xf32>
    %114 = arith.addf %112, %113 : vector<32x128xf32>
    %115 = arith.negf %114 : vector<32x128xf32>
    %116 = math.exp %115 : vector<32x128xf32>
    %cst_95 = arith.constant 1.000000e+00 : f32
    %117 = vector.broadcast %cst_95 : f32 to vector<32x128xf32>
    %118 = arith.addf %117, %116 : vector<32x128xf32>
    %119 = arith.divf %117, %118 : vector<32x128xf32>
    %120 = arith.mulf %114, %119 : vector<32x128xf32>
    %121 = vector.shape_cast %120 : vector<32x128xf32> to vector<2x16x128xf32>
    %c0_96 = arith.constant 0 : index
    %c14_97 = arith.constant 14 : index
    %c0_98 = arith.constant 0 : index
    %c0_99 = arith.constant 0 : index
    %122 = vector.load %arg7[%c0_96, %c14_97, %c0_98, %c0_99] : memref<1x16x16x128xf32, #tpu.memory_space<vmem>>, vector<1x2x16x128xf32>
    %123 = vector.shape_cast %122 : vector<1x2x16x128xf32> to vector<2x16x128xf32>
    %124 = vector.shape_cast %121 : vector<2x16x128xf32> to vector<1x2x16x128xf32>
    tpu.vector_store %arg7[%c0_96, %c14_97, %c0_98, %c0_99], %124 {strides = array<i32>} : memref<1x16x16x128xf32, #tpu.memory_space<vmem>>, vector<1x2x16x128xf32>,
    return
  }
  func.func @transform_0(%arg0: i32, %arg1: i32) -> (i32, i32, i32, i32) {
    %c0_i32 = arith.constant 0 : i32
    %c0_i32_0 = arith.constant 0 : i32
    %c0_i32_1 = arith.constant 0 : i32
    return %arg0, %arg1, %c0_i32, %c0_i32_0 : i32, i32, i32, i32
  }
  func.func @transform_1(%arg0: i32, %arg1: i32) -> (i32, i32, i32, i32) {
    %c1_i32 = arith.constant 1 : i32
    %0 = arith.addi %arg1, %c1_i32 : i32
    %c2_i32 = arith.constant 2 : i32
    %1 = arith.muli %0, %c2_i32 : i32
    %c0_i32 = arith.constant 0 : i32
    %c0_i32_0 = arith.constant 0 : i32
    %c0_i32_1 = arith.constant 0 : i32
    return %arg0, %1, %c0_i32, %c0_i32_0 : i32, i32, i32, i32
  }
  func.func @transform_2(%arg0: i32, %arg1: i32) -> (i32, i32, i32, i32) {
    %c0_i32 = arith.constant 0 : i32
    %c0_i32_0 = arith.constant 0 : i32
    %c0_i32_1 = arith.constant 0 : i32
    %c0_i32_2 = arith.constant 0 : i32
    %c0_i32_3 = arith.constant 0 : i32
    return %c0_i32, %c0_i32_0, %c0_i32_1, %c0_i32_2 : i32, i32, i32, i32
  }
  func.func @transform_3(%arg0: i32, %arg1: i32) -> (i32, i32) {
    %c0_i32 = arith.constant 0 : i32
    %c0_i32_0 = arith.constant 0 : i32
    %c0_i32_1 = arith.constant 0 : i32
    return %c0_i32, %c0_i32_0 : i32, i32
  }
  func.func @transform_4(%arg0: i32, %arg1: i32) -> (i32, i32) {
    %c0_i32 = arith.constant 0 : i32
    %c0_i32_0 = arith.constant 0 : i32
    %c0_i32_1 = arith.constant 0 : i32
    return %c0_i32, %c0_i32_0 : i32, i32
  }
  func.func @transform_5(%arg0: i32, %arg1: i32) -> (i32, i32, i32, i32) {
    %c0_i32 = arith.constant 0 : i32
    %c0_i32_0 = arith.constant 0 : i32
    %c0_i32_1 = arith.constant 0 : i32
    return %arg0, %arg1, %c0_i32, %c0_i32_0 : i32, i32, i32, i32
  }
}

</mosaic_0001>

<llo_original>
// kernel: tpu_custom_call.1
$region0: #{tpu_custom_call.1}
  #allocation0 [shape = 'u32[]', space=smem, size = 0x4, offset = 0x4, fixed_abs, tag = 'smem constant byte address 0x4 - core index']
  #allocation1 [shape = 'u32[144,128]{1,0:T(1,128)}', space=vmem, size = 0x12000, scoped, tag = 'internal scratch']
  #allocation2 [shape = 'f32[4,18,128]{2,1,0:T(8,128)}', space=vmem, size = 0xc000, scoped, tag = 'scratch operand']
  %s0 = inlined_call_operand.vmem [shape: f32[2,24,18,128], index: 0, kind: input, shape index: {}]
  %s1 = inlined_call_operand.vmem [shape: f32[2,24,18,128], index: 1, kind: input, shape index: {}]
  %s2 = inlined_call_operand.vmem [shape: f32[3,3,128,128], index: 2, kind: input, shape index: {}]
  %s3 = inlined_call_operand.vmem [shape: f32[1,128], index: 3, kind: input, shape index: {}]
  %s4 = inlined_call_operand.vmem [shape: f32[1,128], index: 4, kind: input, shape index: {}]
  %s5 = inlined_call_operand.hbm [shape: f32[2,16,16,128], index: 5, kind: output, shape index: {}]
  %s6 = sld [smem:[#allocation0]]
  $region53: #{tpu_custom_call.1} parent=0
    _
  %s8 = ssub.s32 1, %s6
  %s9 = scalar_select 0, %s8, %s6
  $region1: #{tpu_custom_call.1} parent=0
    #allocation3 [shape = 'u8[262144]{0}', space=vmem, size = 0x40000, scoped, tag = 'output window, operand 0']
    #allocation4 [shape = 's32[2]{0}', space=sflag, size = 0x8, scoped, tag = 'scoped memory for tpu_custom_call.1']
    %10 = vsyncpa [#allocation4], 0
    %s11 = scalar_lea.sflag [#allocation4], 1
    %12 = vsyncpa %s11, 0
    loop: start=0, step=1, limit=4
    $region2: #{tpu_custom_call.1} parent=1 // loop_pre_header
      _
    $region3: #{tpu_custom_call.1} parent=1 // loop_header
      %s14 = sphi 0, %s18
      %p15 = scmp.ge.s32.totalorder %s14, 4
      %s21 = sphi 0, %s33
      %s22 = sphi 0, %s29
      %s23 = sphi 0, %s21
      %s24 = sphi 0, %s22
      %s25 = sphi 0, %s23
      %s26 = sphi 0, %s24
      %s38 = sphi 0, %s40
      %s41 = sphi 0, %s38
      %s42 = sphi 0, %s41
      %s58 = sphi 0, %s42
      %s70 = sphi 0, %s72
      %s73 = sphi 0, %s70
      %s74 = sphi 0, %s73
      %s90 = sphi 0, %s74
      %s94 = sphi 0, %s94
      %s96 = sphi 0, %s94
      %s97 = sphi 0, %s96
      %s111 = sphi 0, %s97
      %s115 = sphi 0, %s115
      %s117 = sphi 0, %s115
      %s118 = sphi 0, %s117
      %s132 = sphi 0, %s118
      %s136 = sphi 0, %s136
      %s138 = sphi 0, %s136
      %s139 = sphi 0, %s138
      %s153 = sphi 0, %s139
      %s161 = sphi 0, %s163
      %s164 = sphi 0, %s161
      %s165 = sphi 0, %s164
      %s181 = sphi 0, %s165
    $region4: #{tpu_custom_call.1} parent=1 // loop_header_branch
      %17 = sbr.rel (%p15) target = $region8
    $region5: #{tpu_custom_call.1} parent=1 // loop_body
      %s19 = ssub.s32 %s14, 1
      %s20 = ssub.s32 %s14, 2
      %s27 = sadd.s32 1, %s22
      %p28 = scmp.ge.s32.totalorder %s27, 1
      %s29 = scalar_select %p28, 0, %s27
      %s30 = sadd.s32 1, %s21
      %s31 = scalar_select %p28, %s30, %s21
      %p32 = scmp.ge.s32.totalorder %s31, 2
      %s33 = scalar_select %p32, 0, %s31
      %s34 = ssub.s32 %s21, %s33
      %s35 = ssub.s32 %s22, %s29
      %s36 = sor.u32 %s34, %s35
      %p37 = scmp.eq.s32.totalorder %s36, 0
      %s39 = sadd.s32 %s38, 1
      %s40 = scalar_select %p37, %s38, %s39
      %p43 = pneg %p37
      %p44 = scmp.eq.s32.totalorder %s14, 1
      %p45 = por %p43, %p44
      %p46 = scmp.ne.s32.totalorder %s38, %s41
      %p47 = scmp.eq.s32.totalorder %s14, 0
      %p48 = por %p46, %p47
      %p49 = scmp.ne.s32.totalorder %s38, %s41
      %p50 = scmp.eq.s32.totalorder %s19, 1
      %p51 = por %p49, %p50
      %p52 = scmp.ne.s32.totalorder %s41, %s42
      %p53 = scmp.eq.s32.totalorder %s19, 0
      %p54 = por %p52, %p53
      %p55 = scmp.ne.s32.totalorder %s41, %s42
      %p56 = scmp.eq.s32.totalorder %s20, 1
      %p57 = por %p55, %p56
      %p59 = scmp.ne.s32.totalorder %s42, %s58
      %p60 = scmp.eq.s32.totalorder %s20, 0
      %p61 = por %p59, %p60
      %s62 = sadd.s32 %s22, 1
      %s63 = smul.u32 %s62, 2
      %s64 = sadd.s32 %s29, 1
      %s65 = smul.u32 %s64, 2
      %s66 = ssub.s32 %s21, %s33
      %s67 = ssub.s32 %s63, %s65
      %s68 = sor.u32 %s66, %s67
      %p69 = scmp.eq.s32.totalorder %s68, 0
      %s71 = sadd.s32 %s70, 1
      %s72 = scalar_select %p69, %s70, %s71
      %p75 = pneg %p69
      %p76 = scmp.eq.s32.totalorder %s14, 1
      %p77 = por %p75, %p76
      %p78 = scmp.ne.s32.totalorder %s70, %s73
      %p79 = scmp.eq.s32.totalorder %s14, 0
      %p80 = por %p78, %p79
      %p81 = scmp.ne.s32.totalorder %s70, %s73
      %p82 = scmp.eq.s32.totalorder %s19, 1
      %p83 = por %p81, %p82
      %p84 = scmp.ne.s32.totalorder %s73, %s74
      %p85 = scmp.eq.s32.totalorder %s19, 0
      %p86 = por %p84, %p85
      %p87 = scmp.ne.s32.totalorder %s73, %s74
      %p88 = scmp.eq.s32.totalorder %s20, 1
      %p89 = por %p87, %p88
      %p91 = scmp.ne.s32.totalorder %s74, %s90
      %p92 = scmp.eq.s32.totalorder %s20, 0
      %p93 = por %p91, %p92
      %s95 = sadd.s32 %s94, 1
      %p98 = scmp.eq.s32.totalorder %s14, 1
      %p99 = scmp.ne.s32.totalorder %s94, %s96
      %p100 = scmp.eq.s32.totalorder %s14, 0
      %p101 = por %p99, %p100
      %p102 = scmp.ne.s32.totalorder %s94, %s96
      %p103 = scmp.eq.s32.totalorder %s19, 1
      %p104 = por %p102, %p103
      %p105 = scmp.ne.s32.totalorder %s96, %s97
      %p106 = scmp.eq.s32.totalorder %s19, 0
      %p107 = por %p105, %p106
      %p108 = scmp.ne.s32.totalorder %s96, %s97
      %p109 = scmp.eq.s32.totalorder %s20, 1
      %p110 = por %p108, %p109
      %p112 = scmp.ne.s32.totalorder %s97, %s111
      %p113 = scmp.eq.s32.totalorder %s20, 0
      %p114 = por %p112, %p113
      %s116 = sadd.s32 %s115, 1
      %p119 = scmp.eq.s32.totalorder %s14, 1
      %p120 = scmp.ne.s32.totalorder %s115, %s117
      %p121 = scmp.eq.s32.totalorder %s14, 0
      %p122 = por %p120, %p121
      %p123 = scmp.ne.s32.totalorder %s115, %s117
      %p124 = scmp.eq.s32.totalorder %s19, 1
      %p125 = por %p123, %p124
      %p126 = scmp.ne.s32.totalorder %s117, %s118
      %p127 = scmp.eq.s32.totalorder %s19, 0
      %p128 = por %p126, %p127
      %p129 = scmp.ne.s32.totalorder %s117, %s118
      %p130 = scmp.eq.s32.totalorder %s20, 1
      %p131 = por %p129, %p130
      %p133 = scmp.ne.s32.totalorder %s118, %s132
      %p134 = scmp.eq.s32.totalorder %s20, 0
      %p135 = por %p133, %p134
      %s137 = sadd.s32 %s136, 1
      %p140 = scmp.eq.s32.totalorder %s14, 1
      %p141 = scmp.ne.s32.totalorder %s136, %s138
      %p142 = scmp.eq.s32.totalorder %s14, 0
      %p143 = por %p141, %p142
      %p144 = scmp.ne.s32.totalorder %s136, %s138
      %p145 = scmp.eq.s32.totalorder %s19, 1
      %p146 = por %p144, %p145
      %p147 = scmp.ne.s32.totalorder %s138, %s139
      %p148 = scmp.eq.s32.totalorder %s19, 0
      %p149 = por %p147, %p148
      %p150 = scmp.ne.s32.totalorder %s138, %s139
      %p151 = scmp.eq.s32.totalorder %s20, 1
      %p152 = por %p150, %p151
      %p154 = scmp.ne.s32.totalorder %s139, %s153
      %p155 = scmp.eq.s32.totalorder %s20, 0
      %p156 = por %p154, %p155
      %s157 = ssub.s32 %s21, %s33
      %s158 = ssub.s32 %s22, %s29
      %s159 = sor.u32 %s157, %s158
      %p160 = scmp.eq.s32.totalorder %s159, 0
      %s162 = sadd.s32 %s161, 1
      %s163 = scalar_select %p160, %s161, %s162
      %p166 = pneg %p160
      %p167 = scmp.eq.s32.totalorder %s14, 1
      %p168 = por %p166, %p167
      %p169 = scmp.ne.s32.totalorder %s161, %s164
      %p170 = scmp.eq.s32.totalorder %s14, 0
      %p171 = por %p169, %p170
      %p172 = scmp.ne.s32.totalorder %s161, %s164
      %p173 = scmp.eq.s32.totalorder %s19, 1
      %p174 = por %p172, %p173
      %p175 = scmp.ne.s32.totalorder %s164, %s165
      %p176 = scmp.eq.s32.totalorder %s19, 0
      %p177 = por %p175, %p176
      %p178 = scmp.ne.s32.totalorder %s164, %s165
      %p179 = scmp.eq.s32.totalorder %s20, 1
      %p180 = por %p178, %p179
      %p182 = scmp.ne.s32.totalorder %s165, %s181
      %p183 = scmp.eq.s32.totalorder %s20, 0
      %p184 = por %p182, %p183
      %p185 = scmp.le.s32.totalorder 1, %s14
      %p186 = scmp.lt.s32.totalorder %s14, 3
      %p187 = pnand %p185, %p186
      %p188 = pneg %p187
      // Predicated region
      $region9: #{tpu_custom_call.1} parent=5 // pred_check
        _
      $region10: #{tpu_custom_call.1} parent=5 // pred_check_branch
        %190 = sbr.rel (%p187) target = $region12
      $region11: #{tpu_custom_call.1} parent=5 // pred_region
        %s191 = ssub.s32 %s14, 1
        // Predicated region
        $region13: #{tpu_custom_call.1} parent=11 // pred_check
          %p192 = pneg %p107
        $region14: #{tpu_custom_call.1} parent=11 // pred_check_branch
          %194 = sbr.rel (%p192) target = $region16
        $region15: #{tpu_custom_call.1} parent=11 // pred_region
          _
        $region16: #{tpu_custom_call.1} parent=11 // pred_fallthru
          _
        // Predicated region
        $region17: #{tpu_custom_call.1} parent=11 // pred_check
          %p195 = pneg %p128
        $region18: #{tpu_custom_call.1} parent=11 // pred_check_branch
          %197 = sbr.rel (%p195) target = $region20
        $region19: #{tpu_custom_call.1} parent=11 // pred_region
          _
        $region20: #{tpu_custom_call.1} parent=11 // pred_fallthru
          _
        // Predicated region
        $region21: #{tpu_custom_call.1} parent=11 // pred_check
          %p198 = pneg %p149
        $region22: #{tpu_custom_call.1} parent=11 // pred_check_branch
          %200 = sbr.rel (%p198) target = $region24
        $region23: #{tpu_custom_call.1} parent=11 // pred_region
          _
        $region24: #{tpu_custom_call.1} parent=11 // pred_fallthru
          _
      $region12: #{tpu_custom_call.1} parent=5 // pred_fallthru
        _
      %p201 = scmp.lt.s32.totalorder %s14, 2
      // Predicated region
      $region25: #{tpu_custom_call.1} parent=5 // pred_check
        %p202 = pneg %p201
      $region26: #{tpu_custom_call.1} parent=5 // pred_check_branch
        %204 = sbr.rel (%p202) target = $region28
      $region27: #{tpu_custom_call.1} parent=5 // pred_region
        // Predicated region
        $region29: #{tpu_custom_call.1} parent=27 // pred_check
          %p205 = pneg %p48
        $region30: #{tpu_custom_call.1} parent=27 // pred_check_branch
          %207 = sbr.rel (%p205) target = $region32
        $region31: #{tpu_custom_call.1} parent=27 // pred_region
          %s208 = smul.u32 16, %s22
          %s209 = ssub.s32 24, %s208
          %p210 = scmp.lt.s32.totalorder %s209, 16
          %s211 = scalar_select %p210, %s209, 16
          %s212 = smul.u32 128, %s211
          %s213 = smul.u32 %s212, 3
          %p214 = scmp.lt.s32.totalorder %s21, 1
          %s215 = scalar_select %p214, %s21, 1
          %p216 = scmp.lt.s32.totalorder %s208, 23
          %s217 = scalar_select %p216, %s208, 23
          %s218 = smul.addr %s217, 3
          %s219 = smul.addr %s215, 72
          %s220 = sadd.s32 %s218, %s219
          %s221 = smul.addr %s220, 8
          %s222 = scalar_lea.vmem %s0, %s221
          %s223 = smul.u32 16, %s22
          %s224 = ssub.s32 24, %s223
          %p225 = scmp.lt.s32.totalorder %s224, 16
          %s226 = scalar_select %p225, %s224, 16
          %s227 = smul.u32 128, %s226
          %s228 = smul.u32 %s227, 3
        $region32: #{tpu_custom_call.1} parent=27 // pred_fallthru
          _
        // Predicated region
        $region33: #{tpu_custom_call.1} parent=27 // pred_check
          %p229 = pneg %p80
        $region34: #{tpu_custom_call.1} parent=27 // pred_check_branch
          %231 = sbr.rel (%p229) target = $region36
        $region35: #{tpu_custom_call.1} parent=27 // pred_region
          %s232 = sadd.s32 %s22, 1
          %s233 = smul.u32 %s232, 2
          %s234 = smul.u32 8, %s233
          %p235 = scmp.lt.s32.totalorder %s21, 1
          %s236 = scalar_select %p235, %s21, 1
          %p237 = scmp.lt.s32.totalorder %s234, 23
          %s238 = scalar_select %p237, %s234, 23
          %s239 = smul.addr %s238, 3
          %s240 = smul.addr %s236, 72
          %s241 = sadd.s32 %s239, %s240
          %s242 = smul.addr %s241, 8
          %s243 = scalar_lea.vmem %s1, %s242
          %s244 = sadd.s32 %s22, 1
          %s245 = smul.u32 %s244, 2
          %s246 = smul.u32 8, %s245
        $region36: #{tpu_custom_call.1} parent=27 // pred_fallthru
          _
      $region28: #{tpu_custom_call.1} parent=5 // pred_fallthru
        _
      %p247 = scmp.le.s32.totalorder 1, %s14
      %p248 = scmp.lt.s32.totalorder %s14, 3
      %p249 = pnand %p247, %p248
      %p250 = pneg %p249
      // Predicated region
      $region37: #{tpu_custom_call.1} parent=5 // pred_check
        _
      $region38: #{tpu_custom_call.1} parent=5 // pred_check_branch
        %252 = sbr.rel (%p249) target = $region40
      $region39: #{tpu_custom_call.1} parent=5 // pred_region
        %s253 = ssub.s32 %s14, 1
        %s254 = smul.u32 16, %s24
        %s255 = ssub.s32 24, %s254
        %p256 = scmp.lt.s32.totalorder %s255, 16
        %s257 = scalar_select %p256, %s255, 16
        %s258 = smul.u32 128, %s257
        %s259 = smul.u32 %s258, 3
        %p260 = scmp.lt.s32.totalorder %s23, 1
        %s261 = scalar_select %p260, %s23, 1
        %p262 = scmp.lt.s32.totalorder %s254, 23
        %s263 = scalar_select %p262, %s254, 23
        %s264 = smul.addr %s263, 3
        %s265 = smul.addr %s261, 72
        %s266 = sadd.s32 %s264, %s265
        %s267 = smul.addr %s266, 8
        %s268 = scalar_lea.vmem %s0, %s267
        %p269 = pneg %p54
        %p270 = pneg %p51
        %s271 = sadd.s32 %s24, 1
        %s272 = smul.u32 %s271, 2
        %s273 = smul.u32 8, %s272
        %p274 = scmp.lt.s32.totalorder %s23, 1
        %s275 = scalar_select %p274, %s23, 1
        %p276 = scmp.lt.s32.totalorder %s273, 23
        %s277 = scalar_select %p276, %s273, 23
        %s278 = smul.addr %s277, 3
        %s279 = smul.addr %s275, 72
        %s280 = sadd.s32 %s278, %s279
        %s281 = smul.addr %s280, 8
        %s282 = scalar_lea.vmem %s1, %s281
        %p283 = pneg %p86
        %p284 = pneg %p83
        %p285 = pneg %p107
        %p286 = pneg %p104
        %p287 = pneg %p128
        %p288 = pneg %p125
        %p289 = pneg %p149
        %p290 = pneg %p146
        %p291 = pneg %p177
        %p292 = pneg %p174
        %s293 = sand.u32 %s164, 1
        %s294 = scalar_lea.sflag [#allocation4], %s293
        %s295 = sand.u32 %s164, 1
        %s296 = smul.addr %s295, 256
        %s297 = scalar_lea.vmem [#allocation3], %s296
        %s298 = smul.u32 16, %s24
        %s299 = ssub.s32 24, %s298
        %p300 = scmp.lt.s32.totalorder %s299, 16
        %s301 = scalar_select %p300, %s299, 16
        %s302 = smul.u32 128, %s301
        %s303 = smul.u32 %s302, 3
        %p304 = scmp.lt.s32.totalorder %s23, 1
        %s305 = scalar_select %p304, %s23, 1
        %p306 = scmp.lt.s32.totalorder %s298, 23
        %s307 = scalar_select %p306, %s298, 23
        %s308 = smul.addr %s307, 3
        %s309 = smul.addr %s305, 72
        %s310 = sadd.s32 %s308, %s309
        %s311 = smul.addr %s310, 8
        %s312 = scalar_lea.vmem %s0, %s311
        %s313 = smul.u32 16, %s24
        %s314 = ssub.s32 24, %s313
        %p315 = scmp.lt.s32.totalorder %s314, 16
        %s316 = scalar_select %p315, %s314, 16
        %s317 = smul.u32 128, %s316
        %s318 = smul.u32 %s317, 3
        %s319 = sadd.s32 %s24, 1
        %s320 = smul.u32 %s319, 2
        %s321 = smul.u32 8, %s320
        %p322 = scmp.lt.s32.totalorder %s23, 1
        %s323 = scalar_select %p322, %s23, 1
        %p324 = scmp.lt.s32.totalorder %s321, 23
        %s325 = scalar_select %p324, %s321, 23
        %s326 = smul.addr %s325, 3
        %s327 = smul.addr %s323, 72
        %s328 = sadd.s32 %s326, %s327
        %s329 = smul.addr %s328, 8
        %s330 = scalar_lea.vmem %s1, %s329
        %s331 = sadd.s32 %s24, 1
        %s332 = smul.u32 %s331, 2
        %s333 = smul.u32 8, %s332
        %s334 = smul.u32 16, %s24
        %s335 = scalar_lea.vmem %s312, 336
        %v336 = vld [vmem:[%s335] sm:$0xff]
        %v337 = vld [vmem:[%s335 + $0x8] sm:$0xff]
        %v338 = vld [vmem:[%s335 + $0x10] sm:$0x3]
        %v339 = vld [vmem:[%s335 + $0x18] sm:$0xff]
        %v340 = vld [vmem:[%s335 + $0x20] sm:$0xff]
        %v341 = vld [vmem:[%s335 + $0x28] sm:$0x3]
        %342 = vst [vmem:[#allocation2] sm:$0xff] %v336
        %343 = vst [vmem:[#allocation2 + $0x8] sm:$0xff] %v337
        %344 = vst [vmem:[#allocation2 + $0x10] sm:$0x3] %v338
        %345 = vst [vmem:[#allocation2 + $0x18] sm:$0xff] %v339
        %346 = vst [vmem:[#allocation2 + $0x20] sm:$0xff] %v340
        %347 = vst [vmem:[#allocation2 + $0x28] sm:$0x3] %v341
        %v348 = vld [vmem:[%s330] sm:$0xff]
        %v349 = vld [vmem:[%s330 + $0x8] sm:$0xff]
        %v350 = vld [vmem:[%s330 + $0x10] sm:$0x3]
        %v351 = vld [vmem:[%s330 + $0x18] sm:$0xff]
        %v352 = vld [vmem:[%s330 + $0x20] sm:$0xff]
        %v353 = vld [vmem:[%s330 + $0x28] sm:$0x3]
        %s354 = scalar_lea.vmem [#allocation2], 48
        %355 = vst [vmem:[%s354] sm:$0xff] %v348
        %356 = vst [vmem:[%s354 + $0x8] sm:$0xff] %v349
        %357 = vst [vmem:[%s354 + $0x10] sm:$0x3] %v350
        %358 = vst [vmem:[%s354 + $0x18] sm:$0xff] %v351
        %359 = vst [vmem:[%s354 + $0x20] sm:$0xff] %v352
        %360 = vst [vmem:[%s354 + $0x28] sm:$0x3] %v353
        %v361 = vld [vmem:[%s312] sm:$0xff]
        %v362 = vld [vmem:[%s312 + $0x8] sm:$0xff]
        %v363 = vld [vmem:[%s312 + $0x18] sm:$0xff]
        %v364 = vld [vmem:[%s312 + $0x20] sm:$0xff]
        %v365 = vld [vmem:[%s312 + $0x30] sm:$0xff]
        %v366 = vld [vmem:[%s312 + $0x38] sm:$0xff]
        %v367 = vld [vmem:[%s312 + $0x48] sm:$0xff]
        %v368 = vld [vmem:[%s312 + $0x50] sm:$0xff]
        %v369 = vld [vmem:[%s312 + $0x60] sm:$0xff]
        %v370 = vld [vmem:[%s312 + $0x68] sm:$0xff]
        %v371 = vld [vmem:[%s312 + $0x78] sm:$0xff]
        %v372 = vld [vmem:[%s312 + $0x80] sm:$0xff]
        %v373 = vld [vmem:[%s312 + $0x90] sm:$0xff]
        %v374 = vld [vmem:[%s312 + $0x98] sm:$0xff]
        %v375 = vld [vmem:[%s312 + $0xa8] sm:$0xff]
        %v376 = vld [vmem:[%s312 + $0xb0] sm:$0xff]
        %v377 = vld [vmem:[%s312 + $0xc0] sm:$0xff]
        %v378 = vld [vmem:[%s312 + $0xc8] sm:$0xff]
        %v379 = vld [vmem:[%s312 + $0xd8] sm:$0xff]
        %v380 = vld [vmem:[%s312 + $0xe0] sm:$0xff]
        %v381 = vld [vmem:[%s312 + $0xf0] sm:$0xff]
        %v382 = vld [vmem:[%s312 + $0xf8] sm:$0xff]
        %v383 = vld [vmem:[%s312 + $0x108] sm:$0xff]
        %v384 = vld [vmem:[%s312 + $0x110] sm:$0xff]
        %v385 = vld [vmem:[%s312 + $0x120] sm:$0xff]
        %v386 = vld [vmem:[%s312 + $0x128] sm:$0xff]
        %v387 = vld [vmem:[%s312 + $0x138] sm:$0xff]
        %v388 = vld [vmem:[%s312 + $0x140] sm:$0xff]
        %v389 = vld [vmem:[%s312 + $0x150] sm:$0xff]
        %v390 = vld [vmem:[%s312 + $0x158] sm:$0xff]
        %v391 = vld [vmem:[%s312 + $0x168] sm:$0xff]
        %v392 = vld [vmem:[%s312 + $0x170] sm:$0xff]
        %v393 = vld [vmem:[#allocation2] sm:$0xff]
        %v394 = vld [vmem:[#allocation2 + $0x8] sm:$0xff]
        %v395 = vld [vmem:[#allocation2 + $0x18] sm:$0xff]
        %v396 = vld [vmem:[#allocation2 + $0x20] sm:$0xff]
        %v397 = vld [vmem:[#allocation2 + $0x30] sm:$0xff]
        %v398 = vld [vmem:[#allocation2 + $0x38] sm:$0xff]
        %v399 = vld [vmem:[#allocation2 + $0x48] sm:$0xff]
        %v400 = vld [vmem:[#allocation2 + $0x50] sm:$0xff]
        %v401 = vld [vmem:[%s2] sm:$0xff]
        %v402 = vld [vmem:[%s2 + $0x8] sm:$0xff]
        %v403 = vld [vmem:[%s2 + $0x10] sm:$0xff]
        %v404 = vld [vmem:[%s2 + $0x18] sm:$0xff]
        %v405 = vld [vmem:[%s2 + $0x20] sm:$0xff]
        %v406 = vld [vmem:[%s2 + $0x28] sm:$0xff]
        %v407 = vld [vmem:[%s2 + $0x30] sm:$0xff]
        %v408 = vld [vmem:[%s2 + $0x38] sm:$0xff]
        %v409 = vld [vmem:[%s2 + $0x40] sm:$0xff]
        %v410 = vld [vmem:[%s2 + $0x48] sm:$0xff]
        %v411 = vld [vmem:[%s2 + $0x50] sm:$0xff]
        %v412 = vld [vmem:[%s2 + $0x58] sm:$0xff]
        %v413 = vld [vmem:[%s2 + $0x60] sm:$0xff]
        %v414 = vld [vmem:[%s2 + $0x68] sm:$0xff]
        %v415 = vld [vmem:[%s2 + $0x70] sm:$0xff]
        %v416 = vld [vmem:[%s2 + $0x78] sm:$0xff]
        %s417 = scalar_lea.vmem %s2, 384
        %v418 = vld [vmem:[%s417] sm:$0xff]
        %v419 = vld [vmem:[%s417 + $0x8] sm:$0xff]
        %v420 = vld [vmem:[%s417 + $0x10] sm:$0xff]
        %v421 = vld [vmem:[%s417 + $0x18] sm:$0xff]
        %v422 = vld [vmem:[%s417 + $0x20] sm:$0xff]
        %v423 = vld [vmem:[%s417 + $0x28] sm:$0xff]
        %v424 = vld [vmem:[%s417 + $0x30] sm:$0xff]
        %v425 = vld [vmem:[%s417 + $0x38] sm:$0xff]
        %v426 = vld [vmem:[%s417 + $0x40] sm:$0xff]
        %v427 = vld [vmem:[%s417 + $0x48] sm:$0xff]
        %v428 = vld [vmem:[%s417 + $0x50] sm:$0xff]
        %v429 = vld [vmem:[%s417 + $0x58] sm:$0xff]
        %v430 = vld [vmem:[%s417 + $0x60] sm:$0xff]
        %v431 = vld [vmem:[%s417 + $0x68] sm:$0xff]
        %v432 = vld [vmem:[%s417 + $0x70] sm:$0xff]
        %v433 = vld [vmem:[%s417 + $0x78] sm:$0xff]
        %434 = vmatprep.subr.mxu0 0.0
        %435 = vmatpush1.msra.mxu0 %v418
        %436 = vmatprep.subr.mxu0 0.0
        %437 = vmatpush1.msra.mxu0 %v419
        %438 = vmatprep.subr.mxu0 0.0
        %439 = vmatpush1.msra.mxu0 %v420
        %440 = vmatprep.subr.mxu0 0.0
        %441 = vmatpush1.msra.mxu0 %v421
        %442 = vmatprep.subr.mxu0 0.0
        %443 = vmatpush1.msra.mxu0 %v422
        %444 = vmatprep.subr.mxu0 0.0
        %445 = vmatpush1.msra.mxu0 %v423
        %446 = vmatprep.subr.mxu0 0.0
        %447 = vmatpush1.msra.mxu0 %v424
        %448 = vmatprep.subr.mxu0 0.0
        %449 = vmatpush1.msra.mxu0 %v425
        %450 = vmatprep.subr.mxu0 0.0
        %451 = vmatpush1.msra.mxu0 %v426
        %452 = vmatprep.subr.mxu0 0.0
        %453 = vmatpush1.msra.mxu0 %v427
        %454 = vmatprep.subr.mxu0 0.0
        %455 = vmatpush1.msra.mxu0 %v428
        %456 = vmatprep.subr.mxu0 0.0
        %457 = vmatpush1.msra.mxu0 %v429
        %458 = vmatprep.subr.mxu0 0.0
        %459 = vmatpush1.msra.mxu0 %v430
        %460 = vmatprep.subr.mxu0 0.0
        %461 = vmatpush1.msra.mxu0 %v431
        %462 = vmatprep.subr.mxu0 0.0
        %463 = vmatpush1.msra.mxu0 %v432
        %464 = vmatprep.subr.mxu0 0.0
        %465 = vmatpush1.msra.mxu0 %v433
        %466 = vmatprep.subr.mxu0 0.0
        %467 = vmatpush1.msra.mxu0 0.0
        %468 = vmatprep.subr.mxu0 0.0
        %469 = vmatpush1.msra.mxu0 0.0
        %470 = vmatprep.subr.mxu0 0.0
        %471 = vmatpush1.msra.mxu0 0.0
        %472 = vmatprep.subr.mxu0 0.0
        %473 = vmatpush1.msra.mxu0 0.0
        %474 = vmatprep.subr.mxu0 0.0
        %475 = vmatpush1.msra.mxu0 0.0
        %476 = vmatprep.subr.mxu0 0.0
        %477 = vmatpush1.msra.mxu0 0.0
        %478 = vmatprep.subr.mxu0 0.0
        %479 = vmatpush1.msra.mxu0 0.0
        %480 = vmatprep.subr.mxu0 0.0
        %481 = vmatpush1.msra.mxu0 0.0
        %482 = vmatprep.subr.mxu0 0.0
        %483 = vmatpush1.msra.mxu0 0.0
        %484 = vmatprep.subr.mxu0 0.0
        %485 = vmatpush1.msra.mxu0 0.0
        %486 = vmatprep.subr.mxu0 0.0
        %487 = vmatpush1.msra.mxu0 0.0
        %488 = vmatprep.subr.mxu0 0.0
        %489 = vmatpush1.msra.mxu0 0.0
        %490 = vmatprep.subr.mxu0 0.0
        %491 = vmatpush1.msra.mxu0 0.0
        %492 = vmatprep.subr.mxu0 0.0
        %493 = vmatpush1.msra.mxu0 0.0
        %494 = vmatprep.subr.mxu0 0.0
        %495 = vmatpush1.msra.mxu0 0.0
        %496 = vmatprep.subr.mxu0 0.0
        %497 = vmatpush1.msra.mxu0 0.0
        %498 = vmatprep.mubr.f32.mxu0 0.0
        %499 = vmatmul.mubr.f32.gmra.mrb[0].mxu0 %v363
        %v500 = vpop.f32.mrb[0].mxu0
        %v501 = vadd.f32 0.0, %v500
        %v502 = vpop.f32.mrb[0].mxu0
        %503 = vmatprep.mubr.f32.mxu0 0.0
        %504 = vmatmul.mubr.f32.gmra.mrb[0].mxu0 %v364
        %v505 = vpop.f32.mrb[0].mxu0
        %v506 = vadd.f32 0.0, %v505
        %v507 = vpop.f32.mrb[0].mxu0
        %508 = vmatprep.mubr.f32.mxu0 0.0
        %509 = vmatmul.mubr.f32.gmra.mrb[0].mxu0 %v365
        %v510 = vpop.f32.mrb[0].mxu0
        %v511 = vadd.f32 0.0, %v510
        %v512 = vpop.f32.mrb[0].mxu0
        %513 = vmatprep.mubr.f32.mxu0 0.0
        %514 = vmatmul.mubr.f32.gmra.mrb[0].mxu0 %v366
        %v515 = vpop.f32.mrb[0].mxu0
        %v516 = vadd.f32 0.0, %v515
        %v517 = vpop.f32.mrb[0].mxu0
        %518 = vmatprep.mubr.f32.mxu0 0.0
        %519 = vmatmul.mubr.f32.gmra.mrb[0].mxu0 %v367
        %v520 = vpop.f32.mrb[0].mxu0
        %v521 = vadd.f32 0.0, %v520
        %v522 = vpop.f32.mrb[0].mxu0
        %523 = vmatprep.mubr.f32.mxu0 0.0
        %524 = vmatmul.mubr.f32.gmra.mrb[0].mxu0 %v368
        %v525 = vpop.f32.mrb[0].mxu0
        %v526 = vadd.f32 0.0, %v525
        %v527 = vpop.f32.mrb[0].mxu0
        %528 = vmatprep.mubr.f32.mxu0 0.0
        %529 = vmatmul.mubr.f32.gmra.mrb[0].mxu0 %v369
        %v530 = vpop.f32.mrb[0].mxu0
        %v531 = vadd.f32 0.0, %v530
        %v532 = vpop.f32.mrb[0].mxu0
        %533 = vmatprep.mubr.f32.mxu0 0.0
        %534 = vmatmul.mubr.f32.gmra.mrb[0].mxu0 %v370
        %v535 = vpop.f32.mrb[0].mxu0
        %v536 = vadd.f32 0.0, %v535
        %v537 = vpop.f32.mrb[0].mxu0
        %538 = vmatprep.mubr.f32.mxu0 0.0
        %539 = vmatmul.mubr.f32.gmra.mrb[0].mxu0 %v371
        %v540 = vpop.f32.mrb[0].mxu0
        %v541 = vadd.f32 0.0, %v540
        %v542 = vpop.f32.mrb[0].mxu0
        %543 = vmatprep.mubr.f32.mxu0 0.0
        %544 = vmatmul.mubr.f32.gmra.mrb[0].mxu0 %v372
        %v545 = vpop.f32.mrb[0].mxu0
        %v546 = vadd.f32 0.0, %v545
        %v547 = vpop.f32.mrb[0].mxu0
        %548 = vmatprep.mubr.f32.mxu0 0.0
        %549 = vmatmul.mubr.f32.gmra.mrb[0].mxu0 %v373
        %v550 = vpop.f32.mrb[0].mxu0
        %v551 = vadd.f32 0.0, %v550
        %v552 = vpop.f32.mrb[0].mxu0
        %553 = vmatprep.mubr.f32.mxu0 0.0
        %554 = vmatmul.mubr.f32.gmra.mrb[0].mxu0 %v374
        %v555 = vpop.f32.mrb[0].mxu0
        %v556 = vadd.f32 0.0, %v555
        %v557 = vpop.f32.mrb[0].mxu0
        %558 = vmatprep.mubr.f32.mxu0 0.0
        %559 = vmatmul.mubr.f32.gmra.mrb[0].mxu0 %v375
        %v560 = vpop.f32.mrb[0].mxu0
        %v561 = vadd.f32 0.0, %v560
        %v562 = vpop.f32.mrb[0].mxu0
        %563 = vmatprep.mubr.f32.mxu0 0.0
        %564 = vmatmul.mubr.f32.gmra.mrb[0].mxu0 %v376
        %v565 = vpop.f32.mrb[0].mxu0
        %v566 = vadd.f32 0.0, %v565
        %v567 = vpop.f32.mrb[0].mxu0
        %568 = vmatprep.mubr.f32.mxu0 0.0
        %569 = vmatmul.mubr.f32.gmra.mrb[0].mxu0 %v377
        %v570 = vpop.f32.mrb[0].mxu0
        %v571 = vadd.f32 0.0, %v570
        %v572 = vpop.f32.mrb[0].mxu0
        %573 = vmatprep.mubr.f32.mxu0 0.0
        %574 = vmatmul.mubr.f32.gmra.mrb[0].mxu0 %v378
        %v575 = vpop.f32.mrb[0].mxu0
        %v576 = vadd.f32 0.0, %v575
        %v577 = vpop.f32.mrb[0].mxu0
        %578 = vmatprep.mubr.f32.mxu0 0.0
        %579 = vmatmul.mubr.f32.gmra.mrb[0].mxu0 %v379
        %v580 = vpop.f32.mrb[0].mxu0
        %v581 = vadd.f32 0.0, %v580
        %v582 = vpop.f32.mrb[0].mxu0
        %583 = vmatprep.mubr.f32.mxu0 0.0
        %584 = vmatmul.mubr.f32.gmra.mrb[0].mxu0 %v380
        %v585 = vpop.f32.mrb[0].mxu0
        %v586 = vadd.f32 0.0, %v585
        %v587 = vpop.f32.mrb[0].mxu0
        %588 = vmatprep.mubr.f32.mxu0 0.0
        %589 = vmatmul.mubr.f32.gmra.mrb[0].mxu0 %v381
        %v590 = vpop.f32.mrb[0].mxu0
        %v591 = vadd.f32 0.0, %v590
        %v592 = vpop.f32.mrb[0].mxu0
        %593 = vmatprep.mubr.f32.mxu0 0.0
        %594 = vmatmul.mubr.f32.gmra.mrb[0].mxu0 %v382
        %v595 = vpop.f32.mrb[0].mxu0
        %v596 = vadd.f32 0.0, %v595
        %v597 = vpop.f32.mrb[0].mxu0
        %598 = vmatprep.mubr.f32.mxu0 0.0
        %599 = vmatmul.mubr.f32.gmra.mrb[0].mxu0 %v383
        %v600 = vpop.f32.mrb[0].mxu0
        %v601 = vadd.f32 0.0, %v600
        %v602 = vpop.f32.mrb[0].mxu0
        %603 = vmatprep.mubr.f32.mxu0 0.0
        %604 = vmatmul.mubr.f32.gmra.mrb[0].mxu0 %v384
        %v605 = vpop.f32.mrb[0].mxu0
        %v606 = vadd.f32 0.0, %v605
        %v607 = vpop.f32.mrb[0].mxu0
        %608 = vmatprep.mubr.f32.mxu0 0.0
        %609 = vmatmul.mubr.f32.gmra.mrb[0].mxu0 %v385
        %v610 = vpop.f32.mrb[0].mxu0
        %v611 = vadd.f32 0.0, %v610
        %v612 = vpop.f32.mrb[0].mxu0
        %613 = vmatprep.mubr.f32.mxu0 0.0
        %614 = vmatmul.mubr.f32.gmra.mrb[0].mxu0 %v386
        %v615 = vpop.f32.mrb[0].mxu0
        %v616 = vadd.f32 0.0, %v615
        %v617 = vpop.f32.mrb[0].mxu0
        %618 = vmatprep.mubr.f32.mxu0 0.0
        %619 = vmatmul.mubr.f32.gmra.mrb[0].mxu0 %v387
        %v620 = vpop.f32.mrb[0].mxu0
        %v621 = vadd.f32 0.0, %v620
        %v622 = vpop.f32.mrb[0].mxu0
        %623 = vmatprep.mubr.f32.mxu0 0.0
        %624 = vmatmul.mubr.f32.gmra.mrb[0].mxu0 %v388
        %v625 = vpop.f32.mrb[0].mxu0
        %v626 = vadd.f32 0.0, %v625
        %v627 = vpop.f32.mrb[0].mxu0
        %628 = vmatprep.mubr.f32.mxu0 0.0
        %629 = vmatmul.mubr.f32.gmra.mrb[0].mxu0 %v389
        %v630 = vpop.f32.mrb[0].mxu0
        %v631 = vadd.f32 0.0, %v630
        %v632 = vpop.f32.mrb[0].mxu0
        %633 = vmatprep.mubr.f32.mxu0 0.0
        %634 = vmatmul.mubr.f32.gmra.mrb[0].mxu0 %v390
        %v635 = vpop.f32.mrb[0].mxu0
        %v636 = vadd.f32 0.0, %v635
        %v637 = vpop.f32.mrb[0].mxu0
        %638 = vdwg.mxu0
        %639 = vmatprep.subr.mxu0 0.0
        %640 = vmatpush1.msra.mxu0 %v401
        %641 = vmatprep.subr.mxu0 0.0
        %642 = vmatpush1.msra.mxu0 %v402
        %643 = vmatprep.subr.mxu0 0.0
        %644 = vmatpush1.msra.mxu0 %v403
        %645 = vmatprep.subr.mxu0 0.0
        %646 = vmatpush1.msra.mxu0 %v404
        %647 = vmatprep.subr.mxu0 0.0
        %648 = vmatpush1.msra.mxu0 %v405
        %649 = vmatprep.subr.mxu0 0.0
        %650 = vmatpush1.msra.mxu0 %v406
        %651 = vmatprep.subr.mxu0 0.0
        %652 = vmatpush1.msra.mxu0 %v407
        %653 = vmatprep.subr.mxu0 0.0
        %654 = vmatpush1.msra.mxu0 %v408
        %655 = vmatprep.subr.mxu0 0.0
        %656 = vmatpush1.msra.mxu0 %v409
        %657 = vmatprep.subr.mxu0 0.0
        %658 = vmatpush1.msra.mxu0 %v410
        %659 = vmatprep.subr.mxu0 0.0
        %660 = vmatpush1.msra.mxu0 %v411
        %661 = vmatprep.subr.mxu0 0.0
        %662 = vmatpush1.msra.mxu0 %v412
        %663 = vmatprep.subr.mxu0 0.0
        %664 = vmatpush1.msra.mxu0 %v413
        %665 = vmatprep.subr.mxu0 0.0
        %666 = vmatpush1.msra.mxu0 %v414
        %667 = vmatprep.subr.mxu0 0.0
        %668 = vmatpush1.msra.mxu0 %v415
        %669 = vmatprep.subr.mxu0 0.0
        %670 = vmatpush1.msra.mxu0 %v416
        %671 = vmatprep.subr.mxu0 0.0
        %672 = vmatpush1.msra.mxu0 0.0
        %673 = vmatprep.subr.mxu0 0.0
        %674 = vmatpush1.msra.mxu0 0.0
        %675 = vmatprep.subr.mxu0 0.0
        %676 = vmatpush1.msra.mxu0 0.0
        %677 = vmatprep.subr.mxu0 0.0
        %678 = vmatpush1.msra.mxu0 0.0
        %679 = vmatprep.subr.mxu0 0.0
        %680 = vmatpush1.msra.mxu0 0.0
        %681 = vmatprep.subr.mxu0 0.0
        %682 = vmatpush1.msra.mxu0 0.0
        %683 = vmatprep.subr.mxu0 0.0
        %684 = vmatpush1.msra.mxu0 0.0
        %685 = vmatprep.subr.mxu0 0.0
        %686 = vmatpush1.msra.mxu0 0.0
        %687 = vmatprep.subr.mxu0 0.0
        %688 = vmatpush1.msra.mxu0 0.0
        %689 = vmatprep.subr.mxu0 0.0
        %690 = vmatpush1.msra.mxu0 0.0
        %691 = vmatprep.subr.mxu0 0.0
        %692 = vmatpush1.msra.mxu0 0.0
        %693 = vmatprep.subr.mxu0 0.0
        %694 = vmatpush1.msra.mxu0 0.0
        %695 = vmatprep.subr.mxu0 0.0
        %696 = vmatpush1.msra.mxu0 0.0
        %697 = vmatprep.subr.mxu0 0.0
        %698 = vmatpush1.msra.mxu0 0.0
        %699 = vmatprep.subr.mxu0 0.0
        %700 = vmatpush1.msra.mxu0 0.0
        %701 = vmatprep.subr.mxu0 0.0
        %702 = vmatpush1.msra.mxu0 0.0
        %703 = vmatprep.mubr.f32.mxu0 0.0
        %704 = vmatmul.mubr.f32.gmra.mrb[0].mxu0 %v361
        %v705 = vpop.f32.mrb[0].mxu0
        %v706 = vadd.f32 %v501, %v705
        %v707 = vpop.f32.mrb[0].mxu0
        %708 = vmatprep.mubr.f32.mxu0 0.0
        %709 = vmatmul.mubr.f32.gmra.mrb[0].mxu0 %v362
        %v710 = vpop.f32.mrb[0].mxu0
        %v711 = vadd.f32 %v506, %v710
        %v712 = vpop.f32.mrb[0].mxu0
        %713 = vmatprep.mubr.f32.mxu0 0.0
        %714 = vmatmul.mubr.f32.gmra.mrb[0].mxu0 %v363
        %v715 = vpop.f32.mrb[0].mxu0
        %v716 = vadd.f32 %v511, %v715
        %v717 = vpop.f32.mrb[0].mxu0
        %718 = vmatprep.mubr.f32.mxu0 0.0
        %719 = vmatmul.mubr.f32.gmra.mrb[0].mxu0 %v364
        %v720 = vpop.f32.mrb[0].mxu0
        %v721 = vadd.f32 %v516, %v720
        %v722 = vpop.f32.mrb[0].mxu0
        %723 = vmatprep.mubr.f32.mxu0 0.0
        %724 = vmatmul.mubr.f32.gmra.mrb[0].mxu0 %v365
        %v725 = vpop.f32.mrb[0].mxu0
        %v726 = vadd.f32 %v521, %v725
        %v727 = vpop.f32.mrb[0].mxu0
        %728 = vmatprep.mubr.f32.mxu0 0.0
        %729 = vmatmul.mubr.f32.gmra.mrb[0].mxu0 %v366
        %v730 = vpop.f32.mrb[0].mxu0
        %v731 = vadd.f32 %v526, %v730
        %v732 = vpop.f32.mrb[0].mxu0
        %733 = vmatprep.mubr.f32.mxu0 0.0
        %734 = vmatmul.mubr.f32.gmra.mrb[0].mxu0 %v367
        %v735 = vpop.f32.mrb[0].mxu0
        %v736 = vadd.f32 %v531, %v735
        %v737 = vpop.f32.mrb[0].mxu0
        %738 = vmatprep.mubr.f32.mxu0 0.0
        %739 = vmatmul.mubr.f32.gmra.mrb[0].mxu0 %v368
        %v740 = vpop.f32.mrb[0].mxu0
        %v741 = vadd.f32 %v536, %v740
        %v742 = vpop.f32.mrb[0].mxu0
        %743 = vmatprep.mubr.f32.mxu0 0.0
        %744 = vmatmul.mubr.f32.gmra.mrb[0].mxu0 %v369
        %v745 = vpop.f32.mrb[0].mxu0
        %v746 = vadd.f32 %v541, %v745
        %v747 = vpop.f32.mrb[0].mxu0
        %748 = vmatprep.mubr.f32.mxu0 0.0
        %749 = vmatmul.mubr.f32.gmra.mrb[0].mxu0 %v370
        %v750 = vpop.f32.mrb[0].mxu0
        %v751 = vadd.f32 %v546, %v750
        %v752 = vpop.f32.mrb[0].mxu0
        %753 = vmatprep.mubr.f32.mxu0 0.0
        %754 = vmatmul.mubr.f32.gmra.mrb[0].mxu0 %v371
        %v755 = vpop.f32.mrb[0].mxu0
        %v756 = vadd.f32 %v551, %v755
        %v757 = vpop.f32.mrb[0].mxu0
        %758 = vmatprep.mubr.f32.mxu0 0.0
        %759 = vmatmul.mubr.f32.gmra.mrb[0].mxu0 %v372
        %v760 = vpop.f32.mrb[0].mxu0
        %v761 = vadd.f32 %v556, %v760
        %v762 = vpop.f32.mrb[0].mxu0
        %763 = vmatprep.mubr.f32.mxu0 0.0
        %764 = vmatmul.mubr.f32.gmra.mrb[0].mxu0 %v373
        %v765 = vpop.f32.mrb[0].mxu0
        %v766 = vadd.f32 %v561, %v765
        %v767 = vpop.f32.mrb[0].mxu0
        %768 = vmatprep.mubr.f32.mxu0 0.0
        %769 = vmatmul.mubr.f32.gmra.mrb[0].mxu0 %v374
        %v770 = vpop.f32.mrb[0].mxu0
        %v771 = vadd.f32 %v566, %v770
        %v772 = vpop.f32.mrb[0].mxu0
        %773 = vmatprep.mubr.f32.mxu0 0.0
        %774 = vmatmul.mubr.f32.gmra.mrb[0].mxu0 %v375
        %v775 = vpop.f32.mrb[0].mxu0
        %v776 = vadd.f32 %v571, %v775
        %v777 = vpop.f32.mrb[0].mxu0
        %778 = vmatprep.mubr.f32.mxu0 0.0
        %779 = vmatmul.mubr.f32.gmra.mrb[0].mxu0 %v376
        %v780 = vpop.f32.mrb[0].mxu0
        %v781 = vadd.f32 %v576, %v780
        %v782 = vpop.f32.mrb[0].mxu0
        %783 = vmatprep.mubr.f32.mxu0 0.0
        %784 = vmatmul.mubr.f32.gmra.mrb[0].mxu0 %v377
        %v785 = vpop.f32.mrb[0].mxu0
        %v786 = vadd.f32 %v581, %v785
        %v787 = vpop.f32.mrb[0].mxu0
        %788 = vmatprep.mubr.f32.mxu0 0.0
        %789 = vmatmul.mubr.f32.gmra.mrb[0].mxu0 %v378
        %v790 = vpop.f32.mrb[0].mxu0
        %v791 = vadd.f32 %v586, %v790
        %v792 = vpop.f32.mrb[0].mxu0
        %793 = vmatprep.mubr.f32.mxu0 0.0
        %794 = vmatmul.mubr.f32.gmra.mrb[0].mxu0 %v379
        %v795 = vpop.f32.mrb[0].mxu0
        %v796 = vadd.f32 %v591, %v795
        %v797 = vpop.f32.mrb[0].mxu0
        %798 = vmatprep.mubr.f32.mxu0 0.0
        %799 = vmatmul.mubr.f32.gmra.mrb[0].mxu0 %v380
        %v800 = vpop.f32.mrb[0].mxu0
        %v801 = vadd.f32 %v596, %v800
        %v802 = vpop.f32.mrb[0].mxu0
        %803 = vmatprep.mubr.f32.mxu0 0.0
        %804 = vmatmul.mubr.f32.gmra.mrb[0].mxu0 %v381
        %v805 = vpop.f32.mrb[0].mxu0
        %v806 = vadd.f32 %v601, %v805
        %v807 = vpop.f32.mrb[0].mxu0
        %808 = vmatprep.mubr.f32.mxu0 0.0
        %809 = vmatmul.mubr.f32.gmra.mrb[0].mxu0 %v382
        %v810 = vpop.f32.mrb[0].mxu0
        %v811 = vadd.f32 %v606, %v810
        %v812 = vpop.f32.mrb[0].mxu0
        %813 = vmatprep.mubr.f32.mxu0 0.0
        %814 = vmatmul.mubr.f32.gmra.mrb[0].mxu0 %v383
        %v815 = vpop.f32.mrb[0].mxu0
        %v816 = vadd.f32 %v611, %v815
        %v817 = vpop.f32.mrb[0].mxu0
        %818 = vmatprep.mubr.f32.mxu0 0.0
        %819 = vmatmul.mubr.f32.gmra.mrb[0].mxu0 %v384
        %v820 = vpop.f32.mrb[0].mxu0
        %v821 = vadd.f32 %v616, %v820
        %v822 = vpop.f32.mrb[0].mxu0
        %823 = vmatprep.mubr.f32.mxu0 0.0
        %824 = vmatmul.mubr.f32.gmra.mrb[0].mxu0 %v385
        %v825 = vpop.f32.mrb[0].mxu0
        %v826 = vadd.f32 %v621, %v825
        %v827 = vpop.f32.mrb[0].mxu0
        %828 = vmatprep.mubr.f32.mxu0 0.0
        %829 = vmatmul.mubr.f32.gmra.mrb[0].mxu0 %v386
        %v830 = vpop.f32.mrb[0].mxu0
        %v831 = vadd.f32 %v626, %v830
        %v832 = vpop.f32.mrb[0].mxu0
        %833 = vmatprep.mubr.f32.mxu0 0.0
        %834 = vmatmul.mubr.f32.gmra.mrb[0].mxu0 %v387
        %v835 = vpop.f32.mrb[0].mxu0
        %v836 = vadd.f32 %v631, %v835
        %v837 = vpop.f32.mrb[0].mxu0
        %838 = vmatprep.mubr.f32.mxu0 0.0
        %839 = vmatmul.mubr.f32.gmra.mrb[0].mxu0 %v388
        %v840 = vpop.f32.mrb[0].mxu0
        %v841 = vadd.f32 %v636, %v840
        %v842 = vpop.f32.mrb[0].mxu0
        %843 = vdwg.mxu0
        %844 = vmatprep.subr.mxu0 0.0
        %845 = vmatpush1.msra.mxu0 %v418
        %846 = vmatprep.subr.mxu0 0.0
        %847 = vmatpush1.msra.mxu0 %v419
        %848 = vmatprep.subr.mxu0 0.0
        %849 = vmatpush1.msra.mxu0 %v420
        %850 = vmatprep.subr.mxu0 0.0
        %851 = vmatpush1.msra.mxu0 %v421
        %852 = vmatprep.subr.mxu0 0.0
        %853 = vmatpush1.msra.mxu0 %v422
        %854 = vmatprep.subr.mxu0 0.0
        %855 = vmatpush1.msra.mxu0 %v423
        %856 = vmatprep.subr.mxu0 0.0
        %857 = vmatpush1.msra.mxu0 %v424
        %858 = vmatprep.subr.mxu0 0.0
        %859 = vmatpush1.msra.mxu0 %v425
        %860 = vmatprep.subr.mxu0 0.0
        %861 = vmatpush1.msra.mxu0 %v426
        %862 = vmatprep.subr.mxu0 0.0
        %863 = vmatpush1.msra.mxu0 %v427
        %864 = vmatprep.subr.mxu0 0.0
        %865 = vmatpush1.msra.mxu0 %v428
        %866 = vmatprep.subr.mxu0 0.0
        %867 = vmatpush1.msra.mxu0 %v429
        %868 = vmatprep.subr.mxu0 0.0
        %869 = vmatpush1.msra.mxu0 %v430
        %870 = vmatprep.subr.mxu0 0.0
        %871 = vmatpush1.msra.mxu0 %v431
        %872 = vmatprep.subr.mxu0 0.0
        %873 = vmatpush1.msra.mxu0 %v432
        %874 = vmatprep.subr.mxu0 0.0
        %875 = vmatpush1.msra.mxu0 %v433
        %876 = vmatprep.subr.mxu0 0.0
        %877 = vmatpush1.msra.mxu0 0.0
        %878 = vmatprep.subr.mxu0 0.0
        %879 = vmatpush1.msra.mxu0 0.0
        %880 = vmatprep.subr.mxu0 0.0
        %881 = vmatpush1.msra.mxu0 0.0
        %882 = vmatprep.subr.mxu0 0.0
        %883 = vmatpush1.msra.mxu0 0.0
        %884 = vmatprep.subr.mxu0 0.0
        %885 = vmatpush1.msra.mxu0 0.0
        %886 = vmatprep.subr.mxu0 0.0
        %887 = vmatpush1.msra.mxu0 0.0
        %888 = vmatprep.subr.mxu0 0.0
        %889 = vmatpush1.msra.mxu0 0.0
        %890 = vmatprep.subr.mxu0 0.0
        %891 = vmatpush1.msra.mxu0 0.0
        %892 = vmatprep.subr.mxu0 0.0
        %893 = vmatpush1.msra.mxu0 0.0
        %894 = vmatprep.subr.mxu0 0.0
        %895 = vmatpush1.msra.mxu0 0.0
        %896 = vmatprep.subr.mxu0 0.0
        %897 = vmatpush1.msra.mxu0 0.0
        %898 = vmatprep.subr.mxu0 0.0
        %899 = vmatpush1.msra.mxu0 0.0
        %900 = vmatprep.subr.mxu0 0.0
        %901 = vmatpush1.msra.mxu0 0.0
        %902 = vmatprep.subr.mxu0 0.0
        %903 = vmatpush1.msra.mxu0 0.0
        %904 = vmatprep.subr.mxu0 0.0
        %905 = vmatpush1.msra.mxu0 0.0
        %906 = vmatprep.subr.mxu0 0.0
        %907 = vmatpush1.msra.mxu0 0.0
        %908 = vmatprep.mubr.f32.mxu0 0.0
        %909 = vmatmul.mubr.f32.gmra.mrb[0].mxu0 %v395
        %v910 = vpop.f32.mrb[0].mxu0
        %v911 = vadd.f32 0.0, %v910
        %v912 = vpop.f32.mrb[0].mxu0
        %913 = vmatprep.mubr.f32.mxu0 0.0
        %914 = vmatmul.mubr.f32.gmra.mrb[0].mxu0 %v396
        %v915 = vpop.f32.mrb[0].mxu0
        %v916 = vadd.f32 0.0, %v915
        %v917 = vpop.f32.mrb[0].mxu0
        %918 = vmatprep.mubr.f32.mxu0 0.0
        %919 = vmatmul.mubr.f32.gmra.mrb[0].mxu0 %v397
        %v920 = vpop.f32.mrb[0].mxu0
        %v921 = vadd.f32 0.0, %v920
        %v922 = vpop.f32.mrb[0].mxu0
        %923 = vmatprep.mubr.f32.mxu0 0.0
        %924 = vmatmul.mubr.f32.gmra.mrb[0].mxu0 %v398
        %v925 = vpop.f32.mrb[0].mxu0
        %v926 = vadd.f32 0.0, %v925
        %v927 = vpop.f32.mrb[0].mxu0
        %928 = vdwg.mxu0
        %929 = vmatprep.subr.mxu0 0.0
        %930 = vmatpush1.msra.mxu0 %v401
        %931 = vmatprep.subr.mxu0 0.0
        %932 = vmatpush1.msra.mxu0 %v402
        %933 = vmatprep.subr.mxu0 0.0
        %934 = vmatpush1.msra.mxu0 %v403
        %935 = vmatprep.subr.mxu0 0.0
        %936 = vmatpush1.msra.mxu0 %v404
        %937 = vmatprep.subr.mxu0 0.0
        %938 = vmatpush1.msra.mxu0 %v405
        %939 = vmatprep.subr.mxu0 0.0
        %940 = vmatpush1.msra.mxu0 %v406
        %941 = vmatprep.subr.mxu0 0.0
        %942 = vmatpush1.msra.mxu0 %v407
        %943 = vmatprep.subr.mxu0 0.0
        %944 = vmatpush1.msra.mxu0 %v408
        %945 = vmatprep.subr.mxu0 0.0
        %946 = vmatpush1.msra.mxu0 %v409
        %947 = vmatprep.subr.mxu0 0.0
        %948 = vmatpush1.msra.mxu0 %v410
        %949 = vmatprep.subr.mxu0 0.0
        %950 = vmatpush1.msra.mxu0 %v411
        %951 = vmatprep.subr.mxu0 0.0
        %952 = vmatpush1.msra.mxu0 %v412
        %953 = vmatprep.subr.mxu0 0.0
        %954 = vmatpush1.msra.mxu0 %v413
        %955 = vmatprep.subr.mxu0 0.0
        %956 = vmatpush1.msra.mxu0 %v414
        %957 = vmatprep.subr.mxu0 0.0
        %958 = vmatpush1.msra.mxu0 %v415
        %959 = vmatprep.subr.mxu0 0.0
        %960 = vmatpush1.msra.mxu0 %v416
        %961 = vmatprep.subr.mxu0 0.0
        %962 = vmatpush1.msra.mxu0 0.0
        %963 = vmatprep.subr.mxu0 0.0
        %964 = vmatpush1.msra.mxu0 0.0
        %965 = vmatprep.subr.mxu0 0.0
        %966 = vmatpush1.msra.mxu0 0.0
        %967 = vmatprep.subr.mxu0 0.0
        %968 = vmatpush1.msra.mxu0 0.0
        %969 = vmatprep.subr.mxu0 0.0
        %970 = vmatpush1.msra.mxu0 0.0
        %971 = vmatprep.subr.mxu0 0.0
        %972 = vmatpush1.msra.mxu0 0.0
        %973 = vmatprep.subr.mxu0 0.0
        %974 = vmatpush1.msra.mxu0 0.0
        %975 = vmatprep.subr.mxu0 0.0
        %976 = vmatpush1.msra.mxu0 0.0
        %977 = vmatprep.subr.mxu0 0.0
        %978 = vmatpush1.msra.mxu0 0.0
        %979 = vmatprep.subr.mxu0 0.0
        %980 = vmatpush1.msra.mxu0 0.0
        %981 = vmatprep.subr.mxu0 0.0
        %982 = vmatpush1.msra.mxu0 0.0
        %983 = vmatprep.subr.mxu0 0.0
        %984 = vmatpush1.msra.mxu0 0.0
        %985 = vmatprep.subr.mxu0 0.0
        %986 = vmatpush1.msra.mxu0 0.0
        %987 = vmatprep.subr.mxu0 0.0
        %988 = vmatpush1.msra.mxu0 0.0
        %989 = vmatprep.subr.mxu0 0.0
        %990 = vmatpush1.msra.mxu0 0.0
        %991 = vmatprep.subr.mxu0 0.0
        %992 = vmatpush1.msra.mxu0 0.0
        %993 = vmatprep.mubr.f32.mxu0 0.0
        %994 = vmatmul.mubr.f32.gmra.mrb[0].mxu0 %v393
        %v995 = vpop.f32.mrb[0].mxu0
        %v996 = vadd.f32 %v911, %v995
        %v997 = vpop.f32.mrb[0].mxu0
        %998 = vmatprep.mubr.f32.mxu0 0.0
        %999 = vmatmul.mubr.f32.gmra.mrb[0].mxu0 %v394
        %v1000 = vpop.f32.mrb[0].mxu0
        %v1001 = vadd.f32 %v916, %v1000
        %v1002 = vpop.f32.mrb[0].mxu0
        %1003 = vmatprep.mubr.f32.mxu0 0.0
        %1004 = vmatmul.mubr.f32.gmra.mrb[0].mxu0 %v395
        %v1005 = vpop.f32.mrb[0].mxu0
        %v1006 = vadd.f32 %v921, %v1005
        %v1007 = vpop.f32.mrb[0].mxu0
        %1008 = vmatprep.mubr.f32.mxu0 0.0
        %1009 = vmatmul.mubr.f32.gmra.mrb[0].mxu0 %v396
        %v1010 = vpop.f32.mrb[0].mxu0
        %v1011 = vadd.f32 %v926, %v1010
        %v1012 = vpop.f32.mrb[0].mxu0
        %1013 = vdwg.mxu0
        %s1014 = scalar_lea.vmem %s2, 768
        %v1015 = vld [vmem:[%s1014] sm:$0xff]
        %v1016 = vld [vmem:[%s1014 + $0x8] sm:$0xff]
        %v1017 = vld [vmem:[%s1014 + $0x10] sm:$0xff]
        %v1018 = vld [vmem:[%s1014 + $0x18] sm:$0xff]
        %v1019 = vld [vmem:[%s1014 + $0x20] sm:$0xff]
        %v1020 = vld [vmem:[%s1014 + $0x28] sm:$0xff]
        %v1021 = vld [vmem:[%s1014 + $0x30] sm:$0xff]
        %v1022 = vld [vmem:[%s1014 + $0x38] sm:$0xff]
        %v1023 = vld [vmem:[%s1014 + $0x40] sm:$0xff]
        %v1024 = vld [vmem:[%s1014 + $0x48] sm:$0xff]
        %v1025 = vld [vmem:[%s1014 + $0x50] sm:$0xff]
        %v1026 = vld [vmem:[%s1014 + $0x58] sm:$0xff]
        %v1027 = vld [vmem:[%s1014 + $0x60] sm:$0xff]
        %v1028 = vld [vmem:[%s1014 + $0x68] sm:$0xff]
        %v1029 = vld [vmem:[%s1014 + $0x70] sm:$0xff]
        %v1030 = vld [vmem:[%s1014 + $0x78] sm:$0xff]
        %1031 = vmatprep.subr.mxu0 0.0
        %1032 = vmatpush1.msra.mxu0 %v1015
        %1033 = vmatprep.subr.mxu0 0.0
        %1034 = vmatpush1.msra.mxu0 %v1016
        %1035 = vmatprep.subr.mxu0 0.0
        %1036 = vmatpush1.msra.mxu0 %v1017
        %1037 = vmatprep.subr.mxu0 0.0
        %1038 = vmatpush1.msra.mxu0 %v1018
        %1039 = vmatprep.subr.mxu0 0.0
        %1040 = vmatpush1.msra.mxu0 %v1019
        %1041 = vmatprep.subr.mxu0 0.0
        %1042 = vmatpush1.msra.mxu0 %v1020
        %1043 = vmatprep.subr.mxu0 0.0
        %1044 = vmatpush1.msra.mxu0 %v1021
        %1045 = vmatprep.subr.mxu0 0.0
        %1046 = vmatpush1.msra.mxu0 %v1022
        %1047 = vmatprep.subr.mxu0 0.0
        %1048 = vmatpush1.msra.mxu0 %v1023
        %1049 = vmatprep.subr.mxu0 0.0
        %1050 = vmatpush1.msra.mxu0 %v1024
        %1051 = vmatprep.subr.mxu0 0.0
        %1052 = vmatpush1.msra.mxu0 %v1025
        %1053 = vmatprep.subr.mxu0 0.0
        %1054 = vmatpush1.msra.mxu0 %v1026
        %1055 = vmatprep.subr.mxu0 0.0
        %1056 = vmatpush1.msra.mxu0 %v1027
        %1057 = vmatprep.subr.mxu0 0.0
        %1058 = vmatpush1.msra.mxu0 %v1028
        %1059 = vmatprep.subr.mxu0 0.0
        %1060 = vmatpush1.msra.mxu0 %v1029
        %1061 = vmatprep.subr.mxu0 0.0
        %1062 = vmatpush1.msra.mxu0 %v1030
        %1063 = vmatprep.subr.mxu0 0.0
        %1064 = vmatpush1.msra.mxu0 0.0
        %1065 = vmatprep.subr.mxu0 0.0
        %1066 = vmatpush1.msra.mxu0 0.0
        %1067 = vmatprep.subr.mxu0 0.0
        %1068 = vmatpush1.msra.mxu0 0.0
        %1069 = vmatprep.subr.mxu0 0.0
        %1070 = vmatpush1.msra.mxu0 0.0
        %1071 = vmatprep.subr.mxu0 0.0
        %1072 = vmatpush1.msra.mxu0 0.0
        %1073 = vmatprep.subr.mxu0 0.0
        %1074 = vmatpush1.msra.mxu0 0.0
        %1075 = vmatprep.subr.mxu0 0.0
        %1076 = vmatpush1.msra.mxu0 0.0
        %1077 = vmatprep.subr.mxu0 0.0
        %1078 = vmatpush1.msra.mxu0 0.0
        %1079 = vmatprep.subr.mxu0 0.0
        %1080 = vmatpush1.msra.mxu0 0.0
        %1081 = vmatprep.subr.mxu0 0.0
        %1082 = vmatpush1.msra.mxu0 0.0
        %1083 = vmatprep.subr.mxu0 0.0
        %1084 = vmatpush1.msra.mxu0 0.0
        %1085 = vmatprep.subr.mxu0 0.0
        %1086 = vmatpush1.msra.mxu0 0.0
        %1087 = vmatprep.subr.mxu0 0.0
        %1088 = vmatpush1.msra.mxu0 0.0
        %1089 = vmatprep.subr.mxu0 0.0
        %1090 = vmatpush1.msra.mxu0 0.0
        %1091 = vmatprep.subr.mxu0 0.0
        %1092 = vmatpush1.msra.mxu0 0.0
        %1093 = vmatprep.subr.mxu0 0.0
        %1094 = vmatpush1.msra.mxu0 0.0
        %1095 = vmatprep.mubr.f32.mxu0 0.0
        %1096 = vmatmul.mubr.f32.gmra.mrb[0].mxu0 %v365
        %v1097 = vpop.f32.mrb[0].mxu0
        %v1098 = vadd.f32 0.0, %v1097
        %v1099 = vpop.f32.mrb[0].mxu0
        %1100 = vmatprep.mubr.f32.mxu0 0.0
        %1101 = vmatmul.mubr.f32.gmra.mrb[0].mxu0 %v366
        %v1102 = vpop.f32.mrb[0].mxu0
        %v1103 = vadd.f32 0.0, %v1102
        %v1104 = vpop.f32.mrb[0].mxu0
        %1105 = vmatprep.mubr.f32.mxu0 0.0
        %1106 = vmatmul.mubr.f32.gmra.mrb[0].mxu0 %v367
        %v1107 = vpop.f32.mrb[0].mxu0
        %v1108 = vadd.f32 0.0, %v1107
        %v1109 = vpop.f32.mrb[0].mxu0
        %1110 = vmatprep.mubr.f32.mxu0 0.0
        %1111 = vmatmul.mubr.f32.gmra.mrb[0].mxu0 %v368
        %v1112 = vpop.f32.mrb[0].mxu0
        %v1113 = vadd.f32 0.0, %v1112
        %v1114 = vpop.f32.mrb[0].mxu0
        %1115 = vmatprep.mubr.f32.mxu0 0.0
        %1116 = vmatmul.mubr.f32.gmra.mrb[0].mxu0 %v369
        %v1117 = vpop.f32.mrb[0].mxu0
        %v1118 = vadd.f32 0.0, %v1117
        %v1119 = vpop.f32.mrb[0].mxu0
        %1120 = vmatprep.mubr.f32.mxu0 0.0
        %1121 = vmatmul.mubr.f32.gmra.mrb[0].mxu0 %v370
        %v1122 = vpop.f32.mrb[0].mxu0
        %v1123 = vadd.f32 0.0, %v1122
        %v1124 = vpop.f32.mrb[0].mxu0
        %1125 = vmatprep.mubr.f32.mxu0 0.0
        %1126 = vmatmul.mubr.f32.gmra.mrb[0].mxu0 %v371
        %v1127 = vpop.f32.mrb[0].mxu0
        %v1128 = vadd.f32 0.0, %v1127
        %v1129 = vpop.f32.mrb[0].mxu0
        %1130 = vmatprep.mubr.f32.mxu0 0.0
        %1131 = vmatmul.mubr.f32.gmra.mrb[0].mxu0 %v372
        %v1132 = vpop.f32.mrb[0].mxu0
        %v1133 = vadd.f32 0.0, %v1132
        %v1134 = vpop.f32.mrb[0].mxu0
        %1135 = vmatprep.mubr.f32.mxu0 0.0
        %1136 = vmatmul.mubr.f32.gmra.mrb[0].mxu0 %v373
        %v1137 = vpop.f32.mrb[0].mxu0
        %v1138 = vadd.f32 0.0, %v1137
        %v1139 = vpop.f32.mrb[0].mxu0
        %1140 = vmatprep.mubr.f32.mxu0 0.0
        %1141 = vmatmul.mubr.f32.gmra.mrb[0].mxu0 %v374
        %v1142 = vpop.f32.mrb[0].mxu0
        %v1143 = vadd.f32 0.0, %v1142
        %v1144 = vpop.f32.mrb[0].mxu0
        %1145 = vmatprep.mubr.f32.mxu0 0.0
        %1146 = vmatmul.mubr.f32.gmra.mrb[0].mxu0 %v375
        %v1147 = vpop.f32.mrb[0].mxu0
        %v1148 = vadd.f32 0.0, %v1147
        %v1149 = vpop.f32.mrb[0].mxu0
        %1150 = vmatprep.mubr.f32.mxu0 0.0
        %1151 = vmatmul.mubr.f32.gmra.mrb[0].mxu0 %v376
        %v1152 = vpop.f32.mrb[0].mxu0
        %v1153 = vadd.f32 0.0, %v1152
        %v1154 = vpop.f32.mrb[0].mxu0
        %1155 = vmatprep.mubr.f32.mxu0 0.0
        %1156 = vmatmul.mubr.f32.gmra.mrb[0].mxu0 %v377
        %v1157 = vpop.f32.mrb[0].mxu0
        %v1158 = vadd.f32 0.0, %v1157
        %v1159 = vpop.f32.mrb[0].mxu0
        %1160 = vmatprep.mubr.f32.mxu0 0.0
        %1161 = vmatmul.mubr.f32.gmra.mrb[0].mxu0 %v378
        %v1162 = vpop.f32.mrb[0].mxu0
        %v1163 = vadd.f32 0.0, %v1162
        %v1164 = vpop.f32.mrb[0].mxu0
        %1165 = vmatprep.mubr.f32.mxu0 0.0
        %1166 = vmatmul.mubr.f32.gmra.mrb[0].mxu0 %v379
        %v1167 = vpop.f32.mrb[0].mxu0
        %v1168 = vadd.f32 0.0, %v1167
        %v1169 = vpop.f32.mrb[0].mxu0
        %1170 = vmatprep.mubr.f32.mxu0 0.0
        %1171 = vmatmul.mubr.f32.gmra.mrb[0].mxu0 %v380
        %v1172 = vpop.f32.mrb[0].mxu0
        %v1173 = vadd.f32 0.0, %v1172
        %v1174 = vpop.f32.mrb[0].mxu0
        %1175 = vmatprep.mubr.f32.mxu0 0.0
        %1176 = vmatmul.mubr.f32.gmra.mrb[0].mxu0 %v381
        %v1177 = vpop.f32.mrb[0].mxu0
        %v1178 = vadd.f32 0.0, %v1177
        %v1179 = vpop.f32.mrb[0].mxu0
        %1180 = vmatprep.mubr.f32.mxu0 0.0
        %1181 = vmatmul.mubr.f32.gmra.mrb[0].mxu0 %v382
        %v1182 = vpop.f32.mrb[0].mxu0
        %v1183 = vadd.f32 0.0, %v1182
        %v1184 = vpop.f32.mrb[0].mxu0
        %1185 = vmatprep.mubr.f32.mxu0 0.0
        %1186 = vmatmul.mubr.f32.gmra.mrb[0].mxu0 %v383
        %v1187 = vpop.f32.mrb[0].mxu0
        %v1188 = vadd.f32 0.0, %v1187
        %v1189 = vpop.f32.mrb[0].mxu0
        %1190 = vmatprep.mubr.f32.mxu0 0.0
        %1191 = vmatmul.mubr.f32.gmra.mrb[0].mxu0 %v384
        %v1192 = vpop.f32.mrb[0].mxu0
        %v1193 = vadd.f32 0.0, %v1192
        %v1194 = vpop.f32.mrb[0].mxu0
        %1195 = vmatprep.mubr.f32.mxu0 0.0
        %1196 = vmatmul.mubr.f32.gmra.mrb[0].mxu0 %v385
        %v1197 = vpop.f32.mrb[0].mxu0
        %v1198 = vadd.f32 0.0, %v1197
        %v1199 = vpop.f32.mrb[0].mxu0
        %1200 = vmatprep.mubr.f32.mxu0 0.0
        %1201 = vmatmul.mubr.f32.gmra.mrb[0].mxu0 %v386
        %v1202 = vpop.f32.mrb[0].mxu0
        %v1203 = vadd.f32 0.0, %v1202
        %v1204 = vpop.f32.mrb[0].mxu0
        %1205 = vmatprep.mubr.f32.mxu0 0.0
        %1206 = vmatmul.mubr.f32.gmra.mrb[0].mxu0 %v387
        %v1207 = vpop.f32.mrb[0].mxu0
        %v1208 = vadd.f32 0.0, %v1207
        %v1209 = vpop.f32.mrb[0].mxu0
        %1210 = vmatprep.mubr.f32.mxu0 0.0
        %1211 = vmatmul.mubr.f32.gmra.mrb[0].mxu0 %v388
        %v1212 = vpop.f32.mrb[0].mxu0
        %v1213 = vadd.f32 0.0, %v1212
        %v1214 = vpop.f32.mrb[0].mxu0
        %1215 = vmatprep.mubr.f32.mxu0 0.0
        %1216 = vmatmul.mubr.f32.gmra.mrb[0].mxu0 %v389
        %v1217 = vpop.f32.mrb[0].mxu0
        %v1218 = vadd.f32 0.0, %v1217
        %v1219 = vpop.f32.mrb[0].mxu0
        %1220 = vmatprep.mubr.f32.mxu0 0.0
        %1221 = vmatmul.mubr.f32.gmra.mrb[0].mxu0 %v390
        %v1222 = vpop.f32.mrb[0].mxu0
        %v1223 = vadd.f32 0.0, %v1222
        %v1224 = vpop.f32.mrb[0].mxu0
        %1225 = vmatprep.mubr.f32.mxu0 0.0
        %1226 = vmatmul.mubr.f32.gmra.mrb[0].mxu0 %v391
        %v1227 = vpop.f32.mrb[0].mxu0
        %v1228 = vadd.f32 0.0, %v1227
        %v1229 = vpop.f32.mrb[0].mxu0
        %1230 = vmatprep.mubr.f32.mxu0 0.0
        %1231 = vmatmul.mubr.f32.gmra.mrb[0].mxu0 %v392
        %v1232 = vpop.f32.mrb[0].mxu0
        %v1233 = vadd.f32 0.0, %v1232
        %v1234 = vpop.f32.mrb[0].mxu0
        %1235 = vdwg.mxu0
        %v1236 = vadd.f32 %v706, %v1098
        %v1237 = vadd.f32 %v711, %v1103
        %v1238 = vadd.f32 %v716, %v1108
        %v1239 = vadd.f32 %v721, %v1113
        %v1240 = vadd.f32 %v726, %v1118
        %v1241 = vadd.f32 %v731, %v1123
        %v1242 = vadd.f32 %v736, %v1128
        %v1243 = vadd.f32 %v741, %v1133
        %v1244 = vadd.f32 %v746, %v1138
        %v1245 = vadd.f32 %v751, %v1143
        %v1246 = vadd.f32 %v756, %v1148
        %v1247 = vadd.f32 %v761, %v1153
        %v1248 = vadd.f32 %v766, %v1158
        %v1249 = vadd.f32 %v771, %v1163
        %v1250 = vadd.f32 %v776, %v1168
        %v1251 = vadd.f32 %v781, %v1173
        %v1252 = vadd.f32 %v786, %v1178
        %v1253 = vadd.f32 %v791, %v1183
        %v1254 = vadd.f32 %v796, %v1188
        %v1255 = vadd.f32 %v801, %v1193
        %v1256 = vadd.f32 %v806, %v1198
        %v1257 = vadd.f32 %v811, %v1203
        %v1258 = vadd.f32 %v816, %v1208
        %v1259 = vadd.f32 %v821, %v1213
        %v1260 = vadd.f32 %v826, %v1218
        %v1261 = vadd.f32 %v831, %v1223
        %v1262 = vadd.f32 %v836, %v1228
        %v1263 = vadd.f32 %v841, %v1233
        %1264 = vmatprep.subr.mxu0 0.0
        %1265 = vmatpush1.msra.mxu0 %v1015
        %1266 = vmatprep.subr.mxu0 0.0
        %1267 = vmatpush1.msra.mxu0 %v1016
        %1268 = vmatprep.subr.mxu0 0.0
        %1269 = vmatpush1.msra.mxu0 %v1017
        %1270 = vmatprep.subr.mxu0 0.0
        %1271 = vmatpush1.msra.mxu0 %v1018
        %1272 = vmatprep.subr.mxu0 0.0
        %1273 = vmatpush1.msra.mxu0 %v1019
        %1274 = vmatprep.subr.mxu0 0.0
        %1275 = vmatpush1.msra.mxu0 %v1020
        %1276 = vmatprep.subr.mxu0 0.0
        %1277 = vmatpush1.msra.mxu0 %v1021
        %1278 = vmatprep.subr.mxu0 0.0
        %1279 = vmatpush1.msra.mxu0 %v1022
        %1280 = vmatprep.subr.mxu0 0.0
        %1281 = vmatpush1.msra.mxu0 %v1023
        %1282 = vmatprep.subr.mxu0 0.0
        %1283 = vmatpush1.msra.mxu0 %v1024
        %1284 = vmatprep.subr.mxu0 0.0
        %1285 = vmatpush1.msra.mxu0 %v1025
        %1286 = vmatprep.subr.mxu0 0.0
        %1287 = vmatpush1.msra.mxu0 %v1026
        %1288 = vmatprep.subr.mxu0 0.0
        %1289 = vmatpush1.msra.mxu0 %v1027
        %1290 = vmatprep.subr.mxu0 0.0
        %1291 = vmatpush1.msra.mxu0 %v1028
        %1292 = vmatprep.subr.mxu0 0.0
        %1293 = vmatpush1.msra.mxu0 %v1029
        %1294 = vmatprep.subr.mxu0 0.0
        %1295 = vmatpush1.msra.mxu0 %v1030
        %1296 = vmatprep.subr.mxu0 0.0
        %1297 = vmatpush1.msra.mxu0 0.0
        %1298 = vmatprep.subr.mxu0 0.0
        %1299 = vmatpush1.msra.mxu0 0.0
        %1300 = vmatprep.subr.mxu0 0.0
        %1301 = vmatpush1.msra.mxu0 0.0
        %1302 = vmatprep.subr.mxu0 0.0
        %1303 = vmatpush1.msra.mxu0 0.0
        %1304 = vmatprep.subr.mxu0 0.0
        %1305 = vmatpush1.msra.mxu0 0.0
        %1306 = vmatprep.subr.mxu0 0.0
        %1307 = vmatpush1.msra.mxu0 0.0
        %1308 = vmatprep.subr.mxu0 0.0
        %1309 = vmatpush1.msra.mxu0 0.0
        %1310 = vmatprep.subr.mxu0 0.0
        %1311 = vmatpush1.msra.mxu0 0.0
        %1312 = vmatprep.subr.mxu0 0.0
        %1313 = vmatpush1.msra.mxu0 0.0
        %1314 = vmatprep.subr.mxu0 0.0
        %1315 = vmatpush1.msra.mxu0 0.0
        %1316 = vmatprep.subr.mxu0 0.0
        %1317 = vmatpush1.msra.mxu0 0.0
        %1318 = vmatprep.subr.mxu0 0.0
        %1319 = vmatpush1.msra.mxu0 0.0
        %1320 = vmatprep.subr.mxu0 0.0
        %1321 = vmatpush1.msra.mxu0 0.0
        %1322 = vmatprep.subr.mxu0 0.0
        %1323 = vmatpush1.msra.mxu0 0.0
        %1324 = vmatprep.subr.mxu0 0.0
        %1325 = vmatpush1.msra.mxu0 0.0
        %1326 = vmatprep.subr.mxu0 0.0
        %1327 = vmatpush1.msra.mxu0 0.0
        %1328 = vmatprep.mubr.f32.mxu0 0.0
        %1329 = vmatmul.mubr.f32.gmra.mrb[0].mxu0 %v397
        %v1330 = vpop.f32.mrb[0].mxu0
        %v1331 = vadd.f32 0.0, %v1330
        %v1332 = vpop.f32.mrb[0].mxu0
        %1333 = vmatprep.mubr.f32.mxu0 0.0
        %1334 = vmatmul.mubr.f32.gmra.mrb[0].mxu0 %v398
        %v1335 = vpop.f32.mrb[0].mxu0
        %v1336 = vadd.f32 0.0, %v1335
        %v1337 = vpop.f32.mrb[0].mxu0
        %1338 = vmatprep.mubr.f32.mxu0 0.0
        %1339 = vmatmul.mubr.f32.gmra.mrb[0].mxu0 %v399
        %v1340 = vpop.f32.mrb[0].mxu0
        %v1341 = vadd.f32 0.0, %v1340
        %v1342 = vpop.f32.mrb[0].mxu0
        %1343 = vmatprep.mubr.f32.mxu0 0.0
        %1344 = vmatmul.mubr.f32.gmra.mrb[0].mxu0 %v400
        %v1345 = vpop.f32.mrb[0].mxu0
        %v1346 = vadd.f32 0.0, %v1345
        %v1347 = vpop.f32.mrb[0].mxu0
        %1348 = vdwg.mxu0
        %v1349 = vadd.f32 %v996, %v1331
        %v1350 = vadd.f32 %v1001, %v1336
        %v1351 = vadd.f32 %v1006, %v1341
        %v1352 = vadd.f32 %v1011, %v1346
        %v1353 = vld [vmem:[%s312 + $0x1] sm:$0xff]
        %v1354 = vld [vmem:[%s312 + $0x9] sm:$0xff]
        %v1355 = vld [vmem:[%s312 + $0x19] sm:$0xff]
        %v1356 = vld [vmem:[%s312 + $0x21] sm:$0xff]
        %v1357 = vld [vmem:[%s312 + $0x31] sm:$0xff]
        %v1358 = vld [vmem:[%s312 + $0x39] sm:$0xff]
        %v1359 = vld [vmem:[%s312 + $0x49] sm:$0xff]
        %v1360 = vld [vmem:[%s312 + $0x51] sm:$0xff]
        %v1361 = vld [vmem:[%s312 + $0x61] sm:$0xff]
        %v1362 = vld [vmem:[%s312 + $0x69] sm:$0xff]
        %v1363 = vld [vmem:[%s312 + $0x79] sm:$0xff]
        %v1364 = vld [vmem:[%s312 + $0x81] sm:$0xff]
        %v1365 = vld [vmem:[%s312 + $0x91] sm:$0xff]
        %v1366 = vld [vmem:[%s312 + $0x99] sm:$0xff]
        %v1367 = vld [vmem:[%s312 + $0xa9] sm:$0xff]
        %v1368 = vld [vmem:[%s312 + $0xb1] sm:$0xff]
        %v1369 = vld [vmem:[%s312 + $0xc1] sm:$0xff]
        %v1370 = vld [vmem:[%s312 + $0xc9] sm:$0xff]
        %v1371 = vld [vmem:[%s312 + $0xd9] sm:$0xff]
        %v1372 = vld [vmem:[%s312 + $0xe1] sm:$0xff]
        %v1373 = vld [vmem:[%s312 + $0xf1] sm:$0xff]
        %v1374 = vld [vmem:[%s312 + $0xf9] sm:$0xff]
        %v1375 = vld [vmem:[%s312 + $0x109] sm:$0xff]
        %v1376 = vld [vmem:[%s312 + $0x111] sm:$0xff]
        %v1377 = vld [vmem:[%s312 + $0x121] sm:$0xff]
        %v1378 = vld [vmem:[%s312 + $0x129] sm:$0xff]
        %v1379 = vld [vmem:[%s312 + $0x139] sm:$0xff]
        %v1380 = vld [vmem:[%s312 + $0x141] sm:$0xff]
        %v1381 = vld [vmem:[%s312 + $0x151] sm:$0xff]
        %v1382 = vld [vmem:[%s312 + $0x159] sm:$0xff]
        %v1383 = vld [vmem:[%s312 + $0x169] sm:$0xff]
        %v1384 = vld [vmem:[%s312 + $0x171] sm:$0xff]
        %v1385 = vld [vmem:[#allocation2 + $0x1] sm:$0xff]
        %v1386 = vld [vmem:[#allocation2 + $0x9] sm:$0xff]
        %v1387 = vld [vmem:[#allocation2 + $0x19] sm:$0xff]
        %v1388 = vld [vmem:[#allocation2 + $0x21] sm:$0xff]
        %v1389 = vld [vmem:[#allocation2 + $0x31] sm:$0xff]
        %v1390 = vld [vmem:[#allocation2 + $0x39] sm:$0xff]
        %v1391 = vld [vmem:[#allocation2 + $0x49] sm:$0xff]
        %v1392 = vld [vmem:[#allocation2 + $0x51] sm:$0xff]
        %s1393 = scalar_lea.vmem %s2, 128
        %v1394 = vld [vmem:[%s1393] sm:$0xff]
        %v1395 = vld [vmem:[%s1393 + $0x8] sm:$0xff]
        %v1396 = vld [vmem:[%s1393 + $0x10] sm:$0xff]
        %v1397 = vld [vmem:[%s1393 + $0x18] sm:$0xff]
        %v1398 = vld [vmem:[%s1393 + $0x20] sm:$0xff]
        %v1399 = vld [vmem:[%s1393 + $0x28] sm:$0xff]
        %v1400 = vld [vmem:[%s1393 + $0x30] sm:$0xff]
        %v1401 = vld [vmem:[%s1393 + $0x38] sm:$0xff]
        %v1402 = vld [vmem:[%s1393 + $0x40] sm:$0xff]
        %v1403 = vld [vmem:[%s1393 + $0x48] sm:$0xff]
        %v1404 = vld [vmem:[%s1393 + $0x50] sm:$0xff]
        %v1405 = vld [vmem:[%s1393 + $0x58] sm:$0xff]
        %v1406 = vld [vmem:[%s1393 + $0x60] sm:$0xff]
        %v1407 = vld [vmem:[%s1393 + $0x68] sm:$0xff]
        %v1408 = vld [vmem:[%s1393 + $0x70] sm:$0xff]
        %v1409 = vld [vmem:[%s1393 + $0x78] sm:$0xff]
        %1410 = vmatprep.subr.mxu0 0.0
        %1411 = vmatpush1.msra.mxu0 %v1394
        %1412 = vmatprep.subr.mxu0 0.0
        %1413 = vmatpush1.msra.mxu0 %v1395
        %1414 = vmatprep.subr.mxu0 0.0
        %1415 = vmatpush1.msra.mxu0 %v1396
        %1416 = vmatprep.subr.mxu0 0.0
        %1417 = vmatpush1.msra.mxu0 %v1397
        %1418 = vmatprep.subr.mxu0 0.0
        %1419 = vmatpush1.msra.mxu0 %v1398
        %1420 = vmatprep.subr.mxu0 0.0
        %1421 = vmatpush1.msra.mxu0 %v1399
        %1422 = vmatprep.subr.mxu0 0.0
        %1423 = vmatpush1.msra.mxu0 %v1400
        %1424 = vmatprep.subr.mxu0 0.0
        %1425 = vmatpush1.msra.mxu0 %v1401
        %1426 = vmatprep.subr.mxu0 0.0
        %1427 = vmatpush1.msra.mxu0 %v1402
        %1428 = vmatprep.subr.mxu0 0.0
        %1429 = vmatpush1.msra.mxu0 %v1403
        %1430 = vmatprep.subr.mxu0 0.0
        %1431 = vmatpush1.msra.mxu0 %v1404
        %1432 = vmatprep.subr.mxu0 0.0
        %1433 = vmatpush1.msra.mxu0 %v1405
        %1434 = vmatprep.subr.mxu0 0.0
        %1435 = vmatpush1.msra.mxu0 %v1406
        %1436 = vmatprep.subr.mxu0 0.0
        %1437 = vmatpush1.msra.mxu0 %v1407
        %1438 = vmatprep.subr.mxu0 0.0
        %1439 = vmatpush1.msra.mxu0 %v1408
        %1440 = vmatprep.subr.mxu0 0.0
        %1441 = vmatpush1.msra.mxu0 %v1409
        %1442 = vmatprep.subr.mxu0 0.0
        %1443 = vmatpush1.msra.mxu0 0.0
        %1444 = vmatprep.subr.mxu0 0.0
        %1445 = vmatpush1.msra.mxu0 0.0
        %1446 = vmatprep.subr.mxu0 0.0
        %1447 = vmatpush1.msra.mxu0 0.0
        %1448 = vmatprep.subr.mxu0 0.0
        %1449 = vmatpush1.msra.mxu0 0.0
        %1450 = vmatprep.subr.mxu0 0.0
        %1451 = vmatpush1.msra.mxu0 0.0
        %1452 = vmatprep.subr.mxu0 0.0
        %1453 = vmatpush1.msra.mxu0 0.0
        %1454 = vmatprep.subr.mxu0 0.0
        %1455 = vmatpush1.msra.mxu0 0.0
        %1456 = vmatprep.subr.mxu0 0.0
        %1457 = vmatpush1.msra.mxu0 0.0
        %1458 = vmatprep.subr.mxu0 0.0
        %1459 = vmatpush1.msra.mxu0 0.0
        %1460 = vmatprep.subr.mxu0 0.0
        %1461 = vmatpush1.msra.mxu0 0.0
        %1462 = vmatprep.subr.mxu0 0.0
        %1463 = vmatpush1.msra.mxu0 0.0
        %1464 = vmatprep.subr.mxu0 0.0
        %1465 = vmatpush1.msra.mxu0 0.0
        %1466 = vmatprep.subr.mxu0 0.0
        %1467 = vmatpush1.msra.mxu0 0.0
        %1468 = vmatprep.subr.mxu0 0.0
        %1469 = vmatpush1.msra.mxu0 0.0
        %1470 = vmatprep.subr.mxu0 0.0
        %1471 = vmatpush1.msra.mxu0 0.0
        %1472 = vmatprep.subr.mxu0 0.0
        %1473 = vmatpush1.msra.mxu0 0.0
        %1474 = vmatprep.mubr.f32.mxu0 0.0
        %1475 = vmatmul.mubr.f32.gmra.mrb[0].mxu0 %v1353
        %v1476 = vpop.f32.mrb[0].mxu0
        %v1477 = vadd.f32 0.0, %v1476
        %v1478 = vpop.f32.mrb[0].mxu0
        %1479 = vmatprep.mubr.f32.mxu0 0.0
        %1480 = vmatmul.mubr.f32.gmra.mrb[0].mxu0 %v1354
        %v1481 = vpop.f32.mrb[0].mxu0
        %v1482 = vadd.f32 0.0, %v1481
        %v1483 = vpop.f32.mrb[0].mxu0
        %1484 = vmatprep.mubr.f32.mxu0 0.0
        %1485 = vmatmul.mubr.f32.gmra.mrb[0].mxu0 %v1355
        %v1486 = vpop.f32.mrb[0].mxu0
        %v1487 = vadd.f32 0.0, %v1486
        %v1488 = vpop.f32.mrb[0].mxu0
        %1489 = vmatprep.mubr.f32.mxu0 0.0
        %1490 = vmatmul.mubr.f32.gmra.mrb[0].mxu0 %v1356
        %v1491 = vpop.f32.mrb[0].mxu0
        %v1492 = vadd.f32 0.0, %v1491
        %v1493 = vpop.f32.mrb[0].mxu0
        %1494 = vmatprep.mubr.f32.mxu0 0.0
        %1495 = vmatmul.mubr.f32.gmra.mrb[0].mxu0 %v1357
        %v1496 = vpop.f32.mrb[0].mxu0
        %v1497 = vadd.f32 0.0, %v1496
        %v1498 = vpop.f32.mrb[0].mxu0
        %1499 = vmatprep.mubr.f32.mxu0 0.0
        %1500 = vmatmul.mubr.f32.gmra.mrb[0].mxu0 %v1358
        %v1501 = vpop.f32.mrb[0].mxu0
        %v1502 = vadd.f32 0.0, %v1501
        %v1503 = vpop.f32.mrb[0].mxu0
        %1504 = vmatprep.mubr.f32.mxu0 0.0
        %1505 = vmatmul.mubr.f32.gmra.mrb[0].mxu0 %v1359
        %v1506 = vpop.f32.mrb[0].mxu0
        %v1507 = vadd.f32 0.0, %v1506
        %v1508 = vpop.f32.mrb[0].mxu0
        %1509 = vmatprep.mubr.f32.mxu0 0.0
        %1510 = vmatmul.mubr.f32.gmra.mrb[0].mxu0 %v1360
        %v1511 = vpop.f32.mrb[0].mxu0
        %v1512 = vadd.f32 0.0, %v1511
        %v1513 = vpop.f32.mrb[0].mxu0
        %1514 = vmatprep.mubr.f32.mxu0 0.0
        %1515 = vmatmul.mubr.f32.gmra.mrb[0].mxu0 %v1361
        %v1516 = vpop.f32.mrb[0].mxu0
        %v1517 = vadd.f32 0.0, %v1516
        %v1518 = vpop.f32.mrb[0].mxu0
        %1519 = vmatprep.mubr.f32.mxu0 0.0
        %1520 = vmatmul.mubr.f32.gmra.mrb[0].mxu0 %v1362
        %v1521 = vpop.f32.mrb[0].mxu0
        %v1522 = vadd.f32 0.0, %v1521
        %v1523 = vpop.f32.mrb[0].mxu0
        %1524 = vmatprep.mubr.f32.mxu0 0.0
        %1525 = vmatmul.mubr.f32.gmra.mrb[0].mxu0 %v1363
        %v1526 = vpop.f32.mrb[0].mxu0
        %v1527 = vadd.f32 0.0, %v1526
        %v1528 = vpop.f32.mrb[0].mxu0
        %1529 = vmatprep.mubr.f32.mxu0 0.0
        %1530 = vmatmul.mubr.f32.gmra.mrb[0].mxu0 %v1364
        %v1531 = vpop.f32.mrb[0].mxu0
        %v1532 = vadd.f32 0.0, %v1531
        %v1533 = vpop.f32.mrb[0].mxu0
        %1534 = vmatprep.mubr.f32.mxu0 0.0
        %1535 = vmatmul.mubr.f32.gmra.mrb[0].mxu0 %v1365
        %v1536 = vpop.f32.mrb[0].mxu0
        %v1537 = vadd.f32 0.0, %v1536
        %v1538 = vpop.f32.mrb[0].mxu0
        %1539 = vmatprep.mubr.f32.mxu0 0.0
        %1540 = vmatmul.mubr.f32.gmra.mrb[0].mxu0 %v1366
        %v1541 = vpop.f32.mrb[0].mxu0
        %v1542 = vadd.f32 0.0, %v1541
        %v1543 = vpop.f32.mrb[0].mxu0
        %1544 = vmatprep.mubr.f32.mxu0 0.0
        %1545 = vmatmul.mubr.f32.gmra.mrb[0].mxu0 %v1367
        %v1546 = vpop.f32.mrb[0].mxu0
        %v1547 = vadd.f32 0.0, %v1546
        %v1548 = vpop.f32.mrb[0].mxu0
        %1549 = vmatprep.mubr.f32.mxu0 0.0
        %1550 = vmatmul.mubr.f32.gmra.mrb[0].mxu0 %v1368
        %v1551 = vpop.f32.mrb[0].mxu0
        %v1552 = vadd.f32 0.0, %v1551
        %v1553 = vpop.f32.mrb[0].mxu0
        %1554 = vmatprep.mubr.f32.mxu0 0.0
        %1555 = vmatmul.mubr.f32.gmra.mrb[0].mxu0 %v1369
        %v1556 = vpop.f32.mrb[0].mxu0
        %v1557 = vadd.f32 0.0, %v1556
        %v1558 = vpop.f32.mrb[0].mxu0
        %1559 = vmatprep.mubr.f32.mxu0 0.0
        %1560 = vmatmul.mubr.f32.gmra.mrb[0].mxu0 %v1370
        %v1561 = vpop.f32.mrb[0].mxu0
        %v1562 = vadd.f32 0.0, %v1561
        %v1563 = vpop.f32.mrb[0].mxu0
        %1564 = vmatprep.mubr.f32.mxu0 0.0
        %1565 = vmatmul.mubr.f32.gmra.mrb[0].mxu0 %v1371
        %v1566 = vpop.f32.mrb[0].mxu0
        %v1567 = vadd.f32 0.0, %v1566
        %v1568 = vpop.f32.mrb[0].mxu0
        %1569 = vmatprep.mubr.f32.mxu0 0.0
        %1570 = vmatmul.mubr.f32.gmra.mrb[0].mxu0 %v1372
        %v1571 = vpop.f32.mrb[0].mxu0
        %v1572 = vadd.f32 0.0, %v1571
        %v1573 = vpop.f32.mrb[0].mxu0
        %1574 = vmatprep.mubr.f32.mxu0 0.0
        %1575 = vmatmul.mubr.f32.gmra.mrb[0].mxu0 %v1373
        %v1576 = vpop.f32.mrb[0].mxu0
        %v1577 = vadd.f32 0.0, %v1576
        %v1578 = vpop.f32.mrb[0].mxu0
        %1579 = vmatprep.mubr.f32.mxu0 0.0
        %1580 = vmatmul.mubr.f32.gmra.mrb[0].mxu0 %v1374
        %v1581 = vpop.f32.mrb[0].mxu0
        %v1582 = vadd.f32 0.0, %v1581
        %v1583 = vpop.f32.mrb[0].mxu0
        %1584 = vmatprep.mubr.f32.mxu0 0.0
        %1585 = vmatmul.mubr.f32.gmra.mrb[0].mxu0 %v1375
        %v1586 = vpop.f32.mrb[0].mxu0
        %v1587 = vadd.f32 0.0, %v1586
        %v1588 = vpop.f32.mrb[0].mxu0
        %1589 = vmatprep.mubr.f32.mxu0 0.0
        %1590 = vmatmul.mubr.f32.gmra.mrb[0].mxu0 %v1376
        %v1591 = vpop.f32.mrb[0].mxu0
        %v1592 = vadd.f32 0.0, %v1591
        %v1593 = vpop.f32.mrb[0].mxu0
        %1594 = vmatprep.mubr.f32.mxu0 0.0
        %1595 = vmatmul.mubr.f32.gmra.mrb[0].mxu0 %v1377
        %v1596 = vpop.f32.mrb[0].mxu0
        %v1597 = vadd.f32 0.0, %v1596
        %v1598 = vpop.f32.mrb[0].mxu0
        %1599 = vmatprep.mubr.f32.mxu0 0.0
        %1600 = vmatmul.mubr.f32.gmra.mrb[0].mxu0 %v1378
        %v1601 = vpop.f32.mrb[0].mxu0
        %v1602 = vadd.f32 0.0, %v1601
        %v1603 = vpop.f32.mrb[0].mxu0
        %1604 = vmatprep.mubr.f32.mxu0 0.0
        %1605 = vmatmul.mubr.f32.gmra.mrb[0].mxu0 %v1379
        %v1606 = vpop.f32.mrb[0].mxu0
        %v1607 = vadd.f32 0.0, %v1606
        %v1608 = vpop.f32.mrb[0].mxu0
        %1609 = vmatprep.mubr.f32.mxu0 0.0
        %1610 = vmatmul.mubr.f32.gmra.mrb[0].mxu0 %v1380
        %v1611 = vpop.f32.mrb[0].mxu0
        %v1612 = vadd.f32 0.0, %v1611
        %v1613 = vpop.f32.mrb[0].mxu0
        %1614 = vdwg.mxu0
        %v1615 = vadd.f32 %v1236, %v1477
        %v1616 = vadd.f32 %v1237, %v1482
        %v1617 = vadd.f32 %v1238, %v1487
        %v1618 = vadd.f32 %v1239, %v1492
        %v1619 = vadd.f32 %v1240, %v1497
        %v1620 = vadd.f32 %v1241, %v1502
        %v1621 = vadd.f32 %v1242, %v1507
        %v1622 = vadd.f32 %v1243, %v1512
        %v1623 = vadd.f32 %v1244, %v1517
        %v1624 = vadd.f32 %v1245, %v1522
        %v1625 = vadd.f32 %v1246, %v1527
        %v1626 = vadd.f32 %v1247, %v1532
        %v1627 = vadd.f32 %v1248, %v1537
        %v1628 = vadd.f32 %v1249, %v1542
        %v1629 = vadd.f32 %v1250, %v1547
        %v1630 = vadd.f32 %v1251, %v1552
        %v1631 = vadd.f32 %v1252, %v1557
        %v1632 = vadd.f32 %v1253, %v1562
        %v1633 = vadd.f32 %v1254, %v1567
        %v1634 = vadd.f32 %v1255, %v1572
        %v1635 = vadd.f32 %v1256, %v1577
        %v1636 = vadd.f32 %v1257, %v1582
        %v1637 = vadd.f32 %v1258, %v1587
        %v1638 = vadd.f32 %v1259, %v1592
        %v1639 = vadd.f32 %v1260, %v1597
        %v1640 = vadd.f32 %v1261, %v1602
        %v1641 = vadd.f32 %v1262, %v1607
        %v1642 = vadd.f32 %v1263, %v1612
        %1643 = vmatprep.subr.mxu0 0.0
        %1644 = vmatpush1.msra.mxu0 %v1394
        %1645 = vmatprep.subr.mxu0 0.0
        %1646 = vmatpush1.msra.mxu0 %v1395
        %1647 = vmatprep.subr.mxu0 0.0
        %1648 = vmatpush1.msra.mxu0 %v1396
        %1649 = vmatprep.subr.mxu0 0.0
        %1650 = vmatpush1.msra.mxu0 %v1397
        %1651 = vmatprep.subr.mxu0 0.0
        %1652 = vmatpush1.msra.mxu0 %v1398
        %1653 = vmatprep.subr.mxu0 0.0
        %1654 = vmatpush1.msra.mxu0 %v1399
        %1655 = vmatprep.subr.mxu0 0.0
        %1656 = vmatpush1.msra.mxu0 %v1400
        %1657 = vmatprep.subr.mxu0 0.0
        %1658 = vmatpush1.msra.mxu0 %v1401
        %1659 = vmatprep.subr.mxu0 0.0
        %1660 = vmatpush1.msra.mxu0 %v1402
        %1661 = vmatprep.subr.mxu0 0.0
        %1662 = vmatpush1.msra.mxu0 %v1403
        %1663 = vmatprep.subr.mxu0 0.0
        %1664 = vmatpush1.msra.mxu0 %v1404
        %1665 = vmatprep.subr.mxu0 0.0
        %1666 = vmatpush1.msra.mxu0 %v1405
        %1667 = vmatprep.subr.mxu0 0.0
        %1668 = vmatpush1.msra.mxu0 %v1406
        %1669 = vmatprep.subr.mxu0 0.0
        %1670 = vmatpush1.msra.mxu0 %v1407
        %1671 = vmatprep.subr.mxu0 0.0
        %1672 = vmatpush1.msra.mxu0 %v1408
        %1673 = vmatprep.subr.mxu0 0.0
        %1674 = vmatpush1.msra.mxu0 %v1409
        %1675 = vmatprep.subr.mxu0 0.0
        %1676 = vmatpush1.msra.mxu0 0.0
        %1677 = vmatprep.subr.mxu0 0.0
        %1678 = vmatpush1.msra.mxu0 0.0
        %1679 = vmatprep.subr.mxu0 0.0
        %1680 = vmatpush1.msra.mxu0 0.0
        %1681 = vmatprep.subr.mxu0 0.0
        %1682 = vmatpush1.msra.mxu0 0.0
        %1683 = vmatprep.subr.mxu0 0.0
        %1684 = vmatpush1.msra.mxu0 0.0
        %1685 = vmatprep.subr.mxu0 0.0
        %1686 = vmatpush1.msra.mxu0 0.0
        %1687 = vmatprep.subr.mxu0 0.0
        %1688 = vmatpush1.msra.mxu0 0.0
        %1689 = vmatprep.subr.mxu0 0.0
        %1690 = vmatpush1.msra.mxu0 0.0
        %1691 = vmatprep.subr.mxu0 0.0
        %1692 = vmatpush1.msra.mxu0 0.0
        %1693 = vmatprep.subr.mxu0 0.0
        %1694 = vmatpush1.msra.mxu0 0.0
        %1695 = vmatprep.subr.mxu0 0.0
        %1696 = vmatpush1.msra.mxu0 0.0
        %1697 = vmatprep.subr.mxu0 0.0
        %1698 = vmatpush1.msra.mxu0 0.0
        %1699 = vmatprep.subr.mxu0 0.0
        %1700 = vmatpush1.msra.mxu0 0.0
        %1701 = vmatprep.subr.mxu0 0.0
        %1702 = vmatpush1.msra.mxu0 0.0
        %1703 = vmatprep.subr.mxu0 0.0
        %1704 = vmatpush1.msra.mxu0 0.0
        %1705 = vmatprep.subr.mxu0 0.0
        %1706 = vmatpush1.msra.mxu0 0.0
        %1707 = vmatprep.mubr.f32.mxu0 0.0
        %1708 = vmatmul.mubr.f32.gmra.mrb[0].mxu0 %v1385
        %v1709 = vpop.f32.mrb[0].mxu0
        %v1710 = vadd.f32 0.0, %v1709
        %v1711 = vpop.f32.mrb[0].mxu0
        %1712 = vmatprep.mubr.f32.mxu0 0.0
        %1713 = vmatmul.mubr.f32.gmra.mrb[0].mxu0 %v1386
        %v1714 = vpop.f32.mrb[0].mxu0
        %v1715 = vadd.f32 0.0, %v1714
        %v1716 = vpop.f32.mrb[0].mxu0
        %1717 = vmatprep.mubr.f32.mxu0 0.0
        %1718 = vmatmul.mubr.f32.gmra.mrb[0].mxu0 %v1387
        %v1719 = vpop.f32.mrb[0].mxu0
        %v1720 = vadd.f32 0.0, %v1719
        %v1721 = vpop.f32.mrb[0].mxu0
        %1722 = vmatprep.mubr.f32.mxu0 0.0
        %1723 = vmatmul.mubr.f32.gmra.mrb[0].mxu0 %v1388
        %v1724 = vpop.f32.mrb[0].mxu0
        %v1725 = vadd.f32 0.0, %v1724
        %v1726 = vpop.f32.mrb[0].mxu0
        %1727 = vdwg.mxu0
        %v1728 = vadd.f32 %v1349, %v1710
        %v1729 = vadd.f32 %v1350, %v1715
        %v1730 = vadd.f32 %v1351, %v1720
        %v1731 = vadd.f32 %v1352, %v1725
        %s1732 = scalar_lea.vmem %s2, 512
        %v1733 = vld [vmem:[%s1732] sm:$0xff]
        %v1734 = vld [vmem:[%s1732 + $0x8] sm:$0xff]
        %v1735 = vld [vmem:[%s1732 + $0x10] sm:$0xff]
        %v1736 = vld [vmem:[%s1732 + $0x18] sm:$0xff]
        %v1737 = vld [vmem:[%s1732 + $0x20] sm:$0xff]
        %v1738 = vld [vmem:[%s1732 + $0x28] sm:$0xff]
        %v1739 = vld [vmem:[%s1732 + $0x30] sm:$0xff]
        %v1740 = vld [vmem:[%s1732 + $0x38] sm:$0xff]
        %v1741 = vld [vmem:[%s1732 + $0x40] sm:$0xff]
        %v1742 = vld [vmem:[%s1732 + $0x48] sm:$0xff]
        %v1743 = vld [vmem:[%s1732 + $0x50] sm:$0xff]
        %v1744 = vld [vmem:[%s1732 + $0x58] sm:$0xff]
        %v1745 = vld [vmem:[%s1732 + $0x60] sm:$0xff]
        %v1746 = vld [vmem:[%s1732 + $0x68] sm:$0xff]
        %v1747 = vld [vmem:[%s1732 + $0x70] sm:$0xff]
        %v1748 = vld [vmem:[%s1732 + $0x78] sm:$0xff]
        %1749 = vmatprep.subr.mxu0 0.0
        %1750 = vmatpush1.msra.mxu0 %v1733
        %1751 = vmatprep.subr.mxu0 0.0
        %1752 = vmatpush1.msra.mxu0 %v1734
        %1753 = vmatprep.subr.mxu0 0.0
        %1754 = vmatpush1.msra.mxu0 %v1735
        %1755 = vmatprep.subr.mxu0 0.0
        %1756 = vmatpush1.msra.mxu0 %v1736
        %1757 = vmatprep.subr.mxu0 0.0
        %1758 = vmatpush1.msra.mxu0 %v1737
        %1759 = vmatprep.subr.mxu0 0.0
        %1760 = vmatpush1.msra.mxu0 %v1738
        %1761 = vmatprep.subr.mxu0 0.0
        %1762 = vmatpush1.msra.mxu0 %v1739
        %1763 = vmatprep.subr.mxu0 0.0
        %1764 = vmatpush1.msra.mxu0 %v1740
        %1765 = vmatprep.subr.mxu0 0.0
        %1766 = vmatpush1.msra.mxu0 %v1741
        %1767 = vmatprep.subr.mxu0 0.0
        %1768 = vmatpush1.msra.mxu0 %v1742
        %1769 = vmatprep.subr.mxu0 0.0
        %1770 = vmatpush1.msra.mxu0 %v1743
        %1771 = vmatprep.subr.mxu0 0.0
        %1772 = vmatpush1.msra.mxu0 %v1744
        %1773 = vmatprep.subr.mxu0 0.0
        %1774 = vmatpush1.msra.mxu0 %v1745
        %1775 = vmatprep.subr.mxu0 0.0
        %1776 = vmatpush1.msra.mxu0 %v1746
        %1777 = vmatprep.subr.mxu0 0.0
        %1778 = vmatpush1.msra.mxu0 %v1747
        %1779 = vmatprep.subr.mxu0 0.0
        %1780 = vmatpush1.msra.mxu0 %v1748
        %1781 = vmatprep.subr.mxu0 0.0
        %1782 = vmatpush1.msra.mxu0 0.0
        %1783 = vmatprep.subr.mxu0 0.0
        %1784 = vmatpush1.msra.mxu0 0.0
        %1785 = vmatprep.subr.mxu0 0.0
        %1786 = vmatpush1.msra.mxu0 0.0
        %1787 = vmatprep.subr.mxu0 0.0
        %1788 = vmatpush1.msra.mxu0 0.0
        %1789 = vmatprep.subr.mxu0 0.0
        %1790 = vmatpush1.msra.mxu0 0.0
        %1791 = vmatprep.subr.mxu0 0.0
        %1792 = vmatpush1.msra.mxu0 0.0
        %1793 = vmatprep.subr.mxu0 0.0
        %1794 = vmatpush1.msra.mxu0 0.0
        %1795 = vmatprep.subr.mxu0 0.0
        %1796 = vmatpush1.msra.mxu0 0.0
        %1797 = vmatprep.subr.mxu0 0.0
        %1798 = vmatpush1.msra.mxu0 0.0
        %1799 = vmatprep.subr.mxu0 0.0
        %1800 = vmatpush1.msra.mxu0 0.0
        %1801 = vmatprep.subr.mxu0 0.0
        %1802 = vmatpush1.msra.mxu0 0.0
        %1803 = vmatprep.subr.mxu0 0.0
        %1804 = vmatpush1.msra.mxu0 0.0
        %1805 = vmatprep.subr.mxu0 0.0
        %1806 = vmatpush1.msra.mxu0 0.0
        %1807 = vmatprep.subr.mxu0 0.0
        %1808 = vmatpush1.msra.mxu0 0.0
        %1809 = vmatprep.subr.mxu0 0.0
        %1810 = vmatpush1.msra.mxu0 0.0
        %1811 = vmatprep.subr.mxu0 0.0
        %1812 = vmatpush1.msra.mxu0 0.0
        %1813 = vmatprep.mubr.f32.mxu0 0.0
        %1814 = vmatmul.mubr.f32.gmra.mrb[0].mxu0 %v1355
        %v1815 = vpop.f32.mrb[0].mxu0
        %v1816 = vadd.f32 0.0, %v1815
        %v1817 = vpop.f32.mrb[0].mxu0
        %1818 = vmatprep.mubr.f32.mxu0 0.0
        %1819 = vmatmul.mubr.f32.gmra.mrb[0].mxu0 %v1356
        %v1820 = vpop.f32.mrb[0].mxu0
        %v1821 = vadd.f32 0.0, %v1820
        %v1822 = vpop.f32.mrb[0].mxu0
        %1823 = vmatprep.mubr.f32.mxu0 0.0
        %1824 = vmatmul.mubr.f32.gmra.mrb[0].mxu0 %v1357
        %v1825 = vpop.f32.mrb[0].mxu0
        %v1826 = vadd.f32 0.0, %v1825
        %v1827 = vpop.f32.mrb[0].mxu0
        %1828 = vmatprep.mubr.f32.mxu0 0.0
        %1829 = vmatmul.mubr.f32.gmra.mrb[0].mxu0 %v1358
        %v1830 = vpop.f32.mrb[0].mxu0
        %v1831 = vadd.f32 0.0, %v1830
        %v1832 = vpop.f32.mrb[0].mxu0
        %1833 = vmatprep.mubr.f32.mxu0 0.0
        %1834 = vmatmul.mubr.f32.gmra.mrb[0].mxu0 %v1359
        %v1835 = vpop.f32.mrb[0].mxu0
        %v1836 = vadd.f32 0.0, %v1835
        %v1837 = vpop.f32.mrb[0].mxu0
        %1838 = vmatprep.mubr.f32.mxu0 0.0
        %1839 = vmatmul.mubr.f32.gmra.mrb[0].mxu0 %v1360
        %v1840 = vpop.f32.mrb[0].mxu0
        %v1841 = vadd.f32 0.0, %v1840
        %v1842 = vpop.f32.mrb[0].mxu0
        %1843 = vmatprep.mubr.f32.mxu0 0.0
        %1844 = vmatmul.mubr.f32.gmra.mrb[0].mxu0 %v1361
        %v1845 = vpop.f32.mrb[0].mxu0
        %v1846 = vadd.f32 0.0, %v1845
        %v1847 = vpop.f32.mrb[0].mxu0
        %1848 = vmatprep.mubr.f32.mxu0 0.0
        %1849 = vmatmul.mubr.f32.gmra.mrb[0].mxu0 %v1362
        %v1850 = vpop.f32.mrb[0].mxu0
        %v1851 = vadd.f32 0.0, %v1850
        %v1852 = vpop.f32.mrb[0].mxu0
        %1853 = vmatprep.mubr.f32.mxu0 0.0
        %1854 = vmatmul.mubr.f32.gmra.mrb[0].mxu0 %v1363
        %v1855 = vpop.f32.mrb[0].mxu0
        %v1856 = vadd.f32 0.0, %v1855
        %v1857 = vpop.f32.mrb[0].mxu0
        %1858 = vmatprep.mubr.f32.mxu0 0.0
        %1859 = vmatmul.mubr.f32.gmra.mrb[0].mxu0 %v1364
        %v1860 = vpop.f32.mrb[0].mxu0
        %v1861 = vadd.f32 0.0, %v1860
        %v1862 = vpop.f32.mrb[0].mxu0
        %1863 = vmatprep.mubr.f32.mxu0 0.0
        %1864 = vmatmul.mubr.f32.gmra.mrb[0].mxu0 %v1365
        %v1865 = vpop.f32.mrb[0].mxu0
        %v1866 = vadd.f32 0.0, %v1865
        %v1867 = vpop.f32.mrb[0].mxu0
        %1868 = vmatprep.mubr.f32.mxu0 0.0
        %1869 = vmatmul.mubr.f32.gmra.mrb[0].mxu0 %v1366
        %v1870 = vpop.f32.mrb[0].mxu0
        %v1871 = vadd.f32 0.0, %v1870
        %v1872 = vpop.f32.mrb[0].mxu0
        %1873 = vmatprep.mubr.f32.mxu0 0.0
        %1874 = vmatmul.mubr.f32.gmra.mrb[0].mxu0 %v1367
        %v1875 = vpop.f32.mrb[0].mxu0
        %v1876 = vadd.f32 0.0, %v1875
        %v1877 = vpop.f32.mrb[0].mxu0
        %1878 = vmatprep.mubr.f32.mxu0 0.0
        %1879 = vmatmul.mubr.f32.gmra.mrb[0].mxu0 %v1368
        %v1880 = vpop.f32.mrb[0].mxu0
        %v1881 = vadd.f32 0.0, %v1880
        %v1882 = vpop.f32.mrb[0].mxu0
        %1883 = vmatprep.mubr.f32.mxu0 0.0
        %1884 = vmatmul.mubr.f32.gmra.mrb[0].mxu0 %v1369
        %v1885 = vpop.f32.mrb[0].mxu0
        %v1886 = vadd.f32 0.0, %v1885
        %v1887 = vpop.f32.mrb[0].mxu0
        %1888 = vmatprep.mubr.f32.mxu0 0.0
        %1889 = vmatmul.mubr.f32.gmra.mrb[0].mxu0 %v1370
        %v1890 = vpop.f32.mrb[0].mxu0
        %v1891 = vadd.f32 0.0, %v1890
        %v1892 = vpop.f32.mrb[0].mxu0
        %1893 = vmatprep.mubr.f32.mxu0 0.0
        %1894 = vmatmul.mubr.f32.gmra.mrb[0].mxu0 %v1371
        %v1895 = vpop.f32.mrb[0].mxu0
        %v1896 = vadd.f32 0.0, %v1895
        %v1897 = vpop.f32.mrb[0].mxu0
        %1898 = vmatprep.mubr.f32.mxu0 0.0
        %1899 = vmatmul.mubr.f32.gmra.mrb[0].mxu0 %v1372
        %v1900 = vpop.f32.mrb[0].mxu0
        %v1901 = vadd.f32 0.0, %v1900
        %v1902 = vpop.f32.mrb[0].mxu0
        %1903 = vmatprep.mubr.f32.mxu0 0.0
        %1904 = vmatmul.mubr.f32.gmra.mrb[0].mxu0 %v1373
        %v1905 = vpop.f32.mrb[0].mxu0
        %v1906 = vadd.f32 0.0, %v1905
        %v1907 = vpop.f32.mrb[0].mxu0
        %1908 = vmatprep.mubr.f32.mxu0 0.0
        %1909 = vmatmul.mubr.f32.gmra.mrb[0].mxu0 %v1374
        %v1910 = vpop.f32.mrb[0].mxu0
        %v1911 = vadd.f32 0.0, %v1910
        %v1912 = vpop.f32.mrb[0].mxu0
        %1913 = vmatprep.mubr.f32.mxu0 0.0
        %1914 = vmatmul.mubr.f32.gmra.mrb[0].mxu0 %v1375
        %v1915 = vpop.f32.mrb[0].mxu0
        %v1916 = vadd.f32 0.0, %v1915
        %v1917 = vpop.f32.mrb[0].mxu0
        %1918 = vmatprep.mubr.f32.mxu0 0.0
        %1919 = vmatmul.mubr.f32.gmra.mrb[0].mxu0 %v1376
        %v1920 = vpop.f32.mrb[0].mxu0
        %v1921 = vadd.f32 0.0, %v1920
        %v1922 = vpop.f32.mrb[0].mxu0
        %1923 = vmatprep.mubr.f32.mxu0 0.0
        %1924 = vmatmul.mubr.f32.gmra.mrb[0].mxu0 %v1377
        %v1925 = vpop.f32.mrb[0].mxu0
        %v1926 = vadd.f32 0.0, %v1925
        %v1927 = vpop.f32.mrb[0].mxu0
        %1928 = vmatprep.mubr.f32.mxu0 0.0
        %1929 = vmatmul.mubr.f32.gmra.mrb[0].mxu0 %v1378
        %v1930 = vpop.f32.mrb[0].mxu0
        %v1931 = vadd.f32 0.0, %v1930
        %v1932 = vpop.f32.mrb[0].mxu0
        %1933 = vmatprep.mubr.f32.mxu0 0.0
        %1934 = vmatmul.mubr.f32.gmra.mrb[0].mxu0 %v1379
        %v1935 = vpop.f32.mrb[0].mxu0
        %v1936 = vadd.f32 0.0, %v1935
        %v1937 = vpop.f32.mrb[0].mxu0
        %1938 = vmatprep.mubr.f32.mxu0 0.0
        %1939 = vmatmul.mubr.f32.gmra.mrb[0].mxu0 %v1380
        %v1940 = vpop.f32.mrb[0].mxu0
        %v1941 = vadd.f32 0.0, %v1940
        %v1942 = vpop.f32.mrb[0].mxu0
        %1943 = vmatprep.mubr.f32.mxu0 0.0
        %1944 = vmatmul.mubr.f32.gmra.mrb[0].mxu0 %v1381
        %v1945 = vpop.f32.mrb[0].mxu0
        %v1946 = vadd.f32 0.0, %v1945
        %v1947 = vpop.f32.mrb[0].mxu0
        %1948 = vmatprep.mubr.f32.mxu0 0.0
        %1949 = vmatmul.mubr.f32.gmra.mrb[0].mxu0 %v1382
        %v1950 = vpop.f32.mrb[0].mxu0
        %v1951 = vadd.f32 0.0, %v1950
        %v1952 = vpop.f32.mrb[0].mxu0
        %1953 = vdwg.mxu0
        %v1954 = vadd.f32 %v1615, %v1816
        %v1955 = vadd.f32 %v1616, %v1821
        %v1956 = vadd.f32 %v1617, %v1826
        %v1957 = vadd.f32 %v1618, %v1831
        %v1958 = vadd.f32 %v1619, %v1836
        %v1959 = vadd.f32 %v1620, %v1841
        %v1960 = vadd.f32 %v1621, %v1846
        %v1961 = vadd.f32 %v1622, %v1851
        %v1962 = vadd.f32 %v1623, %v1856
        %v1963 = vadd.f32 %v1624, %v1861
        %v1964 = vadd.f32 %v1625, %v1866
        %v1965 = vadd.f32 %v1626, %v1871
        %v1966 = vadd.f32 %v1627, %v1876
        %v1967 = vadd.f32 %v1628, %v1881
        %v1968 = vadd.f32 %v1629, %v1886
        %v1969 = vadd.f32 %v1630, %v1891
        %v1970 = vadd.f32 %v1631, %v1896
        %v1971 = vadd.f32 %v1632, %v1901
        %v1972 = vadd.f32 %v1633, %v1906
        %v1973 = vadd.f32 %v1634, %v1911
        %v1974 = vadd.f32 %v1635, %v1916
        %v1975 = vadd.f32 %v1636, %v1921
        %v1976 = vadd.f32 %v1637, %v1926
        %v1977 = vadd.f32 %v1638, %v1931
        %v1978 = vadd.f32 %v1639, %v1936
        %v1979 = vadd.f32 %v1640, %v1941
        %v1980 = vadd.f32 %v1641, %v1946
        %v1981 = vadd.f32 %v1642, %v1951
        %1982 = vmatprep.subr.mxu0 0.0
        %1983 = vmatpush1.msra.mxu0 %v1733
        %1984 = vmatprep.subr.mxu0 0.0
        %1985 = vmatpush1.msra.mxu0 %v1734
        %1986 = vmatprep.subr.mxu0 0.0
        %1987 = vmatpush1.msra.mxu0 %v1735
        %1988 = vmatprep.subr.mxu0 0.0
        %1989 = vmatpush1.msra.mxu0 %v1736
        %1990 = vmatprep.subr.mxu0 0.0
        %1991 = vmatpush1.msra.mxu0 %v1737
        %1992 = vmatprep.subr.mxu0 0.0
        %1993 = vmatpush1.msra.mxu0 %v1738
        %1994 = vmatprep.subr.mxu0 0.0
        %1995 = vmatpush1.msra.mxu0 %v1739
        %1996 = vmatprep.subr.mxu0 0.0
        %1997 = vmatpush1.msra.mxu0 %v1740
        %1998 = vmatprep.subr.mxu0 0.0
        %1999 = vmatpush1.msra.mxu0 %v1741
        %2000 = vmatprep.subr.mxu0 0.0
        %2001 = vmatpush1.msra.mxu0 %v1742
        %2002 = vmatprep.subr.mxu0 0.0
        %2003 = vmatpush1.msra.mxu0 %v1743
        %2004 = vmatprep.subr.mxu0 0.0
        %2005 = vmatpush1.msra.mxu0 %v1744
        %2006 = vmatprep.subr.mxu0 0.0
        %2007 = vmatpush1.msra.mxu0 %v1745
        %2008 = vmatprep.subr.mxu0 0.0
        %2009 = vmatpush1.msra.mxu0 %v1746
        %2010 = vmatprep.subr.mxu0 0.0
        %2011 = vmatpush1.msra.mxu0 %v1747
        %2012 = vmatprep.subr.mxu0 0.0
        %2013 = vmatpush1.msra.mxu0 %v1748
        %2014 = vmatprep.subr.mxu0 0.0
        %2015 = vmatpush1.msra.mxu0 0.0
        %2016 = vmatprep.subr.mxu0 0.0
        %2017 = vmatpush1.msra.mxu0 0.0
        %2018 = vmatprep.subr.mxu0 0.0
        %2019 = vmatpush1.msra.mxu0 0.0
        %2020 = vmatprep.subr.mxu0 0.0
        %2021 = vmatpush1.msra.mxu0 0.0
        %2022 = vmatprep.subr.mxu0 0.0
        %2023 = vmatpush1.msra.mxu0 0.0
        %2024 = vmatprep.subr.mxu0 0.0
        %2025 = vmatpush1.msra.mxu0 0.0
        %2026 = vmatprep.subr.mxu0 0.0
        %2027 = vmatpush1.msra.mxu0 0.0
        %2028 = vmatprep.subr.mxu0 0.0
        %2029 = vmatpush1.msra.mxu0 0.0
        %2030 = vmatprep.subr.mxu0 0.0
        %2031 = vmatpush1.msra.mxu0 0.0
        %2032 = vmatprep.subr.mxu0 0.0
        %2033 = vmatpush1.msra.mxu0 0.0
        %2034 = vmatprep.subr.mxu0 0.0
        %2035 = vmatpush1.msra.mxu0 0.0
        %2036 = vmatprep.subr.mxu0 0.0
        %2037 = vmatpush1.msra.mxu0 0.0
        %2038 = vmatprep.subr.mxu0 0.0
        %2039 = vmatpush1.msra.mxu0 0.0
        %2040 = vmatprep.subr.mxu0 0.0
        %2041 = vmatpush1.msra.mxu0 0.0
        %2042 = vmatprep.subr.mxu0 0.0
        %2043 = vmatpush1.msra.mxu0 0.0
        %2044 = vmatprep.subr.mxu0 0.0
        %2045 = vmatpush1.msra.mxu0 0.0
        %2046 = vmatprep.mubr.f32.mxu0 0.0
        %2047 = vmatmul.mubr.f32.gmra.mrb[0].mxu0 %v1387
        %v2048 = vpop.f32.mrb[0].mxu0
        %v2049 = vadd.f32 0.0, %v2048
        %v2050 = vpop.f32.mrb[0].mxu0
        %2051 = vmatprep.mubr.f32.mxu0 0.0
        %2052 = vmatmul.mubr.f32.gmra.mrb[0].mxu0 %v1388
        %v2053 = vpop.f32.mrb[0].mxu0
        %v2054 = vadd.f32 0.0, %v2053
        %v2055 = vpop.f32.mrb[0].mxu0
        %2056 = vmatprep.mubr.f32.mxu0 0.0
        %2057 = vmatmul.mubr.f32.gmra.mrb[0].mxu0 %v1389
        %v2058 = vpop.f32.mrb[0].mxu0
        %v2059 = vadd.f32 0.0, %v2058
        %v2060 = vpop.f32.mrb[0].mxu0
        %2061 = vmatprep.mubr.f32.mxu0 0.0
        %2062 = vmatmul.mubr.f32.gmra.mrb[0].mxu0 %v1390
        %v2063 = vpop.f32.mrb[0].mxu0
        %v2064 = vadd.f32 0.0, %v2063
        %v2065 = vpop.f32.mrb[0].mxu0
        %2066 = vdwg.mxu0
        %v2067 = vadd.f32 %v1728, %v2049
        %v2068 = vadd.f32 %v1729, %v2054
        %v2069 = vadd.f32 %v1730, %v2059
        %v2070 = vadd.f32 %v1731, %v2064
        %s2071 = scalar_lea.vmem %s2, 896
        %v2072 = vld [vmem:[%s2071] sm:$0xff]
        %v2073 = vld [vmem:[%s2071 + $0x8] sm:$0xff]
        %v2074 = vld [vmem:[%s2071 + $0x10] sm:$0xff]
        %v2075 = vld [vmem:[%s2071 + $0x18] sm:$0xff]
        %v2076 = vld [vmem:[%s2071 + $0x20] sm:$0xff]
        %v2077 = vld [vmem:[%s2071 + $0x28] sm:$0xff]
        %v2078 = vld [vmem:[%s2071 + $0x30] sm:$0xff]
        %v2079 = vld [vmem:[%s2071 + $0x38] sm:$0xff]
        %v2080 = vld [vmem:[%s2071 + $0x40] sm:$0xff]
        %v2081 = vld [vmem:[%s2071 + $0x48] sm:$0xff]
        %v2082 = vld [vmem:[%s2071 + $0x50] sm:$0xff]
        %v2083 = vld [vmem:[%s2071 + $0x58] sm:$0xff]
        %v2084 = vld [vmem:[%s2071 + $0x60] sm:$0xff]
        %v2085 = vld [vmem:[%s2071 + $0x68] sm:$0xff]
        %v2086 = vld [vmem:[%s2071 + $0x70] sm:$0xff]
        %v2087 = vld [vmem:[%s2071 + $0x78] sm:$0xff]
        %2088 = vmatprep.subr.mxu0 0.0
        %2089 = vmatpush1.msra.mxu0 %v2072
        %2090 = vmatprep.subr.mxu0 0.0
        %2091 = vmatpush1.msra.mxu0 %v2073
        %2092 = vmatprep.subr.mxu0 0.0
        %2093 = vmatpush1.msra.mxu0 %v2074
        %2094 = vmatprep.subr.mxu0 0.0
        %2095 = vmatpush1.msra.mxu0 %v2075
        %2096 = vmatprep.subr.mxu0 0.0
        %2097 = vmatpush1.msra.mxu0 %v2076
        %2098 = vmatprep.subr.mxu0 0.0
        %2099 = vmatpush1.msra.mxu0 %v2077
        %2100 = vmatprep.subr.mxu0 0.0
        %2101 = vmatpush1.msra.mxu0 %v2078
        %2102 = vmatprep.subr.mxu0 0.0
        %2103 = vmatpush1.msra.mxu0 %v2079
        %2104 = vmatprep.subr.mxu0 0.0
        %2105 = vmatpush1.msra.mxu0 %v2080
        %2106 = vmatprep.subr.mxu0 0.0
        %2107 = vmatpush1.msra.mxu0 %v2081
        %2108 = vmatprep.subr.mxu0 0.0
        %2109 = vmatpush1.msra.mxu0 %v2082
        %2110 = vmatprep.subr.mxu0 0.0
        %2111 = vmatpush1.msra.mxu0 %v2083
        %2112 = vmatprep.subr.mxu0 0.0
        %2113 = vmatpush1.msra.mxu0 %v2084
        %2114 = vmatprep.subr.mxu0 0.0
        %2115 = vmatpush1.msra.mxu0 %v2085
        %2116 = vmatprep.subr.mxu0 0.0
        %2117 = vmatpush1.msra.mxu0 %v2086
        %2118 = vmatprep.subr.mxu0 0.0
        %2119 = vmatpush1.msra.mxu0 %v2087
        %2120 = vmatprep.subr.mxu0 0.0
        %2121 = vmatpush1.msra.mxu0 0.0
        %2122 = vmatprep.subr.mxu0 0.0
        %2123 = vmatpush1.msra.mxu0 0.0
        %2124 = vmatprep.subr.mxu0 0.0
        %2125 = vmatpush1.msra.mxu0 0.0
        %2126 = vmatprep.subr.mxu0 0.0
        %2127 = vmatpush1.msra.mxu0 0.0
        %2128 = vmatprep.subr.mxu0 0.0
        %2129 = vmatpush1.msra.mxu0 0.0
        %2130 = vmatprep.subr.mxu0 0.0
        %2131 = vmatpush1.msra.mxu0 0.0
        %2132 = vmatprep.subr.mxu0 0.0
        %2133 = vmatpush1.msra.mxu0 0.0
        %2134 = vmatprep.subr.mxu0 0.0
        %2135 = vmatpush1.msra.mxu0 0.0
        %2136 = vmatprep.subr.mxu0 0.0
        %2137 = vmatpush1.msra.mxu0 0.0
        %2138 = vmatprep.subr.mxu0 0.0
        %2139 = vmatpush1.msra.mxu0 0.0
        %2140 = vmatprep.subr.mxu0 0.0
        %2141 = vmatpush1.msra.mxu0 0.0
        %2142 = vmatprep.subr.mxu0 0.0
        %2143 = vmatpush1.msra.mxu0 0.0
        %2144 = vmatprep.subr.mxu0 0.0
        %2145 = vmatpush1.msra.mxu0 0.0
        %2146 = vmatprep.subr.mxu0 0.0
        %2147 = vmatpush1.msra.mxu0 0.0
        %2148 = vmatprep.subr.mxu0 0.0
        %2149 = vmatpush1.msra.mxu0 0.0
        %2150 = vmatprep.subr.mxu0 0.0
        %2151 = vmatpush1.msra.mxu0 0.0
        %2152 = vmatprep.mubr.f32.mxu0 0.0
        %2153 = vmatmul.mubr.f32.gmra.mrb[0].mxu0 %v1357
        %v2154 = vpop.f32.mrb[0].mxu0
        %v2155 = vadd.f32 0.0, %v2154
        %v2156 = vpop.f32.mrb[0].mxu0
        %2157 = vmatprep.mubr.f32.mxu0 0.0
        %2158 = vmatmul.mubr.f32.gmra.mrb[0].mxu0 %v1358
        %v2159 = vpop.f32.mrb[0].mxu0
        %v2160 = vadd.f32 0.0, %v2159
        %v2161 = vpop.f32.mrb[0].mxu0
        %2162 = vmatprep.mubr.f32.mxu0 0.0
        %2163 = vmatmul.mubr.f32.gmra.mrb[0].mxu0 %v1359
        %v2164 = vpop.f32.mrb[0].mxu0
        %v2165 = vadd.f32 0.0, %v2164
        %v2166 = vpop.f32.mrb[0].mxu0
        %2167 = vmatprep.mubr.f32.mxu0 0.0
        %2168 = vmatmul.mubr.f32.gmra.mrb[0].mxu0 %v1360
        %v2169 = vpop.f32.mrb[0].mxu0
        %v2170 = vadd.f32 0.0, %v2169
        %v2171 = vpop.f32.mrb[0].mxu0
        %2172 = vmatprep.mubr.f32.mxu0 0.0
        %2173 = vmatmul.mubr.f32.gmra.mrb[0].mxu0 %v1361
        %v2174 = vpop.f32.mrb[0].mxu0
        %v2175 = vadd.f32 0.0, %v2174
        %v2176 = vpop.f32.mrb[0].mxu0
        %2177 = vmatprep.mubr.f32.mxu0 0.0
        %2178 = vmatmul.mubr.f32.gmra.mrb[0].mxu0 %v1362
        %v2179 = vpop.f32.mrb[0].mxu0
        %v2180 = vadd.f32 0.0, %v2179
        %v2181 = vpop.f32.mrb[0].mxu0
        %2182 = vmatprep.mubr.f32.mxu0 0.0
        %2183 = vmatmul.mubr.f32.gmra.mrb[0].mxu0 %v1363
        %v2184 = vpop.f32.mrb[0].mxu0
        %v2185 = vadd.f32 0.0, %v2184
        %v2186 = vpop.f32.mrb[0].mxu0
        %2187 = vmatprep.mubr.f32.mxu0 0.0
        %2188 = vmatmul.mubr.f32.gmra.mrb[0].mxu0 %v1364
        %v2189 = vpop.f32.mrb[0].mxu0
        %v2190 = vadd.f32 0.0, %v2189
        %v2191 = vpop.f32.mrb[0].mxu0
        %2192 = vmatprep.mubr.f32.mxu0 0.0
        %2193 = vmatmul.mubr.f32.gmra.mrb[0].mxu0 %v1365
        %v2194 = vpop.f32.mrb[0].mxu0
        %v2195 = vadd.f32 0.0, %v2194
        %v2196 = vpop.f32.mrb[0].mxu0
        %2197 = vmatprep.mubr.f32.mxu0 0.0
        %2198 = vmatmul.mubr.f32.gmra.mrb[0].mxu0 %v1366
        %v2199 = vpop.f32.mrb[0].mxu0
        %v2200 = vadd.f32 0.0, %v2199
        %v2201 = vpop.f32.mrb[0].mxu0
        %2202 = vmatprep.mubr.f32.mxu0 0.0
        %2203 = vmatmul.mubr.f32.gmra.mrb[0].mxu0 %v1367
        %v2204 = vpop.f32.mrb[0].mxu0
        %v2205 = vadd.f32 0.0, %v2204
        %v2206 = vpop.f32.mrb[0].mxu0
        %2207 = vmatprep.mubr.f32.mxu0 0.0
        %2208 = vmatmul.mubr.f32.gmra.mrb[0].mxu0 %v1368
        %v2209 = vpop.f32.mrb[0].mxu0
        %v2210 = vadd.f32 0.0, %v2209
        %v2211 = vpop.f32.mrb[0].mxu0
        %2212 = vmatprep.mubr.f32.mxu0 0.0
        %2213 = vmatmul.mubr.f32.gmra.mrb[0].mxu0 %v1369
        %v2214 = vpop.f32.mrb[0].mxu0
        %v2215 = vadd.f32 0.0, %v2214
        %v2216 = vpop.f32.mrb[0].mxu0
        %2217 = vmatprep.mubr.f32.mxu0 0.0
        %2218 = vmatmul.mubr.f32.gmra.mrb[0].mxu0 %v1370
        %v2219 = vpop.f32.mrb[0].mxu0
        %v2220 = vadd.f32 0.0, %v2219
        %v2221 = vpop.f32.mrb[0].mxu0
        %2222 = vmatprep.mubr.f32.mxu0 0.0
        %2223 = vmatmul.mubr.f32.gmra.mrb[0].mxu0 %v1371
        %v2224 = vpop.f32.mrb[0].mxu0
        %v2225 = vadd.f32 0.0, %v2224
        %v2226 = vpop.f32.mrb[0].mxu0
        %2227 = vmatprep.mubr.f32.mxu0 0.0
        %2228 = vmatmul.mubr.f32.gmra.mrb[0].mxu0 %v1372
        %v2229 = vpop.f32.mrb[0].mxu0
        %v2230 = vadd.f32 0.0, %v2229
        %v2231 = vpop.f32.mrb[0].mxu0
        %2232 = vmatprep.mubr.f32.mxu0 0.0
        %2233 = vmatmul.mubr.f32.gmra.mrb[0].mxu0 %v1373
        %v2234 = vpop.f32.mrb[0].mxu0
        %v2235 = vadd.f32 0.0, %v2234
        %v2236 = vpop.f32.mrb[0].mxu0
        %2237 = vmatprep.mubr.f32.mxu0 0.0
        %2238 = vmatmul.mubr.f32.gmra.mrb[0].mxu0 %v1374
        %v2239 = vpop.f32.mrb[0].mxu0
        %v2240 = vadd.f32 0.0, %v2239
        %v2241 = vpop.f32.mrb[0].mxu0
        %2242 = vmatprep.mubr.f32.mxu0 0.0
        %2243 = vmatmul.mubr.f32.gmra.mrb[0].mxu0 %v1375
        %v2244 = vpop.f32.mrb[0].mxu0
        %v2245 = vadd.f32 0.0, %v2244
        %v2246 = vpop.f32.mrb[0].mxu0
        %2247 = vmatprep.mubr.f32.mxu0 0.0
        %2248 = vmatmul.mubr.f32.gmra.mrb[0].mxu0 %v1376
        %v2249 = vpop.f32.mrb[0].mxu0
        %v2250 = vadd.f32 0.0, %v2249
        %v2251 = vpop.f32.mrb[0].mxu0
        %2252 = vmatprep.mubr.f32.mxu0 0.0
        %2253 = vmatmul.mubr.f32.gmra.mrb[0].mxu0 %v1377
        %v2254 = vpop.f32.mrb[0].mxu0
        %v2255 = vadd.f32 0.0, %v2254
        %v2256 = vpop.f32.mrb[0].mxu0
        %2257 = vmatprep.mubr.f32.mxu0 0.0
        %2258 = vmatmul.mubr.f32.gmra.mrb[0].mxu0 %v1378
        %v2259 = vpop.f32.mrb[0].mxu0
        %v2260 = vadd.f32 0.0, %v2259
        %v2261 = vpop.f32.mrb[0].mxu0
        %2262 = vmatprep.mubr.f32.mxu0 0.0
        %2263 = vmatmul.mubr.f32.gmra.mrb[0].mxu0 %v1379
        %v2264 = vpop.f32.mrb[0].mxu0
        %v2265 = vadd.f32 0.0, %v2264
        %v2266 = vpop.f32.mrb[0].mxu0
        %2267 = vmatprep.mubr.f32.mxu0 0.0
        %2268 = vmatmul.mubr.f32.gmra.mrb[0].mxu0 %v1380
        %v2269 = vpop.f32.mrb[0].mxu0
        %v2270 = vadd.f32 0.0, %v2269
        %v2271 = vpop.f32.mrb[0].mxu0
        %2272 = vmatprep.mubr.f32.mxu0 0.0
        %2273 = vmatmul.mubr.f32.gmra.mrb[0].mxu0 %v1381
        %v2274 = vpop.f32.mrb[0].mxu0
        %v2275 = vadd.f32 0.0, %v2274
        %v2276 = vpop.f32.mrb[0].mxu0
        %2277 = vmatprep.mubr.f32.mxu0 0.0
        %2278 = vmatmul.mubr.f32.gmra.mrb[0].mxu0 %v1382
        %v2279 = vpop.f32.mrb[0].mxu0
        %v2280 = vadd.f32 0.0, %v2279
        %v2281 = vpop.f32.mrb[0].mxu0
        %2282 = vmatprep.mubr.f32.mxu0 0.0
        %2283 = vmatmul.mubr.f32.gmra.mrb[0].mxu0 %v1383
        %v2284 = vpop.f32.mrb[0].mxu0
        %v2285 = vadd.f32 0.0, %v2284
        %v2286 = vpop.f32.mrb[0].mxu0
        %2287 = vmatprep.mubr.f32.mxu0 0.0
        %2288 = vmatmul.mubr.f32.gmra.mrb[0].mxu0 %v1384
        %v2289 = vpop.f32.mrb[0].mxu0
        %v2290 = vadd.f32 0.0, %v2289
        %v2291 = vpop.f32.mrb[0].mxu0
        %2292 = vdwg.mxu0
        %v2293 = vadd.f32 %v1954, %v2155
        %v2294 = vadd.f32 %v1955, %v2160
        %v2295 = vadd.f32 %v1956, %v2165
        %v2296 = vadd.f32 %v1957, %v2170
        %v2297 = vadd.f32 %v1958, %v2175
        %v2298 = vadd.f32 %v1959, %v2180
        %v2299 = vadd.f32 %v1960, %v2185
        %v2300 = vadd.f32 %v1961, %v2190
        %v2301 = vadd.f32 %v1962, %v2195
        %v2302 = vadd.f32 %v1963, %v2200
        %v2303 = vadd.f32 %v1964, %v2205
        %v2304 = vadd.f32 %v1965, %v2210
        %v2305 = vadd.f32 %v1966, %v2215
        %v2306 = vadd.f32 %v1967, %v2220
        %v2307 = vadd.f32 %v1968, %v2225
        %v2308 = vadd.f32 %v1969, %v2230
        %v2309 = vadd.f32 %v1970, %v2235
        %v2310 = vadd.f32 %v1971, %v2240
        %v2311 = vadd.f32 %v1972, %v2245
        %v2312 = vadd.f32 %v1973, %v2250
        %v2313 = vadd.f32 %v1974, %v2255
        %v2314 = vadd.f32 %v1975, %v2260
        %v2315 = vadd.f32 %v1976, %v2265
        %v2316 = vadd.f32 %v1977, %v2270
        %v2317 = vadd.f32 %v1978, %v2275
        %v2318 = vadd.f32 %v1979, %v2280
        %v2319 = vadd.f32 %v1980, %v2285
        %v2320 = vadd.f32 %v1981, %v2290
        %2321 = vmatprep.subr.mxu0 0.0
        %2322 = vmatpush1.msra.mxu0 %v2072
        %2323 = vmatprep.subr.mxu0 0.0
        %2324 = vmatpush1.msra.mxu0 %v2073
        %2325 = vmatprep.subr.mxu0 0.0
        %2326 = vmatpush1.msra.mxu0 %v2074
        %2327 = vmatprep.subr.mxu0 0.0
        %2328 = vmatpush1.msra.mxu0 %v2075
        %2329 = vmatprep.subr.mxu0 0.0
        %2330 = vmatpush1.msra.mxu0 %v2076
        %2331 = vmatprep.subr.mxu0 0.0
        %2332 = vmatpush1.msra.mxu0 %v2077
        %2333 = vmatprep.subr.mxu0 0.0
        %2334 = vmatpush1.msra.mxu0 %v2078
        %2335 = vmatprep.subr.mxu0 0.0
        %2336 = vmatpush1.msra.mxu0 %v2079
        %2337 = vmatprep.subr.mxu0 0.0
        %2338 = vmatpush1.msra.mxu0 %v2080
        %2339 = vmatprep.subr.mxu0 0.0
        %2340 = vmatpush1.msra.mxu0 %v2081
        %2341 = vmatprep.subr.mxu0 0.0
        %2342 = vmatpush1.msra.mxu0 %v2082
        %2343 = vmatprep.subr.mxu0 0.0
        %2344 = vmatpush1.msra.mxu0 %v2083
        %2345 = vmatprep.subr.mxu0 0.0
        %2346 = vmatpush1.msra.mxu0 %v2084
        %2347 = vmatprep.subr.mxu0 0.0
        %2348 = vmatpush1.msra.mxu0 %v2085
        %2349 = vmatprep.subr.mxu0 0.0
        %2350 = vmatpush1.msra.mxu0 %v2086
        %2351 = vmatprep.subr.mxu0 0.0
        %2352 = vmatpush1.msra.mxu0 %v2087
        %2353 = vmatprep.subr.mxu0 0.0
        %2354 = vmatpush1.msra.mxu0 0.0
        %2355 = vmatprep.subr.mxu0 0.0
        %2356 = vmatpush1.msra.mxu0 0.0
        %2357 = vmatprep.subr.mxu0 0.0
        %2358 = vmatpush1.msra.mxu0 0.0
        %2359 = vmatprep.subr.mxu0 0.0
        %2360 = vmatpush1.msra.mxu0 0.0
        %2361 = vmatprep.subr.mxu0 0.0
        %2362 = vmatpush1.msra.mxu0 0.0
        %2363 = vmatprep.subr.mxu0 0.0
        %2364 = vmatpush1.msra.mxu0 0.0
        %2365 = vmatprep.subr.mxu0 0.0
        %2366 = vmatpush1.msra.mxu0 0.0
        %2367 = vmatprep.subr.mxu0 0.0
        %2368 = vmatpush1.msra.mxu0 0.0
        %2369 = vmatprep.subr.mxu0 0.0
        %2370 = vmatpush1.msra.mxu0 0.0
        %2371 = vmatprep.subr.mxu0 0.0
        %2372 = vmatpush1.msra.mxu0 0.0
        %2373 = vmatprep.subr.mxu0 0.0
        %2374 = vmatpush1.msra.mxu0 0.0
        %2375 = vmatprep.subr.mxu0 0.0
        %2376 = vmatpush1.msra.mxu0 0.0
        %2377 = vmatprep.subr.mxu0 0.0
        %2378 = vmatpush1.msra.mxu0 0.0
        %2379 = vmatprep.subr.mxu0 0.0
        %2380 = vmatpush1.msra.mxu0 0.0
        %2381 = vmatprep.subr.mxu0 0.0
        %2382 = vmatpush1.msra.mxu0 0.0
        %2383 = vmatprep.subr.mxu0 0.0
        %2384 = vmatpush1.msra.mxu0 0.0
        %2385 = vmatprep.mubr.f32.mxu0 0.0
        %2386 = vmatmul.mubr.f32.gmra.mrb[0].mxu0 %v1389
        %v2387 = vpop.f32.mrb[0].mxu0
        %v2388 = vadd.f32 0.0, %v2387
        %v2389 = vpop.f32.mrb[0].mxu0
        %2390 = vmatprep.mubr.f32.mxu0 0.0
        %2391 = vmatmul.mubr.f32.gmra.mrb[0].mxu0 %v1390
        %v2392 = vpop.f32.mrb[0].mxu0
        %v2393 = vadd.f32 0.0, %v2392
        %v2394 = vpop.f32.mrb[0].mxu0
        %2395 = vmatprep.mubr.f32.mxu0 0.0
        %2396 = vmatmul.mubr.f32.gmra.mrb[0].mxu0 %v1391
        %v2397 = vpop.f32.mrb[0].mxu0
        %v2398 = vadd.f32 0.0, %v2397
        %v2399 = vpop.f32.mrb[0].mxu0
        %2400 = vmatprep.mubr.f32.mxu0 0.0
        %2401 = vmatmul.mubr.f32.gmra.mrb[0].mxu0 %v1392
        %v2402 = vpop.f32.mrb[0].mxu0
        %v2403 = vadd.f32 0.0, %v2402
        %v2404 = vpop.f32.mrb[0].mxu0
        %2405 = vdwg.mxu0
        %v2406 = vadd.f32 %v2067, %v2388
        %v2407 = vadd.f32 %v2068, %v2393
        %v2408 = vadd.f32 %v2069, %v2398
        %v2409 = vadd.f32 %v2070, %v2403
        %v2410 = vld [vmem:[%s312 + $0x2] sm:$0xff]
        %v2411 = vld [vmem:[%s312 + $0xa] sm:$0xff]
        %v2412 = vld [vmem:[%s312 + $0x1a] sm:$0xff]
        %v2413 = vld [vmem:[%s312 + $0x22] sm:$0xff]
        %v2414 = vld [vmem:[%s312 + $0x32] sm:$0xff]
        %v2415 = vld [vmem:[%s312 + $0x3a] sm:$0xff]
        %v2416 = vld [vmem:[%s312 + $0x4a] sm:$0xff]
        %v2417 = vld [vmem:[%s312 + $0x52] sm:$0xff]
        %v2418 = vld [vmem:[%s312 + $0x62] sm:$0xff]
        %v2419 = vld [vmem:[%s312 + $0x6a] sm:$0xff]
        %v2420 = vld [vmem:[%s312 + $0x7a] sm:$0xff]
        %v2421 = vld [vmem:[%s312 + $0x82] sm:$0xff]
        %v2422 = vld [vmem:[%s312 + $0x92] sm:$0xff]
        %v2423 = vld [vmem:[%s312 + $0x9a] sm:$0xff]
        %v2424 = vld [vmem:[%s312 + $0xaa] sm:$0xff]
        %v2425 = vld [vmem:[%s312 + $0xb2] sm:$0xff]
        %v2426 = vld [vmem:[%s312 + $0xc2] sm:$0xff]
        %v2427 = vld [vmem:[%s312 + $0xca] sm:$0xff]
        %v2428 = vld [vmem:[%s312 + $0xda] sm:$0xff]
        %v2429 = vld [vmem:[%s312 + $0xe2] sm:$0xff]
        %v2430 = vld [vmem:[%s312 + $0xf2] sm:$0xff]
        %v2431 = vld [vmem:[%s312 + $0xfa] sm:$0xff]
        %v2432 = vld [vmem:[%s312 + $0x10a] sm:$0xff]
        %v2433 = vld [vmem:[%s312 + $0x112] sm:$0xff]
        %v2434 = vld [vmem:[%s312 + $0x122] sm:$0xff]
        %v2435 = vld [vmem:[%s312 + $0x12a] sm:$0xff]
        %v2436 = vld [vmem:[%s312 + $0x13a] sm:$0xff]
        %v2437 = vld [vmem:[%s312 + $0x142] sm:$0xff]
        %v2438 = vld [vmem:[%s312 + $0x152] sm:$0xff]
        %v2439 = vld [vmem:[%s312 + $0x15a] sm:$0xff]
        %v2440 = vld [vmem:[%s312 + $0x16a] sm:$0xff]
        %v2441 = vld [vmem:[%s312 + $0x172] sm:$0xff]
        %v2442 = vld [vmem:[#allocation2 + $0x2] sm:$0xff]
        %v2443 = vld [vmem:[#allocation2 + $0xa] sm:$0xff]
        %v2444 = vld [vmem:[#allocation2 + $0x1a] sm:$0xff]
        %v2445 = vld [vmem:[#allocation2 + $0x22] sm:$0xff]
        %v2446 = vld [vmem:[#allocation2 + $0x32] sm:$0xff]
        %v2447 = vld [vmem:[#allocation2 + $0x3a] sm:$0xff]
        %v2448 = vld [vmem:[#allocation2 + $0x4a] sm:$0xff]
        %v2449 = vld [vmem:[#allocation2 + $0x52] sm:$0xff]
        %s2450 = scalar_lea.vmem %s2, 256
        %v2451 = vld [vmem:[%s2450] sm:$0xff]
        %v2452 = vld [vmem:[%s2450 + $0x8] sm:$0xff]
        %v2453 = vld [vmem:[%s2450 + $0x10] sm:$0xff]
        %v2454 = vld [vmem:[%s2450 + $0x18] sm:$0xff]
        %v2455 = vld [vmem:[%s2450 + $0x20] sm:$0xff]
        %v2456 = vld [vmem:[%s2450 + $0x28] sm:$0xff]
        %v2457 = vld [vmem:[%s2450 + $0x30] sm:$0xff]
        %v2458 = vld [vmem:[%s2450 + $0x38] sm:$0xff]
        %v2459 = vld [vmem:[%s2450 + $0x40] sm:$0xff]
        %v2460 = vld [vmem:[%s2450 + $0x48] sm:$0xff]
        %v2461 = vld [vmem:[%s2450 + $0x50] sm:$0xff]
        %v2462 = vld [vmem:[%s2450 + $0x58] sm:$0xff]
        %v2463 = vld [vmem:[%s2450 + $0x60] sm:$0xff]
        %v2464 = vld [vmem:[%s2450 + $0x68] sm:$0xff]
        %v2465 = vld [vmem:[%s2450 + $0x70] sm:$0xff]
        %v2466 = vld [vmem:[%s2450 + $0x78] sm:$0xff]
        %2467 = vmatprep.subr.mxu0 0.0
        %2468 = vmatpush1.msra.mxu0 %v2451
        %2469 = vmatprep.subr.mxu0 0.0
        %2470 = vmatpush1.msra.mxu0 %v2452
        %2471 = vmatprep.subr.mxu0 0.0
        %2472 = vmatpush1.msra.mxu0 %v2453
        %2473 = vmatprep.subr.mxu0 0.0
        %2474 = vmatpush1.msra.mxu0 %v2454
        %2475 = vmatprep.subr.mxu0 0.0
        %2476 = vmatpush1.msra.mxu0 %v2455
        %2477 = vmatprep.subr.mxu0 0.0
        %2478 = vmatpush1.msra.mxu0 %v2456
        %2479 = vmatprep.subr.mxu0 0.0
        %2480 = vmatpush1.msra.mxu0 %v2457
        %2481 = vmatprep.subr.mxu0 0.0
        %2482 = vmatpush1.msra.mxu0 %v2458
        %2483 = vmatprep.subr.mxu0 0.0
        %2484 = vmatpush1.msra.mxu0 %v2459
        %2485 = vmatprep.subr.mxu0 0.0
        %2486 = vmatpush1.msra.mxu0 %v2460
        %2487 = vmatprep.subr.mxu0 0.0
        %2488 = vmatpush1.msra.mxu0 %v2461
        %2489 = vmatprep.subr.mxu0 0.0
        %2490 = vmatpush1.msra.mxu0 %v2462
        %2491 = vmatprep.subr.mxu0 0.0
        %2492 = vmatpush1.msra.mxu0 %v2463
        %2493 = vmatprep.subr.mxu0 0.0
        %2494 = vmatpush1.msra.mxu0 %v2464
        %2495 = vmatprep.subr.mxu0 0.0
        %2496 = vmatpush1.msra.mxu0 %v2465
        %2497 = vmatprep.subr.mxu0 0.0
        %2498 = vmatpush1.msra.mxu0 %v2466
        %2499 = vmatprep.subr.mxu0 0.0
        %2500 = vmatpush1.msra.mxu0 0.0
        %2501 = vmatprep.subr.mxu0 0.0
        %2502 = vmatpush1.msra.mxu0 0.0
        %2503 = vmatprep.subr.mxu0 0.0
        %2504 = vmatpush1.msra.mxu0 0.0
        %2505 = vmatprep.subr.mxu0 0.0
        %2506 = vmatpush1.msra.mxu0 0.0
        %2507 = vmatprep.subr.mxu0 0.0
        %2508 = vmatpush1.msra.mxu0 0.0
        %2509 = vmatprep.subr.mxu0 0.0
        %2510 = vmatpush1.msra.mxu0 0.0
        %2511 = vmatprep.subr.mxu0 0.0
        %2512 = vmatpush1.msra.mxu0 0.0
        %2513 = vmatprep.subr.mxu0 0.0
        %2514 = vmatpush1.msra.mxu0 0.0
        %2515 = vmatprep.subr.mxu0 0.0
        %2516 = vmatpush1.msra.mxu0 0.0
        %2517 = vmatprep.subr.mxu0 0.0
        %2518 = vmatpush1.msra.mxu0 0.0
        %2519 = vmatprep.subr.mxu0 0.0
        %2520 = vmatpush1.msra.mxu0 0.0
        %2521 = vmatprep.subr.mxu0 0.0
        %2522 = vmatpush1.msra.mxu0 0.0
        %2523 = vmatprep.subr.mxu0 0.0
        %2524 = vmatpush1.msra.mxu0 0.0
        %2525 = vmatprep.subr.mxu0 0.0
        %2526 = vmatpush1.msra.mxu0 0.0
        %2527 = vmatprep.subr.mxu0 0.0
        %2528 = vmatpush1.msra.mxu0 0.0
        %2529 = vmatprep.subr.mxu0 0.0
        %2530 = vmatpush1.msra.mxu0 0.0
        %2531 = vmatprep.mubr.f32.mxu0 0.0
        %2532 = vmatmul.mubr.f32.gmra.mrb[0].mxu0 %v2410
        %v2533 = vpop.f32.mrb[0].mxu0
        %v2534 = vadd.f32 0.0, %v2533
        %v2535 = vpop.f32.mrb[0].mxu0
        %2536 = vmatprep.mubr.f32.mxu0 0.0
        %2537 = vmatmul.mubr.f32.gmra.mrb[0].mxu0 %v2411
        %v2538 = vpop.f32.mrb[0].mxu0
        %v2539 = vadd.f32 0.0, %v2538
        %v2540 = vpop.f32.mrb[0].mxu0
        %2541 = vmatprep.mubr.f32.mxu0 0.0
        %2542 = vmatmul.mubr.f32.gmra.mrb[0].mxu0 %v2412
        %v2543 = vpop.f32.mrb[0].mxu0
        %v2544 = vadd.f32 0.0, %v2543
        %v2545 = vpop.f32.mrb[0].mxu0
        %2546 = vmatprep.mubr.f32.mxu0 0.0
        %2547 = vmatmul.mubr.f32.gmra.mrb[0].mxu0 %v2413
        %v2548 = vpop.f32.mrb[0].mxu0
        %v2549 = vadd.f32 0.0, %v2548
        %v2550 = vpop.f32.mrb[0].mxu0
        %2551 = vmatprep.mubr.f32.mxu0 0.0
        %2552 = vmatmul.mubr.f32.gmra.mrb[0].mxu0 %v2414
        %v2553 = vpop.f32.mrb[0].mxu0
        %v2554 = vadd.f32 0.0, %v2553
        %v2555 = vpop.f32.mrb[0].mxu0
        %2556 = vmatprep.mubr.f32.mxu0 0.0
        %2557 = vmatmul.mubr.f32.gmra.mrb[0].mxu0 %v2415
        %v2558 = vpop.f32.mrb[0].mxu0
        %v2559 = vadd.f32 0.0, %v2558
        %v2560 = vpop.f32.mrb[0].mxu0
        %2561 = vmatprep.mubr.f32.mxu0 0.0
        %2562 = vmatmul.mubr.f32.gmra.mrb[0].mxu0 %v2416
        %v2563 = vpop.f32.mrb[0].mxu0
        %v2564 = vadd.f32 0.0, %v2563
        %v2565 = vpop.f32.mrb[0].mxu0
        %2566 = vmatprep.mubr.f32.mxu0 0.0
        %2567 = vmatmul.mubr.f32.gmra.mrb[0].mxu0 %v2417
        %v2568 = vpop.f32.mrb[0].mxu0
        %v2569 = vadd.f32 0.0, %v2568
        %v2570 = vpop.f32.mrb[0].mxu0
        %2571 = vmatprep.mubr.f32.mxu0 0.0
        %2572 = vmatmul.mubr.f32.gmra.mrb[0].mxu0 %v2418
        %v2573 = vpop.f32.mrb[0].mxu0
        %v2574 = vadd.f32 0.0, %v2573
        %v2575 = vpop.f32.mrb[0].mxu0
        %2576 = vmatprep.mubr.f32.mxu0 0.0
        %2577 = vmatmul.mubr.f32.gmra.mrb[0].mxu0 %v2419
        %v2578 = vpop.f32.mrb[0].mxu0
        %v2579 = vadd.f32 0.0, %v2578
        %v2580 = vpop.f32.mrb[0].mxu0
        %2581 = vmatprep.mubr.f32.mxu0 0.0
        %2582 = vmatmul.mubr.f32.gmra.mrb[0].mxu0 %v2420
        %v2583 = vpop.f32.mrb[0].mxu0
        %v2584 = vadd.f32 0.0, %v2583
        %v2585 = vpop.f32.mrb[0].mxu0
        %2586 = vmatprep.mubr.f32.mxu0 0.0
        %2587 = vmatmul.mubr.f32.gmra.mrb[0].mxu0 %v2421
        %v2588 = vpop.f32.mrb[0].mxu0
        %v2589 = vadd.f32 0.0, %v2588
        %v2590 = vpop.f32.mrb[0].mxu0
        %2591 = vmatprep.mubr.f32.mxu0 0.0
        %2592 = vmatmul.mubr.f32.gmra.mrb[0].mxu0 %v2422
        %v2593 = vpop.f32.mrb[0].mxu0
        %v2594 = vadd.f32 0.0, %v2593
        %v2595 = vpop.f32.mrb[0].mxu0
        %2596 = vmatprep.mubr.f32.mxu0 0.0
        %2597 = vmatmul.mubr.f32.gmra.mrb[0].mxu0 %v2423
        %v2598 = vpop.f32.mrb[0].mxu0
        %v2599 = vadd.f32 0.0, %v2598
        %v2600 = vpop.f32.mrb[0].mxu0
        %2601 = vmatprep.mubr.f32.mxu0 0.0
        %2602 = vmatmul.mubr.f32.gmra.mrb[0].mxu0 %v2424
        %v2603 = vpop.f32.mrb[0].mxu0
        %v2604 = vadd.f32 0.0, %v2603
        %v2605 = vpop.f32.mrb[0].mxu0
        %2606 = vmatprep.mubr.f32.mxu0 0.0
        %2607 = vmatmul.mubr.f32.gmra.mrb[0].mxu0 %v2425
        %v2608 = vpop.f32.mrb[0].mxu0
        %v2609 = vadd.f32 0.0, %v2608
        %v2610 = vpop.f32.mrb[0].mxu0
        %2611 = vmatprep.mubr.f32.mxu0 0.0
        %2612 = vmatmul.mubr.f32.gmra.mrb[0].mxu0 %v2426
        %v2613 = vpop.f32.mrb[0].mxu0
        %v2614 = vadd.f32 0.0, %v2613
        %v2615 = vpop.f32.mrb[0].mxu0
        %2616 = vmatprep.mubr.f32.mxu0 0.0
        %2617 = vmatmul.mubr.f32.gmra.mrb[0].mxu0 %v2427
        %v2618 = vpop.f32.mrb[0].mxu0
        %v2619 = vadd.f32 0.0, %v2618
        %v2620 = vpop.f32.mrb[0].mxu0
        %2621 = vmatprep.mubr.f32.mxu0 0.0
        %2622 = vmatmul.mubr.f32.gmra.mrb[0].mxu0 %v2428
        %v2623 = vpop.f32.mrb[0].mxu0
        %v2624 = vadd.f32 0.0, %v2623
        %v2625 = vpop.f32.mrb[0].mxu0
        %2626 = vmatprep.mubr.f32.mxu0 0.0
        %2627 = vmatmul.mubr.f32.gmra.mrb[0].mxu0 %v2429
        %v2628 = vpop.f32.mrb[0].mxu0
        %v2629 = vadd.f32 0.0, %v2628
        %v2630 = vpop.f32.mrb[0].mxu0
        %2631 = vmatprep.mubr.f32.mxu0 0.0
        %2632 = vmatmul.mubr.f32.gmra.mrb[0].mxu0 %v2430
        %v2633 = vpop.f32.mrb[0].mxu0
        %v2634 = vadd.f32 0.0, %v2633
        %v2635 = vpop.f32.mrb[0].mxu0
        %2636 = vmatprep.mubr.f32.mxu0 0.0
        %2637 = vmatmul.mubr.f32.gmra.mrb[0].mxu0 %v2431
        %v2638 = vpop.f32.mrb[0].mxu0
        %v2639 = vadd.f32 0.0, %v2638
        %v2640 = vpop.f32.mrb[0].mxu0
        %2641 = vmatprep.mubr.f32.mxu0 0.0
        %2642 = vmatmul.mubr.f32.gmra.mrb[0].mxu0 %v2432
        %v2643 = vpop.f32.mrb[0].mxu0
        %v2644 = vadd.f32 0.0, %v2643
        %v2645 = vpop.f32.mrb[0].mxu0
        %2646 = vmatprep.mubr.f32.mxu0 0.0
        %2647 = vmatmul.mubr.f32.gmra.mrb[0].mxu0 %v2433
        %v2648 = vpop.f32.mrb[0].mxu0
        %v2649 = vadd.f32 0.0, %v2648
        %v2650 = vpop.f32.mrb[0].mxu0
        %2651 = vmatprep.mubr.f32.mxu0 0.0
        %2652 = vmatmul.mubr.f32.gmra.mrb[0].mxu0 %v2434
        %v2653 = vpop.f32.mrb[0].mxu0
        %v2654 = vadd.f32 0.0, %v2653
        %v2655 = vpop.f32.mrb[0].mxu0
        %2656 = vmatprep.mubr.f32.mxu0 0.0
        %2657 = vmatmul.mubr.f32.gmra.mrb[0].mxu0 %v2435
        %v2658 = vpop.f32.mrb[0].mxu0
        %v2659 = vadd.f32 0.0, %v2658
        %v2660 = vpop.f32.mrb[0].mxu0
        %2661 = vmatprep.mubr.f32.mxu0 0.0
        %2662 = vmatmul.mubr.f32.gmra.mrb[0].mxu0 %v2436
        %v2663 = vpop.f32.mrb[0].mxu0
        %v2664 = vadd.f32 0.0, %v2663
        %v2665 = vpop.f32.mrb[0].mxu0
        %2666 = vmatprep.mubr.f32.mxu0 0.0
        %2667 = vmatmul.mubr.f32.gmra.mrb[0].mxu0 %v2437
        %v2668 = vpop.f32.mrb[0].mxu0
        %v2669 = vadd.f32 0.0, %v2668
        %v2670 = vpop.f32.mrb[0].mxu0
        %2671 = vdwg.mxu0
        %v2672 = vadd.f32 %v2293, %v2534
        %v2673 = vadd.f32 %v2294, %v2539
        %v2674 = vadd.f32 %v2295, %v2544
        %v2675 = vadd.f32 %v2296, %v2549
        %v2676 = vadd.f32 %v2297, %v2554
        %v2677 = vadd.f32 %v2298, %v2559
        %v2678 = vadd.f32 %v2299, %v2564
        %v2679 = vadd.f32 %v2300, %v2569
        %v2680 = vadd.f32 %v2301, %v2574
        %v2681 = vadd.f32 %v2302, %v2579
        %v2682 = vadd.f32 %v2303, %v2584
        %v2683 = vadd.f32 %v2304, %v2589
        %v2684 = vadd.f32 %v2305, %v2594
        %v2685 = vadd.f32 %v2306, %v2599
        %v2686 = vadd.f32 %v2307, %v2604
        %v2687 = vadd.f32 %v2308, %v2609
        %v2688 = vadd.f32 %v2309, %v2614
        %v2689 = vadd.f32 %v2310, %v2619
        %v2690 = vadd.f32 %v2311, %v2624
        %v2691 = vadd.f32 %v2312, %v2629
        %v2692 = vadd.f32 %v2313, %v2634
        %v2693 = vadd.f32 %v2314, %v2639
        %v2694 = vadd.f32 %v2315, %v2644
        %v2695 = vadd.f32 %v2316, %v2649
        %v2696 = vadd.f32 %v2317, %v2654
        %v2697 = vadd.f32 %v2318, %v2659
        %v2698 = vadd.f32 %v2319, %v2664
        %v2699 = vadd.f32 %v2320, %v2669
        %2700 = vmatprep.subr.mxu0 0.0
        %2701 = vmatpush1.msra.mxu0 %v2451
        %2702 = vmatprep.subr.mxu0 0.0
        %2703 = vmatpush1.msra.mxu0 %v2452
        %2704 = vmatprep.subr.mxu0 0.0
        %2705 = vmatpush1.msra.mxu0 %v2453
        %2706 = vmatprep.subr.mxu0 0.0
        %2707 = vmatpush1.msra.mxu0 %v2454
        %2708 = vmatprep.subr.mxu0 0.0
        %2709 = vmatpush1.msra.mxu0 %v2455
        %2710 = vmatprep.subr.mxu0 0.0
        %2711 = vmatpush1.msra.mxu0 %v2456
        %2712 = vmatprep.subr.mxu0 0.0
        %2713 = vmatpush1.msra.mxu0 %v2457
        %2714 = vmatprep.subr.mxu0 0.0
        %2715 = vmatpush1.msra.mxu0 %v2458
        %2716 = vmatprep.subr.mxu0 0.0
        %2717 = vmatpush1.msra.mxu0 %v2459
        %2718 = vmatprep.subr.mxu0 0.0
        %2719 = vmatpush1.msra.mxu0 %v2460
        %2720 = vmatprep.subr.mxu0 0.0
        %2721 = vmatpush1.msra.mxu0 %v2461
        %2722 = vmatprep.subr.mxu0 0.0
        %2723 = vmatpush1.msra.mxu0 %v2462
        %2724 = vmatprep.subr.mxu0 0.0
        %2725 = vmatpush1.msra.mxu0 %v2463
        %2726 = vmatprep.subr.mxu0 0.0
        %2727 = vmatpush1.msra.mxu0 %v2464
        %2728 = vmatprep.subr.mxu0 0.0
        %2729 = vmatpush1.msra.mxu0 %v2465
        %2730 = vmatprep.subr.mxu0 0.0
        %2731 = vmatpush1.msra.mxu0 %v2466
        %2732 = vmatprep.subr.mxu0 0.0
        %2733 = vmatpush1.msra.mxu0 0.0
        %2734 = vmatprep.subr.mxu0 0.0
        %2735 = vmatpush1.msra.mxu0 0.0
        %2736 = vmatprep.subr.mxu0 0.0
        %2737 = vmatpush1.msra.mxu0 0.0
        %2738 = vmatprep.subr.mxu0 0.0
        %2739 = vmatpush1.msra.mxu0 0.0
        %2740 = vmatprep.subr.mxu0 0.0
        %2741 = vmatpush1.msra.mxu0 0.0
        %2742 = vmatprep.subr.mxu0 0.0
        %2743 = vmatpush1.msra.mxu0 0.0
        %2744 = vmatprep.subr.mxu0 0.0
        %2745 = vmatpush1.msra.mxu0 0.0
        %2746 = vmatprep.subr.mxu0 0.0
        %2747 = vmatpush1.msra.mxu0 0.0
        %2748 = vmatprep.subr.mxu0 0.0
        %2749 = vmatpush1.msra.mxu0 0.0
        %2750 = vmatprep.subr.mxu0 0.0
        %2751 = vmatpush1.msra.mxu0 0.0
        %2752 = vmatprep.subr.mxu0 0.0
        %2753 = vmatpush1.msra.mxu0 0.0
        %2754 = vmatprep.subr.mxu0 0.0
        %2755 = vmatpush1.msra.mxu0 0.0
        %2756 = vmatprep.subr.mxu0 0.0
        %2757 = vmatpush1.msra.mxu0 0.0
        %2758 = vmatprep.subr.mxu0 0.0
        %2759 = vmatpush1.msra.mxu0 0.0
        %2760 = vmatprep.subr.mxu0 0.0
        %2761 = vmatpush1.msra.mxu0 0.0
        %2762 = vmatprep.subr.mxu0 0.0
        %2763 = vmatpush1.msra.mxu0 0.0
        %2764 = vmatprep.mubr.f32.mxu0 0.0
        %2765 = vmatmul.mubr.f32.gmra.mrb[0].mxu0 %v2442
        %v2766 = vpop.f32.mrb[0].mxu0
        %v2767 = vadd.f32 0.0, %v2766
        %v2768 = vpop.f32.mrb[0].mxu0
        %2769 = vmatprep.mubr.f32.mxu0 0.0
        %2770 = vmatmul.mubr.f32.gmra.mrb[0].mxu0 %v2443
        %v2771 = vpop.f32.mrb[0].mxu0
        %v2772 = vadd.f32 0.0, %v2771
        %v2773 = vpop.f32.mrb[0].mxu0
        %2774 = vmatprep.mubr.f32.mxu0 0.0
        %2775 = vmatmul.mubr.f32.gmra.mrb[0].mxu0 %v2444
        %v2776 = vpop.f32.mrb[0].mxu0
        %v2777 = vadd.f32 0.0, %v2776
        %v2778 = vpop.f32.mrb[0].mxu0
        %2779 = vmatprep.mubr.f32.mxu0 0.0
        %2780 = vmatmul.mubr.f32.gmra.mrb[0].mxu0 %v2445
        %v2781 = vpop.f32.mrb[0].mxu0
        %v2782 = vadd.f32 0.0, %v2781
        %v2783 = vpop.f32.mrb[0].mxu0
        %2784 = vdwg.mxu0
        %v2785 = vadd.f32 %v2406, %v2767
        %v2786 = vadd.f32 %v2407, %v2772
        %v2787 = vadd.f32 %v2408, %v2777
        %v2788 = vadd.f32 %v2409, %v2782
        %s2789 = scalar_lea.vmem %s2, 640
        %v2790 = vld [vmem:[%s2789] sm:$0xff]
        %v2791 = vld [vmem:[%s2789 + $0x8] sm:$0xff]
        %v2792 = vld [vmem:[%s2789 + $0x10] sm:$0xff]
        %v2793 = vld [vmem:[%s2789 + $0x18] sm:$0xff]
        %v2794 = vld [vmem:[%s2789 + $0x20] sm:$0xff]
        %v2795 = vld [vmem:[%s2789 + $0x28] sm:$0xff]
        %v2796 = vld [vmem:[%s2789 + $0x30] sm:$0xff]
        %v2797 = vld [vmem:[%s2789 + $0x38] sm:$0xff]
        %v2798 = vld [vmem:[%s2789 + $0x40] sm:$0xff]
        %v2799 = vld [vmem:[%s2789 + $0x48] sm:$0xff]
        %v2800 = vld [vmem:[%s2789 + $0x50] sm:$0xff]
        %v2801 = vld [vmem:[%s2789 + $0x58] sm:$0xff]
        %v2802 = vld [vmem:[%s2789 + $0x60] sm:$0xff]
        %v2803 = vld [vmem:[%s2789 + $0x68] sm:$0xff]
        %v2804 = vld [vmem:[%s2789 + $0x70] sm:$0xff]
        %v2805 = vld [vmem:[%s2789 + $0x78] sm:$0xff]
        %2806 = vmatprep.subr.mxu0 0.0
        %2807 = vmatpush1.msra.mxu0 %v2790
        %2808 = vmatprep.subr.mxu0 0.0
        %2809 = vmatpush1.msra.mxu0 %v2791
        %2810 = vmatprep.subr.mxu0 0.0
        %2811 = vmatpush1.msra.mxu0 %v2792
        %2812 = vmatprep.subr.mxu0 0.0
        %2813 = vmatpush1.msra.mxu0 %v2793
        %2814 = vmatprep.subr.mxu0 0.0
        %2815 = vmatpush1.msra.mxu0 %v2794
        %2816 = vmatprep.subr.mxu0 0.0
        %2817 = vmatpush1.msra.mxu0 %v2795
        %2818 = vmatprep.subr.mxu0 0.0
        %2819 = vmatpush1.msra.mxu0 %v2796
        %2820 = vmatprep.subr.mxu0 0.0
        %2821 = vmatpush1.msra.mxu0 %v2797
        %2822 = vmatprep.subr.mxu0 0.0
        %2823 = vmatpush1.msra.mxu0 %v2798
        %2824 = vmatprep.subr.mxu0 0.0
        %2825 = vmatpush1.msra.mxu0 %v2799
        %2826 = vmatprep.subr.mxu0 0.0
        %2827 = vmatpush1.msra.mxu0 %v2800
        %2828 = vmatprep.subr.mxu0 0.0
        %2829 = vmatpush1.msra.mxu0 %v2801
        %2830 = vmatprep.subr.mxu0 0.0
        %2831 = vmatpush1.msra.mxu0 %v2802
        %2832 = vmatprep.subr.mxu0 0.0
        %2833 = vmatpush1.msra.mxu0 %v2803
        %2834 = vmatprep.subr.mxu0 0.0
        %2835 = vmatpush1.msra.mxu0 %v2804
        %2836 = vmatprep.subr.mxu0 0.0
        %2837 = vmatpush1.msra.mxu0 %v2805
        %2838 = vmatprep.subr.mxu0 0.0
        %2839 = vmatpush1.msra.mxu0 0.0
        %2840 = vmatprep.subr.mxu0 0.0
        %2841 = vmatpush1.msra.mxu0 0.0
        %2842 = vmatprep.subr.mxu0 0.0
        %2843 = vmatpush1.msra.mxu0 0.0
        %2844 = vmatprep.subr.mxu0 0.0
        %2845 = vmatpush1.msra.mxu0 0.0
        %2846 = vmatprep.subr.mxu0 0.0
        %2847 = vmatpush1.msra.mxu0 0.0
        %2848 = vmatprep.subr.mxu0 0.0
        %2849 = vmatpush1.msra.mxu0 0.0
        %2850 = vmatprep.subr.mxu0 0.0
        %2851 = vmatpush1.msra.mxu0 0.0
        %2852 = vmatprep.subr.mxu0 0.0
        %2853 = vmatpush1.msra.mxu0 0.0
        %2854 = vmatprep.subr.mxu0 0.0
        %2855 = vmatpush1.msra.mxu0 0.0
        %2856 = vmatprep.subr.mxu0 0.0
        %2857 = vmatpush1.msra.mxu0 0.0
        %2858 = vmatprep.subr.mxu0 0.0
        %2859 = vmatpush1.msra.mxu0 0.0
        %2860 = vmatprep.subr.mxu0 0.0
        %2861 = vmatpush1.msra.mxu0 0.0
        %2862 = vmatprep.subr.mxu0 0.0
        %2863 = vmatpush1.msra.mxu0 0.0
        %2864 = vmatprep.subr.mxu0 0.0
        %2865 = vmatpush1.msra.mxu0 0.0
        %2866 = vmatprep.subr.mxu0 0.0
        %2867 = vmatpush1.msra.mxu0 0.0
        %2868 = vmatprep.subr.mxu0 0.0
        %2869 = vmatpush1.msra.mxu0 0.0
        %2870 = vmatprep.mubr.f32.mxu0 0.0
        %2871 = vmatmul.mubr.f32.gmra.mrb[0].mxu0 %v2412
        %v2872 = vpop.f32.mrb[0].mxu0
        %v2873 = vadd.f32 0.0, %v2872
        %v2874 = vpop.f32.mrb[0].mxu0
        %2875 = vmatprep.mubr.f32.mxu0 0.0
        %2876 = vmatmul.mubr.f32.gmra.mrb[0].mxu0 %v2413
        %v2877 = vpop.f32.mrb[0].mxu0
        %v2878 = vadd.f32 0.0, %v2877
        %v2879 = vpop.f32.mrb[0].mxu0
        %2880 = vmatprep.mubr.f32.mxu0 0.0
        %2881 = vmatmul.mubr.f32.gmra.mrb[0].mxu0 %v2414
        %v2882 = vpop.f32.mrb[0].mxu0
        %v2883 = vadd.f32 0.0, %v2882
        %v2884 = vpop.f32.mrb[0].mxu0
        %2885 = vmatprep.mubr.f32.mxu0 0.0
        %2886 = vmatmul.mubr.f32.gmra.mrb[0].mxu0 %v2415
        %v2887 = vpop.f32.mrb[0].mxu0
        %v2888 = vadd.f32 0.0, %v2887
        %v2889 = vpop.f32.mrb[0].mxu0
        %2890 = vmatprep.mubr.f32.mxu0 0.0
        %2891 = vmatmul.mubr.f32.gmra.mrb[0].mxu0 %v2416
        %v2892 = vpop.f32.mrb[0].mxu0
        %v2893 = vadd.f32 0.0, %v2892
        %v2894 = vpop.f32.mrb[0].mxu0
        %2895 = vmatprep.mubr.f32.mxu0 0.0
        %2896 = vmatmul.mubr.f32.gmra.mrb[0].mxu0 %v2417
        %v2897 = vpop.f32.mrb[0].mxu0
        %v2898 = vadd.f32 0.0, %v2897
        %v2899 = vpop.f32.mrb[0].mxu0
        %2900 = vmatprep.mubr.f32.mxu0 0.0
        %2901 = vmatmul.mubr.f32.gmra.mrb[0].mxu0 %v2418
        %v2902 = vpop.f32.mrb[0].mxu0
        %v2903 = vadd.f32 0.0, %v2902
        %v2904 = vpop.f32.mrb[0].mxu0
        %2905 = vmatprep.mubr.f32.mxu0 0.0
        %2906 = vmatmul.mubr.f32.gmra.mrb[0].mxu0 %v2419
        %v2907 = vpop.f32.mrb[0].mxu0
        %v2908 = vadd.f32 0.0, %v2907
        %v2909 = vpop.f32.mrb[0].mxu0
        %2910 = vmatprep.mubr.f32.mxu0 0.0
        %2911 = vmatmul.mubr.f32.gmra.mrb[0].mxu0 %v2420
        %v2912 = vpop.f32.mrb[0].mxu0
        %v2913 = vadd.f32 0.0, %v2912
        %v2914 = vpop.f32.mrb[0].mxu0
        %2915 = vmatprep.mubr.f32.mxu0 0.0
        %2916 = vmatmul.mubr.f32.gmra.mrb[0].mxu0 %v2421
        %v2917 = vpop.f32.mrb[0].mxu0
        %v2918 = vadd.f32 0.0, %v2917
        %v2919 = vpop.f32.mrb[0].mxu0
        %2920 = vmatprep.mubr.f32.mxu0 0.0
        %2921 = vmatmul.mubr.f32.gmra.mrb[0].mxu0 %v2422
        %v2922 = vpop.f32.mrb[0].mxu0
        %v2923 = vadd.f32 0.0, %v2922
        %v2924 = vpop.f32.mrb[0].mxu0
        %2925 = vmatprep.mubr.f32.mxu0 0.0
        %2926 = vmatmul.mubr.f32.gmra.mrb[0].mxu0 %v2423
        %v2927 = vpop.f32.mrb[0].mxu0
        %v2928 = vadd.f32 0.0, %v2927
        %v2929 = vpop.f32.mrb[0].mxu0
        %2930 = vmatprep.mubr.f32.mxu0 0.0
        %2931 = vmatmul.mubr.f32.gmra.mrb[0].mxu0 %v2424
        %v2932 = vpop.f32.mrb[0].mxu0
        %v2933 = vadd.f32 0.0, %v2932
        %v2934 = vpop.f32.mrb[0].mxu0
        %2935 = vmatprep.mubr.f32.mxu0 0.0
        %2936 = vmatmul.mubr.f32.gmra.mrb[0].mxu0 %v2425
        %v2937 = vpop.f32.mrb[0].mxu0
        %v2938 = vadd.f32 0.0, %v2937
        %v2939 = vpop.f32.mrb[0].mxu0
        %2940 = vmatprep.mubr.f32.mxu0 0.0
        %2941 = vmatmul.mubr.f32.gmra.mrb[0].mxu0 %v2426
        %v2942 = vpop.f32.mrb[0].mxu0
        %v2943 = vadd.f32 0.0, %v2942
        %v2944 = vpop.f32.mrb[0].mxu0
        %2945 = vmatprep.mubr.f32.mxu0 0.0
        %2946 = vmatmul.mubr.f32.gmra.mrb[0].mxu0 %v2427
        %v2947 = vpop.f32.mrb[0].mxu0
        %v2948 = vadd.f32 0.0, %v2947
        %v2949 = vpop.f32.mrb[0].mxu0
        %2950 = vmatprep.mubr.f32.mxu0 0.0
        %2951 = vmatmul.mubr.f32.gmra.mrb[0].mxu0 %v2428
        %v2952 = vpop.f32.mrb[0].mxu0
        %v2953 = vadd.f32 0.0, %v2952
        %v2954 = vpop.f32.mrb[0].mxu0
        %2955 = vmatprep.mubr.f32.mxu0 0.0
        %2956 = vmatmul.mubr.f32.gmra.mrb[0].mxu0 %v2429
        %v2957 = vpop.f32.mrb[0].mxu0
        %v2958 = vadd.f32 0.0, %v2957
        %v2959 = vpop.f32.mrb[0].mxu0
        %2960 = vmatprep.mubr.f32.mxu0 0.0
        %2961 = vmatmul.mubr.f32.gmra.mrb[0].mxu0 %v2430
        %v2962 = vpop.f32.mrb[0].mxu0
        %v2963 = vadd.f32 0.0, %v2962
        %v2964 = vpop.f32.mrb[0].mxu0
        %2965 = vmatprep.mubr.f32.mxu0 0.0
        %2966 = vmatmul.mubr.f32.gmra.mrb[0].mxu0 %v2431
        %v2967 = vpop.f32.mrb[0].mxu0
        %v2968 = vadd.f32 0.0, %v2967
        %v2969 = vpop.f32.mrb[0].mxu0
        %2970 = vmatprep.mubr.f32.mxu0 0.0
        %2971 = vmatmul.mubr.f32.gmra.mrb[0].mxu0 %v2432
        %v2972 = vpop.f32.mrb[0].mxu0
        %v2973 = vadd.f32 0.0, %v2972
        %v2974 = vpop.f32.mrb[0].mxu0
        %2975 = vmatprep.mubr.f32.mxu0 0.0
        %2976 = vmatmul.mubr.f32.gmra.mrb[0].mxu0 %v2433
        %v2977 = vpop.f32.mrb[0].mxu0
        %v2978 = vadd.f32 0.0, %v2977
        %v2979 = vpop.f32.mrb[0].mxu0
        %2980 = vmatprep.mubr.f32.mxu0 0.0
        %2981 = vmatmul.mubr.f32.gmra.mrb[0].mxu0 %v2434
        %v2982 = vpop.f32.mrb[0].mxu0
        %v2983 = vadd.f32 0.0, %v2982
        %v2984 = vpop.f32.mrb[0].mxu0
        %2985 = vmatprep.mubr.f32.mxu0 0.0
        %2986 = vmatmul.mubr.f32.gmra.mrb[0].mxu0 %v2435
        %v2987 = vpop.f32.mrb[0].mxu0
        %v2988 = vadd.f32 0.0, %v2987
        %v2989 = vpop.f32.mrb[0].mxu0
        %2990 = vmatprep.mubr.f32.mxu0 0.0
        %2991 = vmatmul.mubr.f32.gmra.mrb[0].mxu0 %v2436
        %v2992 = vpop.f32.mrb[0].mxu0
        %v2993 = vadd.f32 0.0, %v2992
        %v2994 = vpop.f32.mrb[0].mxu0
        %2995 = vmatprep.mubr.f32.mxu0 0.0
        %2996 = vmatmul.mubr.f32.gmra.mrb[0].mxu0 %v2437
        %v2997 = vpop.f32.mrb[0].mxu0
        %v2998 = vadd.f32 0.0, %v2997
        %v2999 = vpop.f32.mrb[0].mxu0
        %3000 = vmatprep.mubr.f32.mxu0 0.0
        %3001 = vmatmul.mubr.f32.gmra.mrb[0].mxu0 %v2438
        %v3002 = vpop.f32.mrb[0].mxu0
        %v3003 = vadd.f32 0.0, %v3002
        %v3004 = vpop.f32.mrb[0].mxu0
        %3005 = vmatprep.mubr.f32.mxu0 0.0
        %3006 = vmatmul.mubr.f32.gmra.mrb[0].mxu0 %v2439
        %v3007 = vpop.f32.mrb[0].mxu0
        %v3008 = vadd.f32 0.0, %v3007
        %v3009 = vpop.f32.mrb[0].mxu0
        %3010 = vdwg.mxu0
        %v3011 = vadd.f32 %v2672, %v2873
        %v3012 = vadd.f32 %v2673, %v2878
        %v3013 = vadd.f32 %v2674, %v2883
        %v3014 = vadd.f32 %v2675, %v2888
        %v3015 = vadd.f32 %v2676, %v2893
        %v3016 = vadd.f32 %v2677, %v2898
        %v3017 = vadd.f32 %v2678, %v2903
        %v3018 = vadd.f32 %v2679, %v2908
        %v3019 = vadd.f32 %v2680, %v2913
        %v3020 = vadd.f32 %v2681, %v2918
        %v3021 = vadd.f32 %v2682, %v2923
        %v3022 = vadd.f32 %v2683, %v2928
        %v3023 = vadd.f32 %v2684, %v2933
        %v3024 = vadd.f32 %v2685, %v2938
        %v3025 = vadd.f32 %v2686, %v2943
        %v3026 = vadd.f32 %v2687, %v2948
        %v3027 = vadd.f32 %v2688, %v2953
        %v3028 = vadd.f32 %v2689, %v2958
        %v3029 = vadd.f32 %v2690, %v2963
        %v3030 = vadd.f32 %v2691, %v2968
        %v3031 = vadd.f32 %v2692, %v2973
        %v3032 = vadd.f32 %v2693, %v2978
        %v3033 = vadd.f32 %v2694, %v2983
        %v3034 = vadd.f32 %v2695, %v2988
        %v3035 = vadd.f32 %v2696, %v2993
        %v3036 = vadd.f32 %v2697, %v2998
        %v3037 = vadd.f32 %v2698, %v3003
        %v3038 = vadd.f32 %v2699, %v3008
        %3039 = vmatprep.subr.mxu0 0.0
        %3040 = vmatpush1.msra.mxu0 %v2790
        %3041 = vmatprep.subr.mxu0 0.0
        %3042 = vmatpush1.msra.mxu0 %v2791
        %3043 = vmatprep.subr.mxu0 0.0
        %3044 = vmatpush1.msra.mxu0 %v2792
        %3045 = vmatprep.subr.mxu0 0.0
        %3046 = vmatpush1.msra.mxu0 %v2793
        %3047 = vmatprep.subr.mxu0 0.0
        %3048 = vmatpush1.msra.mxu0 %v2794
        %3049 = vmatprep.subr.mxu0 0.0
        %3050 = vmatpush1.msra.mxu0 %v2795
        %3051 = vmatprep.subr.mxu0 0.0
        %3052 = vmatpush1.msra.mxu0 %v2796
        %3053 = vmatprep.subr.mxu0 0.0
        %3054 = vmatpush1.msra.mxu0 %v2797
        %3055 = vmatprep.subr.mxu0 0.0
        %3056 = vmatpush1.msra.mxu0 %v2798
        %3057 = vmatprep.subr.mxu0 0.0
        %3058 = vmatpush1.msra.mxu0 %v2799
        %3059 = vmatprep.subr.mxu0 0.0
        %3060 = vmatpush1.msra.mxu0 %v2800
        %3061 = vmatprep.subr.mxu0 0.0
        %3062 = vmatpush1.msra.mxu0 %v2801
        %3063 = vmatprep.subr.mxu0 0.0
        %3064 = vmatpush1.msra.mxu0 %v2802
        %3065 = vmatprep.subr.mxu0 0.0
        %3066 = vmatpush1.msra.mxu0 %v2803
        %3067 = vmatprep.subr.mxu0 0.0
        %3068 = vmatpush1.msra.mxu0 %v2804
        %3069 = vmatprep.subr.mxu0 0.0
        %3070 = vmatpush1.msra.mxu0 %v2805
        %3071 = vmatprep.subr.mxu0 0.0
        %3072 = vmatpush1.msra.mxu0 0.0
        %3073 = vmatprep.subr.mxu0 0.0
        %3074 = vmatpush1.msra.mxu0 0.0
        %3075 = vmatprep.subr.mxu0 0.0
        %3076 = vmatpush1.msra.mxu0 0.0
        %3077 = vmatprep.subr.mxu0 0.0
        %3078 = vmatpush1.msra.mxu0 0.0
        %3079 = vmatprep.subr.mxu0 0.0
        %3080 = vmatpush1.msra.mxu0 0.0
        %3081 = vmatprep.subr.mxu0 0.0
        %3082 = vmatpush1.msra.mxu0 0.0
        %3083 = vmatprep.subr.mxu0 0.0
        %3084 = vmatpush1.msra.mxu0 0.0
        %3085 = vmatprep.subr.mxu0 0.0
        %3086 = vmatpush1.msra.mxu0 0.0
        %3087 = vmatprep.subr.mxu0 0.0
        %3088 = vmatpush1.msra.mxu0 0.0
        %3089 = vmatprep.subr.mxu0 0.0
        %3090 = vmatpush1.msra.mxu0 0.0
        %3091 = vmatprep.subr.mxu0 0.0
        %3092 = vmatpush1.msra.mxu0 0.0
        %3093 = vmatprep.subr.mxu0 0.0
        %3094 = vmatpush1.msra.mxu0 0.0
        %3095 = vmatprep.subr.mxu0 0.0
        %3096 = vmatpush1.msra.mxu0 0.0
        %3097 = vmatprep.subr.mxu0 0.0
        %3098 = vmatpush1.msra.mxu0 0.0
        %3099 = vmatprep.subr.mxu0 0.0
        %3100 = vmatpush1.msra.mxu0 0.0
        %3101 = vmatprep.subr.mxu0 0.0
        %3102 = vmatpush1.msra.mxu0 0.0
        %3103 = vmatprep.mubr.f32.mxu0 0.0
        %3104 = vmatmul.mubr.f32.gmra.mrb[0].mxu0 %v2444
        %v3105 = vpop.f32.mrb[0].mxu0
        %v3106 = vadd.f32 0.0, %v3105
        %v3107 = vpop.f32.mrb[0].mxu0
        %3108 = vmatprep.mubr.f32.mxu0 0.0
        %3109 = vmatmul.mubr.f32.gmra.mrb[0].mxu0 %v2445
        %v3110 = vpop.f32.mrb[0].mxu0
        %v3111 = vadd.f32 0.0, %v3110
        %v3112 = vpop.f32.mrb[0].mxu0
        %3113 = vmatprep.mubr.f32.mxu0 0.0
        %3114 = vmatmul.mubr.f32.gmra.mrb[0].mxu0 %v2446
        %v3115 = vpop.f32.mrb[0].mxu0
        %v3116 = vadd.f32 0.0, %v3115
        %v3117 = vpop.f32.mrb[0].mxu0
        %3118 = vmatprep.mubr.f32.mxu0 0.0
        %3119 = vmatmul.mubr.f32.gmra.mrb[0].mxu0 %v2447
        %v3120 = vpop.f32.mrb[0].mxu0
        %v3121 = vadd.f32 0.0, %v3120
        %v3122 = vpop.f32.mrb[0].mxu0
        %3123 = vdwg.mxu0
        %v3124 = vadd.f32 %v2785, %v3106
        %v3125 = vadd.f32 %v2786, %v3111
        %v3126 = vadd.f32 %v2787, %v3116
        %v3127 = vadd.f32 %v2788, %v3121
        %s3128 = scalar_lea.vmem %s2, 1024
        %v3129 = vld [vmem:[%s3128] sm:$0xff]
        %v3130 = vld [vmem:[%s3128 + $0x8] sm:$0xff]
        %v3131 = vld [vmem:[%s3128 + $0x10] sm:$0xff]
        %v3132 = vld [vmem:[%s3128 + $0x18] sm:$0xff]
        %v3133 = vld [vmem:[%s3128 + $0x20] sm:$0xff]
        %v3134 = vld [vmem:[%s3128 + $0x28] sm:$0xff]
        %v3135 = vld [vmem:[%s3128 + $0x30] sm:$0xff]
        %v3136 = vld [vmem:[%s3128 + $0x38] sm:$0xff]
        %v3137 = vld [vmem:[%s3128 + $0x40] sm:$0xff]
        %v3138 = vld [vmem:[%s3128 + $0x48] sm:$0xff]
        %v3139 = vld [vmem:[%s3128 + $0x50] sm:$0xff]
        %v3140 = vld [vmem:[%s3128 + $0x58] sm:$0xff]
        %v3141 = vld [vmem:[%s3128 + $0x60] sm:$0xff]
        %v3142 = vld [vmem:[%s3128 + $0x68] sm:$0xff]
        %v3143 = vld [vmem:[%s3128 + $0x70] sm:$0xff]
        %v3144 = vld [vmem:[%s3128 + $0x78] sm:$0xff]
        %3145 = vmatprep.subr.mxu0 0.0
        %3146 = vmatpush1.msra.mxu0 %v3129
        %3147 = vmatprep.subr.mxu0 0.0
        %3148 = vmatpush1.msra.mxu0 %v3130
        %3149 = vmatprep.subr.mxu0 0.0
        %3150 = vmatpush1.msra.mxu0 %v3131
        %3151 = vmatprep.subr.mxu0 0.0
        %3152 = vmatpush1.msra.mxu0 %v3132
        %3153 = vmatprep.subr.mxu0 0.0
        %3154 = vmatpush1.msra.mxu0 %v3133
        %3155 = vmatprep.subr.mxu0 0.0
        %3156 = vmatpush1.msra.mxu0 %v3134
        %3157 = vmatprep.subr.mxu0 0.0
        %3158 = vmatpush1.msra.mxu0 %v3135
        %3159 = vmatprep.subr.mxu0 0.0
        %3160 = vmatpush1.msra.mxu0 %v3136
        %3161 = vmatprep.subr.mxu0 0.0
        %3162 = vmatpush1.msra.mxu0 %v3137
        %3163 = vmatprep.subr.mxu0 0.0
        %3164 = vmatpush1.msra.mxu0 %v3138
        %3165 = vmatprep.subr.mxu0 0.0
        %3166 = vmatpush1.msra.mxu0 %v3139
        %3167 = vmatprep.subr.mxu0 0.0
        %3168 = vmatpush1.msra.mxu0 %v3140
        %3169 = vmatprep.subr.mxu0 0.0
        %3170 = vmatpush1.msra.mxu0 %v3141
        %3171 = vmatprep.subr.mxu0 0.0
        %3172 = vmatpush1.msra.mxu0 %v3142
        %3173 = vmatprep.subr.mxu0 0.0
        %3174 = vmatpush1.msra.mxu0 %v3143
        %3175 = vmatprep.subr.mxu0 0.0
        %3176 = vmatpush1.msra.mxu0 %v3144
        %3177 = vmatprep.subr.mxu0 0.0
        %3178 = vmatpush1.msra.mxu0 0.0
        %3179 = vmatprep.subr.mxu0 0.0
        %3180 = vmatpush1.msra.mxu0 0.0
        %3181 = vmatprep.subr.mxu0 0.0
        %3182 = vmatpush1.msra.mxu0 0.0
        %3183 = vmatprep.subr.mxu0 0.0
        %3184 = vmatpush1.msra.mxu0 0.0
        %3185 = vmatprep.subr.mxu0 0.0
        %3186 = vmatpush1.msra.mxu0 0.0
        %3187 = vmatprep.subr.mxu0 0.0
        %3188 = vmatpush1.msra.mxu0 0.0
        %3189 = vmatprep.subr.mxu0 0.0
        %3190 = vmatpush1.msra.mxu0 0.0
        %3191 = vmatprep.subr.mxu0 0.0
        %3192 = vmatpush1.msra.mxu0 0.0
        %3193 = vmatprep.subr.mxu0 0.0
        %3194 = vmatpush1.msra.mxu0 0.0
        %3195 = vmatprep.subr.mxu0 0.0
        %3196 = vmatpush1.msra.mxu0 0.0
        %3197 = vmatprep.subr.mxu0 0.0
        %3198 = vmatpush1.msra.mxu0 0.0
        %3199 = vmatprep.subr.mxu0 0.0
        %3200 = vmatpush1.msra.mxu0 0.0
        %3201 = vmatprep.subr.mxu0 0.0
        %3202 = vmatpush1.msra.mxu0 0.0
        %3203 = vmatprep.subr.mxu0 0.0
        %3204 = vmatpush1.msra.mxu0 0.0
        %3205 = vmatprep.subr.mxu0 0.0
        %3206 = vmatpush1.msra.mxu0 0.0
        %3207 = vmatprep.subr.mxu0 0.0
        %3208 = vmatpush1.msra.mxu0 0.0
        %3209 = vmatprep.mubr.f32.mxu0 0.0
        %3210 = vmatmul.mubr.f32.gmra.mrb[0].mxu0 %v2414
        %v3211 = vpop.f32.mrb[0].mxu0
        %v3212 = vadd.f32 0.0, %v3211
        %v3213 = vpop.f32.mrb[0].mxu0
        %3214 = vmatprep.mubr.f32.mxu0 0.0
        %3215 = vmatmul.mubr.f32.gmra.mrb[0].mxu0 %v2415
        %v3216 = vpop.f32.mrb[0].mxu0
        %v3217 = vadd.f32 0.0, %v3216
        %v3218 = vpop.f32.mrb[0].mxu0
        %3219 = vmatprep.mubr.f32.mxu0 0.0
        %3220 = vmatmul.mubr.f32.gmra.mrb[0].mxu0 %v2416
        %v3221 = vpop.f32.mrb[0].mxu0
        %v3222 = vadd.f32 0.0, %v3221
        %v3223 = vpop.f32.mrb[0].mxu0
        %3224 = vmatprep.mubr.f32.mxu0 0.0
        %3225 = vmatmul.mubr.f32.gmra.mrb[0].mxu0 %v2417
        %v3226 = vpop.f32.mrb[0].mxu0
        %v3227 = vadd.f32 0.0, %v3226
        %v3228 = vpop.f32.mrb[0].mxu0
        %3229 = vmatprep.mubr.f32.mxu0 0.0
        %3230 = vmatmul.mubr.f32.gmra.mrb[0].mxu0 %v2418
        %v3231 = vpop.f32.mrb[0].mxu0
        %v3232 = vadd.f32 0.0, %v3231
        %v3233 = vpop.f32.mrb[0].mxu0
        %3234 = vmatprep.mubr.f32.mxu0 0.0
        %3235 = vmatmul.mubr.f32.gmra.mrb[0].mxu0 %v2419
        %v3236 = vpop.f32.mrb[0].mxu0
        %v3237 = vadd.f32 0.0, %v3236
        %v3238 = vpop.f32.mrb[0].mxu0
        %3239 = vmatprep.mubr.f32.mxu0 0.0
        %3240 = vmatmul.mubr.f32.gmra.mrb[0].mxu0 %v2420
        %v3241 = vpop.f32.mrb[0].mxu0
        %v3242 = vadd.f32 0.0, %v3241
        %v3243 = vpop.f32.mrb[0].mxu0
        %3244 = vmatprep.mubr.f32.mxu0 0.0
        %3245 = vmatmul.mubr.f32.gmra.mrb[0].mxu0 %v2421
        %v3246 = vpop.f32.mrb[0].mxu0
        %v3247 = vadd.f32 0.0, %v3246
        %v3248 = vpop.f32.mrb[0].mxu0
        %3249 = vmatprep.mubr.f32.mxu0 0.0
        %3250 = vmatmul.mubr.f32.gmra.mrb[0].mxu0 %v2422
        %v3251 = vpop.f32.mrb[0].mxu0
        %v3252 = vadd.f32 0.0, %v3251
        %v3253 = vpop.f32.mrb[0].mxu0
        %3254 = vmatprep.mubr.f32.mxu0 0.0
        %3255 = vmatmul.mubr.f32.gmra.mrb[0].mxu0 %v2423
        %v3256 = vpop.f32.mrb[0].mxu0
        %v3257 = vadd.f32 0.0, %v3256
        %v3258 = vpop.f32.mrb[0].mxu0
        %3259 = vmatprep.mubr.f32.mxu0 0.0
        %3260 = vmatmul.mubr.f32.gmra.mrb[0].mxu0 %v2424
        %v3261 = vpop.f32.mrb[0].mxu0
        %v3262 = vadd.f32 0.0, %v3261
        %v3263 = vpop.f32.mrb[0].mxu0
        %3264 = vmatprep.mubr.f32.mxu0 0.0
        %3265 = vmatmul.mubr.f32.gmra.mrb[0].mxu0 %v2425
        %v3266 = vpop.f32.mrb[0].mxu0
        %v3267 = vadd.f32 0.0, %v3266
        %v3268 = vpop.f32.mrb[0].mxu0
        %3269 = vmatprep.mubr.f32.mxu0 0.0
        %3270 = vmatmul.mubr.f32.gmra.mrb[0].mxu0 %v2426
        %v3271 = vpop.f32.mrb[0].mxu0
        %v3272 = vadd.f32 0.0, %v3271
        %v3273 = vpop.f32.mrb[0].mxu0
        %3274 = vmatprep.mubr.f32.mxu0 0.0
        %3275 = vmatmul.mubr.f32.gmra.mrb[0].mxu0 %v2427
        %v3276 = vpop.f32.mrb[0].mxu0
        %v3277 = vadd.f32 0.0, %v3276
        %v3278 = vpop.f32.mrb[0].mxu0
        %3279 = vmatprep.mubr.f32.mxu0 0.0
        %3280 = vmatmul.mubr.f32.gmra.mrb[0].mxu0 %v2428
        %v3281 = vpop.f32.mrb[0].mxu0
        %v3282 = vadd.f32 0.0, %v3281
        %v3283 = vpop.f32.mrb[0].mxu0
        %3284 = vmatprep.mubr.f32.mxu0 0.0
        %3285 = vmatmul.mubr.f32.gmra.mrb[0].mxu0 %v2429
        %v3286 = vpop.f32.mrb[0].mxu0
        %v3287 = vadd.f32 0.0, %v3286
        %v3288 = vpop.f32.mrb[0].mxu0
        %3289 = vmatprep.mubr.f32.mxu0 0.0
        %3290 = vmatmul.mubr.f32.gmra.mrb[0].mxu0 %v2430
        %v3291 = vpop.f32.mrb[0].mxu0
        %v3292 = vadd.f32 0.0, %v3291
        %v3293 = vpop.f32.mrb[0].mxu0
        %3294 = vmatprep.mubr.f32.mxu0 0.0
        %3295 = vmatmul.mubr.f32.gmra.mrb[0].mxu0 %v2431
        %v3296 = vpop.f32.mrb[0].mxu0
        %v3297 = vadd.f32 0.0, %v3296
        %v3298 = vpop.f32.mrb[0].mxu0
        %3299 = vmatprep.mubr.f32.mxu0 0.0
        %3300 = vmatmul.mubr.f32.gmra.mrb[0].mxu0 %v2432
        %v3301 = vpop.f32.mrb[0].mxu0
        %v3302 = vadd.f32 0.0, %v3301
        %v3303 = vpop.f32.mrb[0].mxu0
        %3304 = vmatprep.mubr.f32.mxu0 0.0
        %3305 = vmatmul.mubr.f32.gmra.mrb[0].mxu0 %v2433
        %v3306 = vpop.f32.mrb[0].mxu0
        %v3307 = vadd.f32 0.0, %v3306
        %v3308 = vpop.f32.mrb[0].mxu0
        %3309 = vmatprep.mubr.f32.mxu0 0.0
        %3310 = vmatmul.mubr.f32.gmra.mrb[0].mxu0 %v2434
        %v3311 = vpop.f32.mrb[0].mxu0
        %v3312 = vadd.f32 0.0, %v3311
        %v3313 = vpop.f32.mrb[0].mxu0
        %3314 = vmatprep.mubr.f32.mxu0 0.0
        %3315 = vmatmul.mubr.f32.gmra.mrb[0].mxu0 %v2435
        %v3316 = vpop.f32.mrb[0].mxu0
        %v3317 = vadd.f32 0.0, %v3316
        %v3318 = vpop.f32.mrb[0].mxu0
        %3319 = vmatprep.mubr.f32.mxu0 0.0
        %3320 = vmatmul.mubr.f32.gmra.mrb[0].mxu0 %v2436
        %v3321 = vpop.f32.mrb[0].mxu0
        %v3322 = vadd.f32 0.0, %v3321
        %v3323 = vpop.f32.mrb[0].mxu0
        %3324 = vmatprep.mubr.f32.mxu0 0.0
        %3325 = vmatmul.mubr.f32.gmra.mrb[0].mxu0 %v2437
        %v3326 = vpop.f32.mrb[0].mxu0
        %v3327 = vadd.f32 0.0, %v3326
        %v3328 = vpop.f32.mrb[0].mxu0
        %3329 = vmatprep.mubr.f32.mxu0 0.0
        %3330 = vmatmul.mubr.f32.gmra.mrb[0].mxu0 %v2438
        %v3331 = vpop.f32.mrb[0].mxu0
        %v3332 = vadd.f32 0.0, %v3331
        %v3333 = vpop.f32.mrb[0].mxu0
        %3334 = vmatprep.mubr.f32.mxu0 0.0
        %3335 = vmatmul.mubr.f32.gmra.mrb[0].mxu0 %v2439
        %v3336 = vpop.f32.mrb[0].mxu0
        %v3337 = vadd.f32 0.0, %v3336
        %v3338 = vpop.f32.mrb[0].mxu0
        %3339 = vmatprep.mubr.f32.mxu0 0.0
        %3340 = vmatmul.mubr.f32.gmra.mrb[0].mxu0 %v2440
        %v3341 = vpop.f32.mrb[0].mxu0
        %v3342 = vadd.f32 0.0, %v3341
        %v3343 = vpop.f32.mrb[0].mxu0
        %3344 = vmatprep.mubr.f32.mxu0 0.0
        %3345 = vmatmul.mubr.f32.gmra.mrb[0].mxu0 %v2441
        %v3346 = vpop.f32.mrb[0].mxu0
        %v3347 = vadd.f32 0.0, %v3346
        %v3348 = vpop.f32.mrb[0].mxu0
        %3349 = vdwg.mxu0
        %v3350 = vadd.f32 %v3011, %v3212
        %v3351 = vadd.f32 %v3012, %v3217
        %v3352 = vadd.f32 %v3013, %v3222
        %v3353 = vadd.f32 %v3014, %v3227
        %v3354 = vadd.f32 %v3015, %v3232
        %v3355 = vadd.f32 %v3016, %v3237
        %v3356 = vadd.f32 %v3017, %v3242
        %v3357 = vadd.f32 %v3018, %v3247
        %v3358 = vadd.f32 %v3019, %v3252
        %v3359 = vadd.f32 %v3020, %v3257
        %v3360 = vadd.f32 %v3021, %v3262
        %v3361 = vadd.f32 %v3022, %v3267
        %v3362 = vadd.f32 %v3023, %v3272
        %v3363 = vadd.f32 %v3024, %v3277
        %v3364 = vadd.f32 %v3025, %v3282
        %v3365 = vadd.f32 %v3026, %v3287
        %v3366 = vadd.f32 %v3027, %v3292
        %v3367 = vadd.f32 %v3028, %v3297
        %v3368 = vadd.f32 %v3029, %v3302
        %v3369 = vadd.f32 %v3030, %v3307
        %v3370 = vadd.f32 %v3031, %v3312
        %v3371 = vadd.f32 %v3032, %v3317
        %v3372 = vadd.f32 %v3033, %v3322
        %v3373 = vadd.f32 %v3034, %v3327
        %v3374 = vadd.f32 %v3035, %v3332
        %v3375 = vadd.f32 %v3036, %v3337
        %v3376 = vadd.f32 %v3037, %v3342
        %v3377 = vadd.f32 %v3038, %v3347
        %3378 = vmatprep.subr.mxu0 0.0
        %3379 = vmatpush1.msra.mxu0 %v3129
        %3380 = vmatprep.subr.mxu0 0.0
        %3381 = vmatpush1.msra.mxu0 %v3130
        %3382 = vmatprep.subr.mxu0 0.0
        %3383 = vmatpush1.msra.mxu0 %v3131
        %3384 = vmatprep.subr.mxu0 0.0
        %3385 = vmatpush1.msra.mxu0 %v3132
        %3386 = vmatprep.subr.mxu0 0.0
        %3387 = vmatpush1.msra.mxu0 %v3133
        %3388 = vmatprep.subr.mxu0 0.0
        %3389 = vmatpush1.msra.mxu0 %v3134
        %3390 = vmatprep.subr.mxu0 0.0
        %3391 = vmatpush1.msra.mxu0 %v3135
        %3392 = vmatprep.subr.mxu0 0.0
        %3393 = vmatpush1.msra.mxu0 %v3136
        %3394 = vmatprep.subr.mxu0 0.0
        %3395 = vmatpush1.msra.mxu0 %v3137
        %3396 = vmatprep.subr.mxu0 0.0
        %3397 = vmatpush1.msra.mxu0 %v3138
        %3398 = vmatprep.subr.mxu0 0.0
        %3399 = vmatpush1.msra.mxu0 %v3139
        %3400 = vmatprep.subr.mxu0 0.0
        %3401 = vmatpush1.msra.mxu0 %v3140
        %3402 = vmatprep.subr.mxu0 0.0
        %3403 = vmatpush1.msra.mxu0 %v3141
        %3404 = vmatprep.subr.mxu0 0.0
        %3405 = vmatpush1.msra.mxu0 %v3142
        %3406 = vmatprep.subr.mxu0 0.0
        %3407 = vmatpush1.msra.mxu0 %v3143
        %3408 = vmatprep.subr.mxu0 0.0
        %3409 = vmatpush1.msra.mxu0 %v3144
        %3410 = vmatprep.subr.mxu0 0.0
        %3411 = vmatpush1.msra.mxu0 0.0
        %3412 = vmatprep.subr.mxu0 0.0
        %3413 = vmatpush1.msra.mxu0 0.0
        %3414 = vmatprep.subr.mxu0 0.0
        %3415 = vmatpush1.msra.mxu0 0.0
        %3416 = vmatprep.subr.mxu0 0.0
        %3417 = vmatpush1.msra.mxu0 0.0
        %3418 = vmatprep.subr.mxu0 0.0
        %3419 = vmatpush1.msra.mxu0 0.0
        %3420 = vmatprep.subr.mxu0 0.0
        %3421 = vmatpush1.msra.mxu0 0.0
        %3422 = vmatprep.subr.mxu0 0.0
        %3423 = vmatpush1.msra.mxu0 0.0
        %3424 = vmatprep.subr.mxu0 0.0
        %3425 = vmatpush1.msra.mxu0 0.0
        %3426 = vmatprep.subr.mxu0 0.0
        %3427 = vmatpush1.msra.mxu0 0.0
        %3428 = vmatprep.subr.mxu0 0.0
        %3429 = vmatpush1.msra.mxu0 0.0
        %3430 = vmatprep.subr.mxu0 0.0
        %3431 = vmatpush1.msra.mxu0 0.0
        %3432 = vmatprep.subr.mxu0 0.0
        %3433 = vmatpush1.msra.mxu0 0.0
        %3434 = vmatprep.subr.mxu0 0.0
        %3435 = vmatpush1.msra.mxu0 0.0
        %3436 = vmatprep.subr.mxu0 0.0
        %3437 = vmatpush1.msra.mxu0 0.0
        %3438 = vmatprep.subr.mxu0 0.0
        %3439 = vmatpush1.msra.mxu0 0.0
        %3440 = vmatprep.subr.mxu0 0.0
        %3441 = vmatpush1.msra.mxu0 0.0
        %3442 = vmatprep.mubr.f32.mxu0 0.0
        %3443 = vmatmul.mubr.f32.gmra.mrb[0].mxu0 %v2446
        %v3444 = vpop.f32.mrb[0].mxu0
        %v3445 = vadd.f32 0.0, %v3444
        %v3446 = vpop.f32.mrb[0].mxu0
        %3447 = vmatprep.mubr.f32.mxu0 0.0
        %3448 = vmatmul.mubr.f32.gmra.mrb[0].mxu0 %v2447
        %v3449 = vpop.f32.mrb[0].mxu0
        %v3450 = vadd.f32 0.0, %v3449
        %v3451 = vpop.f32.mrb[0].mxu0
        %3452 = vmatprep.mubr.f32.mxu0 0.0
        %3453 = vmatmul.mubr.f32.gmra.mrb[0].mxu0 %v2448
        %v3454 = vpop.f32.mrb[0].mxu0
        %v3455 = vadd.f32 0.0, %v3454
        %v3456 = vpop.f32.mrb[0].mxu0
        %3457 = vmatprep.mubr.f32.mxu0 0.0
        %3458 = vmatmul.mubr.f32.gmra.mrb[0].mxu0 %v2449
        %v3459 = vpop.f32.mrb[0].mxu0
        %v3460 = vadd.f32 0.0, %v3459
        %v3461 = vpop.f32.mrb[0].mxu0
        %3462 = vdwg.mxu0
        %v3463 = vadd.f32 %v3124, %v3445
        %v3464 = vadd.f32 %v3125, %v3450
        %v3465 = vadd.f32 %v3126, %v3455
        %v3466 = vadd.f32 %v3127, %v3460
        %v3467 = vld [vmem:[%s3] sm:$0x1]
        %v3468 = vld [vmem:[%s4] sm:$0x1]
        %v3470 = vlaneseq
        %v3471 = vshrl.u32 %v3470, 7
        %v3472 = vsub.s32 0, %v3471
        %v3473 = vrot.slane %v3467, %v3472
        %v3475 = vmul.f32 %v3350, %v3473
        %v3476 = vmul.f32 %v3351, %v3473
        %v3477 = vmul.f32 %v3352, %v3473
        %v3478 = vmul.f32 %v3353, %v3473
        %v3479 = vmul.f32 %v3354, %v3473
        %v3480 = vmul.f32 %v3355, %v3473
        %v3481 = vmul.f32 %v3356, %v3473
        %v3482 = vmul.f32 %v3357, %v3473
        %v3483 = vmul.f32 %v3358, %v3473
        %v3484 = vmul.f32 %v3359, %v3473
        %v3485 = vmul.f32 %v3360, %v3473
        %v3486 = vmul.f32 %v3361, %v3473
        %v3487 = vmul.f32 %v3362, %v3473
        %v3488 = vmul.f32 %v3363, %v3473
        %v3489 = vmul.f32 %v3364, %v3473
        %v3490 = vmul.f32 %v3365, %v3473
        %v3491 = vmul.f32 %v3366, %v3473
        %v3492 = vmul.f32 %v3367, %v3473
        %v3493 = vmul.f32 %v3368, %v3473
        %v3494 = vmul.f32 %v3369, %v3473
        %v3495 = vmul.f32 %v3370, %v3473
        %v3496 = vmul.f32 %v3371, %v3473
        %v3497 = vmul.f32 %v3372, %v3473
        %v3498 = vmul.f32 %v3373, %v3473
        %v3499 = vmul.f32 %v3374, %v3473
        %v3500 = vmul.f32 %v3375, %v3473
        %v3501 = vmul.f32 %v3376, %v3473
        %v3502 = vmul.f32 %v3377, %v3473
        %v3504 = vlaneseq
        %v3505 = vshrl.u32 %v3504, 7
        %v3506 = vsub.s32 0, %v3505
        %v3507 = vrot.slane %v3468, %v3506
        %v3509 = vadd.f32 %v3475, %v3507
        %v3510 = vadd.f32 %v3476, %v3507
        %v3511 = vadd.f32 %v3477, %v3507
        %v3512 = vadd.f32 %v3478, %v3507
        %v3513 = vadd.f32 %v3479, %v3507
        %v3514 = vadd.f32 %v3480, %v3507
        %v3515 = vadd.f32 %v3481, %v3507
        %v3516 = vadd.f32 %v3482, %v3507
        %v3517 = vadd.f32 %v3483, %v3507
        %v3518 = vadd.f32 %v3484, %v3507
        %v3519 = vadd.f32 %v3485, %v3507
        %v3520 = vadd.f32 %v3486, %v3507
        %v3521 = vadd.f32 %v3487, %v3507
        %v3522 = vadd.f32 %v3488, %v3507
        %v3523 = vadd.f32 %v3489, %v3507
        %v3524 = vadd.f32 %v3490, %v3507
        %v3525 = vadd.f32 %v3491, %v3507
        %v3526 = vadd.f32 %v3492, %v3507
        %v3527 = vadd.f32 %v3493, %v3507
        %v3528 = vadd.f32 %v3494, %v3507
        %v3529 = vadd.f32 %v3495, %v3507
        %v3530 = vadd.f32 %v3496, %v3507
        %v3531 = vadd.f32 %v3497, %v3507
        %v3532 = vadd.f32 %v3498, %v3507
        %v3533 = vadd.f32 %v3499, %v3507
        %v3534 = vadd.f32 %v3500, %v3507
        %v3535 = vadd.f32 %v3501, %v3507
        %v3536 = vadd.f32 %v3502, %v3507
        %v3537 = vxor.u32 %v3509, 2147483648
        %v3538 = vxor.u32 %v3510, 2147483648
        %v3539 = vxor.u32 %v3511, 2147483648
        %v3540 = vxor.u32 %v3512, 2147483648
        %v3541 = vxor.u32 %v3513, 2147483648
        %v3542 = vxor.u32 %v3514, 2147483648
        %v3543 = vxor.u32 %v3515, 2147483648
        %v3544 = vxor.u32 %v3516, 2147483648
        %v3545 = vxor.u32 %v3517, 2147483648
        %v3546 = vxor.u32 %v3518, 2147483648
        %v3547 = vxor.u32 %v3519, 2147483648
        %v3548 = vxor.u32 %v3520, 2147483648
        %v3549 = vxor.u32 %v3521, 2147483648
        %v3550 = vxor.u32 %v3522, 2147483648
        %v3551 = vxor.u32 %v3523, 2147483648
        %v3552 = vxor.u32 %v3524, 2147483648
        %v3553 = vxor.u32 %v3525, 2147483648
        %v3554 = vxor.u32 %v3526, 2147483648
        %v3555 = vxor.u32 %v3527, 2147483648
        %v3556 = vxor.u32 %v3528, 2147483648
        %v3557 = vxor.u32 %v3529, 2147483648
        %v3558 = vxor.u32 %v3530, 2147483648
        %v3559 = vxor.u32 %v3531, 2147483648
        %v3560 = vxor.u32 %v3532, 2147483648
        %v3561 = vxor.u32 %v3533, 2147483648
        %v3562 = vxor.u32 %v3534, 2147483648
        %v3563 = vxor.u32 %v3535, 2147483648
        %v3564 = vxor.u32 %v3536, 2147483648
        %v3565 = vmul.f32 %v3537, 1.442695
        %v3566 = vpow.pop %v3565
        %v3567 = vmul.f32 %v3538, 1.442695
        %v3568 = vpow.pop %v3567
        %v3569 = vmul.f32 %v3539, 1.442695
        %v3570 = vpow.pop %v3569
        %v3571 = vmul.f32 %v3540, 1.442695
        %v3572 = vpow.pop %v3571
        %v3573 = vmul.f32 %v3541, 1.442695
        %v3574 = vpow.pop %v3573
        %v3575 = vmul.f32 %v3542, 1.442695
        %v3576 = vpow.pop %v3575
        %v3577 = vmul.f32 %v3543, 1.442695
        %v3578 = vpow.pop %v3577
        %v3579 = vmul.f32 %v3544, 1.442695
        %v3580 = vpow.pop %v3579
        %v3581 = vmul.f32 %v3545, 1.442695
        %v3582 = vpow.pop %v3581
        %v3583 = vmul.f32 %v3546, 1.442695
        %v3584 = vpow.pop %v3583
        %v3585 = vmul.f32 %v3547, 1.442695
        %v3586 = vpow.pop %v3585
        %v3587 = vmul.f32 %v3548, 1.442695
        %v3588 = vpow.pop %v3587
        %v3589 = vmul.f32 %v3549, 1.442695
        %v3590 = vpow.pop %v3589
        %v3591 = vmul.f32 %v3550, 1.442695
        %v3592 = vpow.pop %v3591
        %v3593 = vmul.f32 %v3551, 1.442695
        %v3594 = vpow.pop %v3593
        %v3595 = vmul.f32 %v3552, 1.442695
        %v3596 = vpow.pop %v3595
        %v3597 = vmul.f32 %v3553, 1.442695
        %v3598 = vpow.pop %v3597
        %v3599 = vmul.f32 %v3554, 1.442695
        %v3600 = vpow.pop %v3599
        %v3601 = vmul.f32 %v3555, 1.442695
        %v3602 = vpow.pop %v3601
        %v3603 = vmul.f32 %v3556, 1.442695
        %v3604 = vpow.pop %v3603
        %v3605 = vmul.f32 %v3557, 1.442695
        %v3606 = vpow.pop %v3605
        %v3607 = vmul.f32 %v3558, 1.442695
        %v3608 = vpow.pop %v3607
        %v3609 = vmul.f32 %v3559, 1.442695
        %v3610 = vpow.pop %v3609
        %v3611 = vmul.f32 %v3560, 1.442695
        %v3612 = vpow.pop %v3611
        %v3613 = vmul.f32 %v3561, 1.442695
        %v3614 = vpow.pop %v3613
        %v3615 = vmul.f32 %v3562, 1.442695
        %v3616 = vpow.pop %v3615
        %v3617 = vmul.f32 %v3563, 1.442695
        %v3618 = vpow.pop %v3617
        %v3619 = vmul.f32 %v3564, 1.442695
        %v3620 = vpow.pop %v3619
        %v3621 = vadd.f32 %v3566, 1.0
        %v3622 = vadd.f32 %v3568, 1.0
        %v3623 = vadd.f32 %v3570, 1.0
        %v3624 = vadd.f32 %v3572, 1.0
        %v3625 = vadd.f32 %v3574, 1.0
        %v3626 = vadd.f32 %v3576, 1.0
        %v3627 = vadd.f32 %v3578, 1.0
        %v3628 = vadd.f32 %v3580, 1.0
        %v3629 = vadd.f32 %v3582, 1.0
        %v3630 = vadd.f32 %v3584, 1.0
        %v3631 = vadd.f32 %v3586, 1.0
        %v3632 = vadd.f32 %v3588, 1.0
        %v3633 = vadd.f32 %v3590, 1.0
        %v3634 = vadd.f32 %v3592, 1.0
        %v3635 = vadd.f32 %v3594, 1.0
        %v3636 = vadd.f32 %v3596, 1.0
        %v3637 = vadd.f32 %v3598, 1.0
        %v3638 = vadd.f32 %v3600, 1.0
        %v3639 = vadd.f32 %v3602, 1.0
        %v3640 = vadd.f32 %v3604, 1.0
        %v3641 = vadd.f32 %v3606, 1.0
        %v3642 = vadd.f32 %v3608, 1.0
        %v3643 = vadd.f32 %v3610, 1.0
        %v3644 = vadd.f32 %v3612, 1.0
        %v3645 = vadd.f32 %v3614, 1.0
        %v3646 = vadd.f32 %v3616, 1.0
        %v3647 = vadd.f32 %v3618, 1.0
        %v3648 = vadd.f32 %v3620, 1.0
        %v3649 = vrcp.pop %v3621
        %v3650 = vmul.f32 1.0, %v3649
        %v3651 = vrcp.pop %v3622
        %v3652 = vmul.f32 1.0, %v3651
        %v3653 = vrcp.pop %v3623
        %v3654 = vmul.f32 1.0, %v3653
        %v3655 = vrcp.pop %v3624
        %v3656 = vmul.f32 1.0, %v3655
        %v3657 = vrcp.pop %v3625
        %v3658 = vmul.f32 1.0, %v3657
        %v3659 = vrcp.pop %v3626
        %v3660 = vmul.f32 1.0, %v3659
        %v3661 = vrcp.pop %v3627
        %v3662 = vmul.f32 1.0, %v3661
        %v3663 = vrcp.pop %v3628
        %v3664 = vmul.f32 1.0, %v3663
        %v3665 = vrcp.pop %v3629
        %v3666 = vmul.f32 1.0, %v3665
        %v3667 = vrcp.pop %v3630
        %v3668 = vmul.f32 1.0, %v3667
        %v3669 = vrcp.pop %v3631
        %v3670 = vmul.f32 1.0, %v3669
        %v3671 = vrcp.pop %v3632
        %v3672 = vmul.f32 1.0, %v3671
        %v3673 = vrcp.pop %v3633
        %v3674 = vmul.f32 1.0, %v3673
        %v3675 = vrcp.pop %v3634
        %v3676 = vmul.f32 1.0, %v3675
        %v3677 = vrcp.pop %v3635
        %v3678 = vmul.f32 1.0, %v3677
        %v3679 = vrcp.pop %v3636
        %v3680 = vmul.f32 1.0, %v3679
        %v3681 = vrcp.pop %v3637
        %v3682 = vmul.f32 1.0, %v3681
        %v3683 = vrcp.pop %v3638
        %v3684 = vmul.f32 1.0, %v3683
        %v3685 = vrcp.pop %v3639
        %v3686 = vmul.f32 1.0, %v3685
        %v3687 = vrcp.pop %v3640
        %v3688 = vmul.f32 1.0, %v3687
        %v3689 = vrcp.pop %v3641
        %v3690 = vmul.f32 1.0, %v3689
        %v3691 = vrcp.pop %v3642
        %v3692 = vmul.f32 1.0, %v3691
        %v3693 = vrcp.pop %v3643
        %v3694 = vmul.f32 1.0, %v3693
        %v3695 = vrcp.pop %v3644
        %v3696 = vmul.f32 1.0, %v3695
        %v3697 = vrcp.pop %v3645
        %v3698 = vmul.f32 1.0, %v3697
        %v3699 = vrcp.pop %v3646
        %v3700 = vmul.f32 1.0, %v3699
        %v3701 = vrcp.pop %v3647
        %v3702 = vmul.f32 1.0, %v3701
        %v3703 = vrcp.pop %v3648
        %v3704 = vmul.f32 1.0, %v3703
        %v3705 = vmul.f32 %v3509, %v3650
        %v3706 = vmul.f32 %v3510, %v3652
        %v3707 = vmul.f32 %v3511, %v3654
        %v3708 = vmul.f32 %v3512, %v3656
        %v3709 = vmul.f32 %v3513, %v3658
        %v3710 = vmul.f32 %v3514, %v3660
        %v3711 = vmul.f32 %v3515, %v3662
        %v3712 = vmul.f32 %v3516, %v3664
        %v3713 = vmul.f32 %v3517, %v3666
        %v3714 = vmul.f32 %v3518, %v3668
        %v3715 = vmul.f32 %v3519, %v3670
        %v3716 = vmul.f32 %v3520, %v3672
        %v3717 = vmul.f32 %v3521, %v3674
        %v3718 = vmul.f32 %v3522, %v3676
        %v3719 = vmul.f32 %v3523, %v3678
        %v3720 = vmul.f32 %v3524, %v3680
        %v3721 = vmul.f32 %v3525, %v3682
        %v3722 = vmul.f32 %v3526, %v3684
        %v3723 = vmul.f32 %v3527, %v3686
        %v3724 = vmul.f32 %v3528, %v3688
        %v3725 = vmul.f32 %v3529, %v3690
        %v3726 = vmul.f32 %v3530, %v3692
        %v3727 = vmul.f32 %v3531, %v3694
        %v3728 = vmul.f32 %v3532, %v3696
        %v3729 = vmul.f32 %v3533, %v3698
        %v3730 = vmul.f32 %v3534, %v3700
        %v3731 = vmul.f32 %v3535, %v3702
        %v3732 = vmul.f32 %v3536, %v3704
        %3733 = vst [vmem:[%s297] sm:$0xff] %v3705
        %3734 = vst [vmem:[%s297 + $0x8] sm:$0xff] %v3706
        %3735 = vst [vmem:[%s297 + $0x10] sm:$0xff] %v3707
        %3736 = vst [vmem:[%s297 + $0x18] sm:$0xff] %v3708
        %3737 = vst [vmem:[%s297 + $0x20] sm:$0xff] %v3709
        %3738 = vst [vmem:[%s297 + $0x28] sm:$0xff] %v3710
        %3739 = vst [vmem:[%s297 + $0x30] sm:$0xff] %v3711
        %3740 = vst [vmem:[%s297 + $0x38] sm:$0xff] %v3712
        %3741 = vst [vmem:[%s297 + $0x40] sm:$0xff] %v3713
        %3742 = vst [vmem:[%s297 + $0x48] sm:$0xff] %v3714
        %3743 = vst [vmem:[%s297 + $0x50] sm:$0xff] %v3715
        %3744 = vst [vmem:[%s297 + $0x58] sm:$0xff] %v3716
        %3745 = vst [vmem:[%s297 + $0x60] sm:$0xff] %v3717
        %3746 = vst [vmem:[%s297 + $0x68] sm:$0xff] %v3718
        %3747 = vst [vmem:[%s297 + $0x70] sm:$0xff] %v3719
        %3748 = vst [vmem:[%s297 + $0x78] sm:$0xff] %v3720
        %3749 = vst [vmem:[%s297 + $0x80] sm:$0xff] %v3721
        %3750 = vst [vmem:[%s297 + $0x88] sm:$0xff] %v3722
        %3751 = vst [vmem:[%s297 + $0x90] sm:$0xff] %v3723
        %3752 = vst [vmem:[%s297 + $0x98] sm:$0xff] %v3724
        %3753 = vst [vmem:[%s297 + $0xa0] sm:$0xff] %v3725
        %3754 = vst [vmem:[%s297 + $0xa8] sm:$0xff] %v3726
        %3755 = vst [vmem:[%s297 + $0xb0] sm:$0xff] %v3727
        %3756 = vst [vmem:[%s297 + $0xb8] sm:$0xff] %v3728
        %3757 = vst [vmem:[%s297 + $0xc0] sm:$0xff] %v3729
        %3758 = vst [vmem:[%s297 + $0xc8] sm:$0xff] %v3730
        %3759 = vst [vmem:[%s297 + $0xd0] sm:$0xff] %v3731
        %3760 = vst [vmem:[%s297 + $0xd8] sm:$0xff] %v3732
        %v3761 = vmul.f32 %v3463, %v3473
        %v3762 = vmul.f32 %v3464, %v3473
        %v3763 = vmul.f32 %v3465, %v3473
        %v3764 = vmul.f32 %v3466, %v3473
        %v3765 = vadd.f32 %v3761, %v3507
        %v3766 = vadd.f32 %v3762, %v3507
        %v3767 = vadd.f32 %v3763, %v3507
        %v3768 = vadd.f32 %v3764, %v3507
        %v3769 = vxor.u32 %v3765, 2147483648
        %v3770 = vxor.u32 %v3766, 2147483648
        %v3771 = vxor.u32 %v3767, 2147483648
        %v3772 = vxor.u32 %v3768, 2147483648
        %v3773 = vmul.f32 %v3769, 1.442695
        %v3774 = vpow.pop %v3773
        %v3775 = vmul.f32 %v3770, 1.442695
        %v3776 = vpow.pop %v3775
        %v3777 = vmul.f32 %v3771, 1.442695
        %v3778 = vpow.pop %v3777
        %v3779 = vmul.f32 %v3772, 1.442695
        %v3780 = vpow.pop %v3779
        %v3781 = vadd.f32 %v3774, 1.0
        %v3782 = vadd.f32 %v3776, 1.0
        %v3783 = vadd.f32 %v3778, 1.0
        %v3784 = vadd.f32 %v3780, 1.0
        %v3785 = vrcp.pop %v3781
        %v3786 = vmul.f32 1.0, %v3785
        %v3787 = vrcp.pop %v3782
        %v3788 = vmul.f32 1.0, %v3787
        %v3789 = vrcp.pop %v3783
        %v3790 = vmul.f32 1.0, %v3789
        %v3791 = vrcp.pop %v3784
        %v3792 = vmul.f32 1.0, %v3791
        %v3793 = vmul.f32 %v3765, %v3786
        %v3794 = vmul.f32 %v3766, %v3788
        %v3795 = vmul.f32 %v3767, %v3790
        %v3796 = vmul.f32 %v3768, %v3792
        %s3797 = scalar_lea.vmem %s297, 224 [#allocation3]
        %3798 = vst [vmem:[%s3797] sm:$0xff] %v3793
        %3799 = vst [vmem:[%s3797 + $0x8] sm:$0xff] %v3794
        %3800 = vst [vmem:[%s3797 + $0x10] sm:$0xff] %v3795
        %3801 = vst [vmem:[%s3797 + $0x18] sm:$0xff] %v3796
        %s3802 = sand.u32 %s164, 1
        %s3803 = scalar_lea.sflag [#allocation4], %s3802
        %s3804 = sand.u32 %s164, 1
        %s3805 = smul.addr %s3804, 256
        %s3806 = scalar_lea.vmem [#allocation3], %s3805
        // Predicated region
        $region41: #{tpu_custom_call.1} parent=39 // pred_check
          %p3807 = pneg %p174
        $region42: #{tpu_custom_call.1} parent=39 // pred_check_branch
          %3809 = sbr.rel (%p3807) target = $region44
        $region43: #{tpu_custom_call.1} parent=39 // pred_region
          %s3810 = smul.u32 16, %s24
          %s3812 = ssub.s32 4096, 4096
          %3813 = vsyncadd %s3803, %s3812
          %s3814 = smul.addr %s3810, 2
          %s3815 = smul.addr %s23, 32
          %s3816 = sadd.s32 %s3814, %s3815
          %s3817 = smul.addr %s3816, 128
          %s3818 = scalar_lea.hbm %s5, %s3817
          %s3819 = sshll.u32 %s3806, 4
          %s3820 = int_to_ptr.vmem [resolvable:$true] %s3819
          %3825 = dma.vmem_to_hbm [thread:$0]  %s3820, 4096, %s3818, %s3803, 128, 128, 8
        $region44: #{tpu_custom_call.1} parent=39 // pred_fallthru
          _
      $region40: #{tpu_custom_call.1} parent=5 // pred_fallthru
        _
      %p3826 = scmp.le.s32.totalorder 2, %s14
      // Predicated region
      $region45: #{tpu_custom_call.1} parent=5 // pred_check
        %p3827 = pneg %p3826
      $region46: #{tpu_custom_call.1} parent=5 // pred_check_branch
        %3829 = sbr.rel (%p3827) target = $region48
      $region47: #{tpu_custom_call.1} parent=5 // pred_region
        %s3830 = ssub.s32 %s14, 2
        // Predicated region
        $region49: #{tpu_custom_call.1} parent=47 // pred_check
          %p3831 = pneg %p180
        $region50: #{tpu_custom_call.1} parent=47 // pred_check_branch
          %3833 = sbr.rel (%p3831) target = $region52
        $region51: #{tpu_custom_call.1} parent=47 // pred_region
          %s3834 = sand.u32 %s165, 1
          %s3835 = scalar_lea.sflag [#allocation4], %s3834
          %s3836 = sand.u32 %s165, 1
          %s3837 = smul.addr %s3836, 256
          %s3838 = scalar_lea.vmem [#allocation3], %s3837
          %3839 = dma.done %s3835, 4096
        $region52: #{tpu_custom_call.1} parent=47 // pred_fallthru
          _
      $region48: #{tpu_custom_call.1} parent=5 // pred_fallthru
        _
    $region6: #{tpu_custom_call.1} parent=1 // loop_footer
      %s18 = sadd.s32 1, %s14
    $region7: #{tpu_custom_call.1} parent=1 // loop_footer_branch
      %13 = sbr.rel target = $region3
    $region8: #{tpu_custom_call.1} parent=1 // loop_exit
      _
    %3840 = vsyncpa [#allocation4], 1
    %s3841 = scalar_lea.sflag [#allocation4], 1
    %3842 = vsyncpa %s3841, 1

</llo_original>
